<compile_context>
chip_gen: v7x
topology: tpu7x:2x2x1
jax: 0.10.0
libtpu: 0.0.40
codegen_flags: <defaults>
</compile_context>

<pallas_src>
import functools

import jax
import jax.numpy as jnp
from jax.experimental import pallas as pl
from jax.experimental.pallas import tpu as pltpu


D_IN = 784
D_H1 = 128
D_H2 = 64
D_H3 = 128
D_OUT = 784
D_OUT_PAD = 896  # 7 * 128, lane-dense output width


def _round_up(x, m):
    return ((x + m - 1) // m) * m


def _autoencoder_kernel(x_ref,
                        w1_ref, b1_ref,
                        w2_ref, b2_ref,
                        w3_ref, b3_ref,
                        w4_ref, b4_ref,
                        o_ref):
    cd = w1_ref.dtype  # compute (matmul operand) dtype, e.g. bf16
    x = x_ref[...]     # (bt, 784) in compute dtype

    # hidden1: Linear(784, 128) + ReLU   (f32 accumulate, f32 elementwise)
    h1 = jnp.dot(x, w1_ref[...], preferred_element_type=jnp.float32) + b1_ref[...]
    h1 = jnp.maximum(h1, 0.0)

    # hidden2: Linear(128, 64) + ReLU
    h2 = jnp.dot(h1.astype(cd), w2_ref[...],
                 preferred_element_type=jnp.float32) + b2_ref[...]
    h2 = jnp.maximum(h2, 0.0)

    # hidden3: Linear(64, 128) + ReLU
    h3 = jnp.dot(h2.astype(cd), w3_ref[...],
                 preferred_element_type=jnp.float32) + b3_ref[...]
    h3 = jnp.maximum(h3, 0.0)

    # output: Linear(128, 784->896 padded) + Sigmoid
    y = jnp.dot(h3.astype(cd), w4_ref[...],
                preferred_element_type=jnp.float32) + b4_ref[...]
    # sigmoid(y) = 1 / (1 + exp(-y)) -- exp + reciprocal both on the EUP slot.
    o_ref[...] = pl.reciprocal(1.0 + jnp.exp(-y), approx=True).astype(o_ref.dtype)


@functools.partial(jax.jit, static_argnames=("batch_tile", "compute_dtype"))
def autoencoder_forward(x, params, *, batch_tile=256, compute_dtype=jnp.bfloat16):
    """x: (B, 784) float32. params: dict of transposed f32 weights/biases.

    Returns (B, 784) float32, matching the PyTorch module's forward.
    """
    B, d_in = x.shape
    assert d_in == D_IN

    # ---- prepare operands (all layout work done outside the kernel) --------
    cd = compute_dtype
    w1 = params["w1"].astype(cd)                       # (784, 128)
    w2 = params["w2"].astype(cd)                       # (128, 64)
    w3 = params["w3"].astype(cd)                       # (64, 128)
    # Pad output layer 784 -> 896 columns (zero cols -> sigmoid(0)=0.5, sliced off).
    w4 = jnp.pad(params["w4"], ((0, 0), (0, D_OUT_PAD - D_OUT))).astype(cd)  # (128, 896)
    b1 = params["b1"].astype(jnp.float32)              # (1, 128)
    b2 = params["b2"].astype(jnp.float32)              # (1, 64)
    b3 = params["b3"].astype(jnp.float32)              # (1, 128)
    b4 = jnp.pad(params["b4"], ((0, 0), (0, D_OUT_PAD - D_OUT))).astype(jnp.float32)

    # ---- batch tiling: pad B up to a multiple of the tile --------------------
    bt = min(batch_tile, _round_up(B, 8))
    Bp = _round_up(B, bt)
    xc = x.astype(cd)
    if Bp != B:
        xc = jnp.pad(xc, ((0, Bp - B), (0, 0)))

    n_tiles = Bp // bt
    full = lambda a: pl.BlockSpec(a.shape, lambda i: (0, 0))   # resident block

    out = pl.pallas_call(
        _autoencoder_kernel,
        out_shape=jax.ShapeDtypeStruct((Bp, D_OUT_PAD), jnp.float32),
        grid=(n_tiles,),
        in_specs=[
            pl.BlockSpec((bt, D_IN), lambda i: (i, 0)),        # x tile
            full(w1), full(b1),
            full(w2), full(b2),
            full(w3), full(b3),
            full(w4), full(b4),
        ],
        out_specs=pl.BlockSpec((bt, D_OUT_PAD), lambda i: (i, 0)),
        compiler_params=pltpu.CompilerParams(
            dimension_semantics=("parallel",)),
    )(xc, w1, b1, w2, b2, w3, b3, w4, b4)

    return out[:B, :D_OUT]


def init_params(key):
    """Deterministic init matching torch.nn.Linear shapes (weights stored transposed)."""
    def linear(k, fan_in, fan_out):
        kw, kb = jax.random.split(k)
        bound = 1.0 / jnp.sqrt(fan_in)
        # torch Linear weight is (out, in); we store the transpose (in, out).
        w = jax.random.uniform(kw, (fan_in, fan_out), jnp.float32, -bound, bound)
        b = jax.random.uniform(kb, (1, fan_out), jnp.float32, -bound, bound)
        return w, b

    k1, k2, k3, k4 = jax.random.split(key, 4)
    w1, b1 = linear(k1, D_IN, D_H1)
    w2, b2 = linear(k2, D_H1, D_H2)
    w3, b3 = linear(k3, D_H2, D_H3)
    w4, b4 = linear(k4, D_H3, D_OUT)
    return dict(w1=w1, b1=b1, w2=w2, b2=b2, w3=w3, b3=b3, w4=w4, b4=b4)


def reference_forward(x, p):
    h1 = jnp.maximum(x @ p["w1"] + p["b1"], 0.0)
    h2 = jnp.maximum(h1 @ p["w2"] + p["b2"], 0.0)
    h3 = jnp.maximum(h2 @ p["w3"] + p["b3"], 0.0)
    return jax.nn.sigmoid(h3 @ p["w4"] + p["b4"])


if __name__ == "__main__":
    key = jax.random.PRNGKey(0)
    kx, kp = jax.random.split(key)

    B = 512                      # 2 grid steps at bt=256 (keeps both v7x TCs busy)
    x = jax.random.normal(kx, (B, D_IN), jnp.float32)
    params = init_params(kp)

    out = autoencoder_forward(x, params)
    out = jax.block_until_ready(out)

    ref = reference_forward(x, params)          # f32 reference
    assert out.shape == (B, D_OUT)
    assert out.dtype == jnp.float32
    max_err = float(jnp.max(jnp.abs(out - ref)))
    # bf16 matmul operands with f32 accumulation -> relaxed tolerance.
    assert max_err < 2e-2, f"max abs error {max_err}"

    print("KERNEL_OK")
</pallas_src>

<mosaic_0001>
module attributes {stable_mosaic.version = 11 : i64} {
  func.func @_autoencoder_kernel(%arg0: i32, %arg1: memref<256x784xbf16, #tpu.memory_space<vmem>>, %arg2: memref<784x128xbf16, #tpu.memory_space<vmem>>, %arg3: memref<1x128xf32, #tpu.memory_space<vmem>>, %arg4: memref<128x64xbf16, #tpu.memory_space<vmem>>, %arg5: memref<1x64xf32, #tpu.memory_space<vmem>>, %arg6: memref<64x128xbf16, #tpu.memory_space<vmem>>, %arg7: memref<1x128xf32, #tpu.memory_space<vmem>>, %arg8: memref<128x896xbf16, #tpu.memory_space<vmem>>, %arg9: memref<1x896xf32, #tpu.memory_space<vmem>>, %arg10: memref<256x896xf32, #tpu.memory_space<vmem>>) attributes {dimension_semantics = [#tpu.dimension_semantics<parallel>], iteration_bounds = array<i64: 2>, scalar_prefetch = 0 : i64, scratch_operands = 0 : i64, tpu.core_type = #tpu.core_type<tc>, window_params = [{transform_indices = @transform_0, window_bounds = array<i64: 256, 784>}, {pipeline_mode = #tpu.pipeline_mode<synchronous>, transform_indices = @transform_1, window_bounds = array<i64: 784, 128>}, {pipeline_mode = #tpu.pipeline_mode<synchronous>, transform_indices = @transform_2, window_bounds = array<i64: 1, 128>}, {pipeline_mode = #tpu.pipeline_mode<synchronous>, transform_indices = @transform_3, window_bounds = array<i64: 128, 64>}, {pipeline_mode = #tpu.pipeline_mode<synchronous>, transform_indices = @transform_4, window_bounds = array<i64: 1, 64>}, {pipeline_mode = #tpu.pipeline_mode<synchronous>, transform_indices = @transform_5, window_bounds = array<i64: 64, 128>}, {pipeline_mode = #tpu.pipeline_mode<synchronous>, transform_indices = @transform_6, window_bounds = array<i64: 1, 128>}, {pipeline_mode = #tpu.pipeline_mode<synchronous>, transform_indices = @transform_7, window_bounds = array<i64: 128, 896>}, {pipeline_mode = #tpu.pipeline_mode<synchronous>, transform_indices = @transform_8, window_bounds = array<i64: 1, 896>}, {transform_indices = @transform_9, window_bounds = array<i64: 256, 896>}]} {
    %c0 = arith.constant 0 : index
    %c0_0 = arith.constant 0 : index
    %0 = vector.load %arg1[%c0, %c0_0] : memref<256x784xbf16, #tpu.memory_space<vmem>>, vector<256x784xbf16>
    %c0_1 = arith.constant 0 : index
    %c0_2 = arith.constant 0 : index
    %1 = vector.load %arg2[%c0_1, %c0_2] : memref<784x128xbf16, #tpu.memory_space<vmem>>, vector<784x128xbf16>
    %cst = arith.constant dense<0.000000e+00> : vector<256x128xf32>
    %2 = tpu.matmul %0, %1, %cst {dimension_numbers = #tpu.dot_dimension_numbers<[1], [0], [0], [1], [0, 0, 1, 1], [], []>} : vector<256x784xbf16>, vector<784x128xbf16>, vector<256x128xf32> -> vector<256x128xf32>
    %c0_3 = arith.constant 0 : index
    %c0_4 = arith.constant 0 : index
    %3 = vector.load %arg3[%c0_3, %c0_4] : memref<1x128xf32, #tpu.memory_space<vmem>>, vector<1x128xf32>
    %4 = vector.broadcast %3 : vector<1x128xf32> to vector<256x128xf32>
    %5 = arith.addf %2, %4 : vector<256x128xf32>
    %cst_5 = arith.constant 0.000000e+00 : f32
    %6 = vector.broadcast %cst_5 : f32 to vector<256x128xf32>
    %7 = arith.maximumf %5, %6 : vector<256x128xf32>
    %8 = arith.truncf %7 : vector<256x128xf32> to vector<256x128xbf16>
    %c0_6 = arith.constant 0 : index
    %c0_7 = arith.constant 0 : index
    %9 = vector.load %arg4[%c0_6, %c0_7] : memref<128x64xbf16, #tpu.memory_space<vmem>>, vector<128x64xbf16>
    %cst_8 = arith.constant dense<0.000000e+00> : vector<256x64xf32>
    %10 = tpu.matmul %8, %9, %cst_8 {dimension_numbers = #tpu.dot_dimension_numbers<[1], [0], [0], [1], [0, 0, 1, 1], [], []>} : vector<256x128xbf16>, vector<128x64xbf16>, vector<256x64xf32> -> vector<256x64xf32>
    %c0_9 = arith.constant 0 : index
    %c0_10 = arith.constant 0 : index
    %11 = vector.load %arg5[%c0_9, %c0_10] : memref<1x64xf32, #tpu.memory_space<vmem>>, vector<1x64xf32>
    %12 = vector.broadcast %11 : vector<1x64xf32> to vector<256x64xf32>
    %13 = arith.addf %10, %12 : vector<256x64xf32>
    %cst_11 = arith.constant 0.000000e+00 : f32
    %14 = vector.broadcast %cst_11 : f32 to vector<256x64xf32>
    %15 = arith.maximumf %13, %14 : vector<256x64xf32>
    %16 = arith.truncf %15 : vector<256x64xf32> to vector<256x64xbf16>
    %c0_12 = arith.constant 0 : index
    %c0_13 = arith.constant 0 : index
    %17 = vector.load %arg6[%c0_12, %c0_13] : memref<64x128xbf16, #tpu.memory_space<vmem>>, vector<64x128xbf16>
    %cst_14 = arith.constant dense<0.000000e+00> : vector<256x128xf32>
    %18 = tpu.matmul %16, %17, %cst_14 {dimension_numbers = #tpu.dot_dimension_numbers<[1], [0], [0], [1], [0, 0, 1, 1], [], []>} : vector<256x64xbf16>, vector<64x128xbf16>, vector<256x128xf32> -> vector<256x128xf32>
    %c0_15 = arith.constant 0 : index
    %c0_16 = arith.constant 0 : index
    %19 = vector.load %arg7[%c0_15, %c0_16] : memref<1x128xf32, #tpu.memory_space<vmem>>, vector<1x128xf32>
    %20 = vector.broadcast %19 : vector<1x128xf32> to vector<256x128xf32>
    %21 = arith.addf %18, %20 : vector<256x128xf32>
    %cst_17 = arith.constant 0.000000e+00 : f32
    %22 = vector.broadcast %cst_17 : f32 to vector<256x128xf32>
    %23 = arith.maximumf %21, %22 : vector<256x128xf32>
    %24 = arith.truncf %23 : vector<256x128xf32> to vector<256x128xbf16>
    %c0_18 = arith.constant 0 : index
    %c0_19 = arith.constant 0 : index
    %25 = vector.load %arg8[%c0_18, %c0_19] : memref<128x896xbf16, #tpu.memory_space<vmem>>, vector<128x896xbf16>
    %cst_20 = arith.constant dense<0.000000e+00> : vector<256x896xf32>
    %26 = tpu.matmul %24, %25, %cst_20 {dimension_numbers = #tpu.dot_dimension_numbers<[1], [0], [0], [1], [0, 0, 1, 1], [], []>} : vector<256x128xbf16>, vector<128x896xbf16>, vector<256x896xf32> -> vector<256x896xf32>
    %c0_21 = arith.constant 0 : index
    %c0_22 = arith.constant 0 : index
    %27 = vector.load %arg9[%c0_21, %c0_22] : memref<1x896xf32, #tpu.memory_space<vmem>>, vector<1x896xf32>
    %28 = vector.broadcast %27 : vector<1x896xf32> to vector<256x896xf32>
    %29 = arith.addf %26, %28 : vector<256x896xf32>
    %cst_23 = arith.constant 0.000000e+00 : f32
    %30 = vector.broadcast %cst_23 : f32 to vector<256x896xf32>
    %31 = arith.subf %30, %29 : vector<256x896xf32>
    %32 = math.exp %31 : vector<256x896xf32>
    %cst_24 = arith.constant 1.000000e+00 : f32
    %33 = vector.broadcast %cst_24 : f32 to vector<256x896xf32>
    %34 = arith.addf %33, %32 : vector<256x896xf32>
    %35 = tpu.reciprocal %34 {approx = true} : vector<256x896xf32> -> vector<256x896xf32>
    %c0_25 = arith.constant 0 : index
    %c0_26 = arith.constant 0 : index
    %36 = vector.load %arg10[%c0_25, %c0_26] : memref<256x896xf32, #tpu.memory_space<vmem>>, vector<256x896xf32>
    tpu.vector_store %arg10[%c0_25, %c0_26], %35 {strides = array<i32>} : memref<256x896xf32, #tpu.memory_space<vmem>>, vector<256x896xf32>,
    return
  }
  func.func @transform_0(%arg0: i32) -> (i32, i32) {
    %c0_i32 = arith.constant 0 : i32
    %c0_i32_0 = arith.constant 0 : i32
    return %arg0, %c0_i32 : i32, i32
  }
  func.func @transform_1(%arg0: i32) -> (i32, i32) {
    %c0_i32 = arith.constant 0 : i32
    %c0_i32_0 = arith.constant 0 : i32
    %c0_i32_1 = arith.constant 0 : i32
    return %c0_i32, %c0_i32_0 : i32, i32
  }
  func.func @transform_2(%arg0: i32) -> (i32, i32) {
    %c0_i32 = arith.constant 0 : i32
    %c0_i32_0 = arith.constant 0 : i32
    %c0_i32_1 = arith.constant 0 : i32
    return %c0_i32, %c0_i32_0 : i32, i32
  }
  func.func @transform_3(%arg0: i32) -> (i32, i32) {
    %c0_i32 = arith.constant 0 : i32
    %c0_i32_0 = arith.constant 0 : i32
    %c0_i32_1 = arith.constant 0 : i32
    return %c0_i32, %c0_i32_0 : i32, i32
  }
  func.func @transform_4(%arg0: i32) -> (i32, i32) {
    %c0_i32 = arith.constant 0 : i32
    %c0_i32_0 = arith.constant 0 : i32
    %c0_i32_1 = arith.constant 0 : i32
    return %c0_i32, %c0_i32_0 : i32, i32
  }
  func.func @transform_5(%arg0: i32) -> (i32, i32) {
    %c0_i32 = arith.constant 0 : i32
    %c0_i32_0 = arith.constant 0 : i32
    %c0_i32_1 = arith.constant 0 : i32
    return %c0_i32, %c0_i32_0 : i32, i32
  }
  func.func @transform_6(%arg0: i32) -> (i32, i32) {
    %c0_i32 = arith.constant 0 : i32
    %c0_i32_0 = arith.constant 0 : i32
    %c0_i32_1 = arith.constant 0 : i32
    return %c0_i32, %c0_i32_0 : i32, i32
  }
  func.func @transform_7(%arg0: i32) -> (i32, i32) {
    %c0_i32 = arith.constant 0 : i32
    %c0_i32_0 = arith.constant 0 : i32
    %c0_i32_1 = arith.constant 0 : i32
    return %c0_i32, %c0_i32_0 : i32, i32
  }
  func.func @transform_8(%arg0: i32) -> (i32, i32) {
    %c0_i32 = arith.constant 0 : i32
    %c0_i32_0 = arith.constant 0 : i32
    %c0_i32_1 = arith.constant 0 : i32
    return %c0_i32, %c0_i32_0 : i32, i32
  }
  func.func @transform_9(%arg0: i32) -> (i32, i32) {
    %c0_i32 = arith.constant 0 : i32
    %c0_i32_0 = arith.constant 0 : i32
    return %arg0, %c0_i32 : i32, i32
  }
}

</mosaic_0001>

<llo_original>
// kernel: autoencoder_forward.1
$region0: #{autoencoder_forward.1}
  #allocation0 [shape = 'u32[]', space=smem, size = 0x4, offset = 0x4, fixed_abs, tag = 'smem constant byte address 0x4 - core index']
  #allocation1 [shape = 'u32[144,128]{1,0:T(1,128)}', space=vmem, size = 0x12000, scoped, tag = 'internal scratch']
  %s0 = inlined_call_operand.vmem [shape: bf16[512,784], index: 0, kind: input, shape index: {}]
  %s1 = inlined_call_operand.vmem [shape: bf16[784,128], index: 1, kind: input, shape index: {}]
  %s2 = inlined_call_operand.vmem [shape: f32[1,128], index: 2, kind: input, shape index: {}]
  %s3 = inlined_call_operand.vmem [shape: bf16[128,64], index: 3, kind: input, shape index: {}]
  %s4 = inlined_call_operand.vmem [shape: f32[1,64], index: 4, kind: input, shape index: {}]
  %s5 = inlined_call_operand.vmem [shape: bf16[64,128], index: 5, kind: input, shape index: {}]
  %s6 = inlined_call_operand.vmem [shape: f32[1,128], index: 6, kind: input, shape index: {}]
  %s7 = inlined_call_operand.vmem [shape: bf16[128,896], index: 7, kind: input, shape index: {}]
  %s8 = inlined_call_operand.vmem [shape: f32[1,896], index: 8, kind: input, shape index: {}]
  %s9 = inlined_call_operand.vmem [shape: f32[512,896], index: 9, kind: output, shape index: {}]
  %s10 = sld [smem:[#allocation0]]
  $region69: #{autoencoder_forward.1} parent=0
    _
  %s12 = ssub.s32 1, %s10
  %s13 = scalar_select 0, %s12, %s10
  loop: start=0, step=1, limit=4
  $region2: #{autoencoder_forward.1} parent=0 // loop_pre_header
    _
  $region3: #{autoencoder_forward.1} parent=0 // loop_header
    %s15 = sphi 0, %s19
    %p16 = scmp.ge.s32.totalorder %s15, 4
    %s25 = sphi 0, %s27
    %s28 = sphi 0, %s25
    %s29 = sphi 0, %s28
    %s45 = sphi 0, %s29
    %s49 = sphi 0, %s49
    %s51 = sphi 0, %s49
    %s52 = sphi 0, %s51
    %s66 = sphi 0, %s52
    %s70 = sphi 0, %s70
    %s72 = sphi 0, %s70
    %s73 = sphi 0, %s72
    %s87 = sphi 0, %s73
    %s91 = sphi 0, %s91
    %s93 = sphi 0, %s91
    %s94 = sphi 0, %s93
    %s108 = sphi 0, %s94
    %s112 = sphi 0, %s112
    %s114 = sphi 0, %s112
    %s115 = sphi 0, %s114
    %s129 = sphi 0, %s115
    %s133 = sphi 0, %s133
    %s135 = sphi 0, %s133
    %s136 = sphi 0, %s135
    %s150 = sphi 0, %s136
    %s154 = sphi 0, %s154
    %s156 = sphi 0, %s154
    %s157 = sphi 0, %s156
    %s171 = sphi 0, %s157
    %s175 = sphi 0, %s175
    %s177 = sphi 0, %s175
    %s178 = sphi 0, %s177
    %s192 = sphi 0, %s178
    %s196 = sphi 0, %s196
    %s198 = sphi 0, %s196
    %s199 = sphi 0, %s198
    %s213 = sphi 0, %s199
    %s219 = sphi 0, %s221
    %s222 = sphi 0, %s219
    %s223 = sphi 0, %s222
    %s239 = sphi 0, %s223
  $region4: #{autoencoder_forward.1} parent=0 // loop_header_branch
    %18 = sbr.rel (%p16) target = $region8
  $region5: #{autoencoder_forward.1} parent=0 // loop_body
    %s20 = ssub.s32 %s15, 1
    %s21 = ssub.s32 %s15, 2
    %s22 = sadd.s32 %s15, 1
    %s23 = ssub.s32 %s15, %s22
    %p24 = scmp.eq.s32.totalorder %s23, 0
    %s26 = sadd.s32 %s25, 1
    %s27 = scalar_select %p24, %s25, %s26
    %p30 = pneg %p24
    %p31 = scmp.eq.s32.totalorder %s15, 1
    %p32 = por %p30, %p31
    %p33 = scmp.ne.s32.totalorder %s25, %s28
    %p34 = scmp.eq.s32.totalorder %s15, 0
    %p35 = por %p33, %p34
    %p36 = scmp.ne.s32.totalorder %s25, %s28
    %p37 = scmp.eq.s32.totalorder %s20, 1
    %p38 = por %p36, %p37
    %p39 = scmp.ne.s32.totalorder %s28, %s29
    %p40 = scmp.eq.s32.totalorder %s20, 0
    %p41 = por %p39, %p40
    %p42 = scmp.ne.s32.totalorder %s28, %s29
    %p43 = scmp.eq.s32.totalorder %s21, 1
    %p44 = por %p42, %p43
    %p46 = scmp.ne.s32.totalorder %s29, %s45
    %p47 = scmp.eq.s32.totalorder %s21, 0
    %p48 = por %p46, %p47
    %s50 = sadd.s32 %s49, 1
    %p53 = scmp.eq.s32.totalorder %s15, 1
    %p54 = scmp.ne.s32.totalorder %s49, %s51
    %p55 = scmp.eq.s32.totalorder %s15, 0
    %p56 = por %p54, %p55
    %p57 = scmp.ne.s32.totalorder %s49, %s51
    %p58 = scmp.eq.s32.totalorder %s20, 1
    %p59 = por %p57, %p58
    %p60 = scmp.ne.s32.totalorder %s51, %s52
    %p61 = scmp.eq.s32.totalorder %s20, 0
    %p62 = por %p60, %p61
    %p63 = scmp.ne.s32.totalorder %s51, %s52
    %p64 = scmp.eq.s32.totalorder %s21, 1
    %p65 = por %p63, %p64
    %p67 = scmp.ne.s32.totalorder %s52, %s66
    %p68 = scmp.eq.s32.totalorder %s21, 0
    %p69 = por %p67, %p68
    %s71 = sadd.s32 %s70, 1
    %p74 = scmp.eq.s32.totalorder %s15, 1
    %p75 = scmp.ne.s32.totalorder %s70, %s72
    %p76 = scmp.eq.s32.totalorder %s15, 0
    %p77 = por %p75, %p76
    %p78 = scmp.ne.s32.totalorder %s70, %s72
    %p79 = scmp.eq.s32.totalorder %s20, 1
    %p80 = por %p78, %p79
    %p81 = scmp.ne.s32.totalorder %s72, %s73
    %p82 = scmp.eq.s32.totalorder %s20, 0
    %p83 = por %p81, %p82
    %p84 = scmp.ne.s32.totalorder %s72, %s73
    %p85 = scmp.eq.s32.totalorder %s21, 1
    %p86 = por %p84, %p85
    %p88 = scmp.ne.s32.totalorder %s73, %s87
    %p89 = scmp.eq.s32.totalorder %s21, 0
    %p90 = por %p88, %p89
    %s92 = sadd.s32 %s91, 1
    %p95 = scmp.eq.s32.totalorder %s15, 1
    %p96 = scmp.ne.s32.totalorder %s91, %s93
    %p97 = scmp.eq.s32.totalorder %s15, 0
    %p98 = por %p96, %p97
    %p99 = scmp.ne.s32.totalorder %s91, %s93
    %p100 = scmp.eq.s32.totalorder %s20, 1
    %p101 = por %p99, %p100
    %p102 = scmp.ne.s32.totalorder %s93, %s94
    %p103 = scmp.eq.s32.totalorder %s20, 0
    %p104 = por %p102, %p103
    %p105 = scmp.ne.s32.totalorder %s93, %s94
    %p106 = scmp.eq.s32.totalorder %s21, 1
    %p107 = por %p105, %p106
    %p109 = scmp.ne.s32.totalorder %s94, %s108
    %p110 = scmp.eq.s32.totalorder %s21, 0
    %p111 = por %p109, %p110
    %s113 = sadd.s32 %s112, 1
    %p116 = scmp.eq.s32.totalorder %s15, 1
    %p117 = scmp.ne.s32.totalorder %s112, %s114
    %p118 = scmp.eq.s32.totalorder %s15, 0
    %p119 = por %p117, %p118
    %p120 = scmp.ne.s32.totalorder %s112, %s114
    %p121 = scmp.eq.s32.totalorder %s20, 1
    %p122 = por %p120, %p121
    %p123 = scmp.ne.s32.totalorder %s114, %s115
    %p124 = scmp.eq.s32.totalorder %s20, 0
    %p125 = por %p123, %p124
    %p126 = scmp.ne.s32.totalorder %s114, %s115
    %p127 = scmp.eq.s32.totalorder %s21, 1
    %p128 = por %p126, %p127
    %p130 = scmp.ne.s32.totalorder %s115, %s129
    %p131 = scmp.eq.s32.totalorder %s21, 0
    %p132 = por %p130, %p131
    %s134 = sadd.s32 %s133, 1
    %p137 = scmp.eq.s32.totalorder %s15, 1
    %p138 = scmp.ne.s32.totalorder %s133, %s135
    %p139 = scmp.eq.s32.totalorder %s15, 0
    %p140 = por %p138, %p139
    %p141 = scmp.ne.s32.totalorder %s133, %s135
    %p142 = scmp.eq.s32.totalorder %s20, 1
    %p143 = por %p141, %p142
    %p144 = scmp.ne.s32.totalorder %s135, %s136
    %p145 = scmp.eq.s32.totalorder %s20, 0
    %p146 = por %p144, %p145
    %p147 = scmp.ne.s32.totalorder %s135, %s136
    %p148 = scmp.eq.s32.totalorder %s21, 1
    %p149 = por %p147, %p148
    %p151 = scmp.ne.s32.totalorder %s136, %s150
    %p152 = scmp.eq.s32.totalorder %s21, 0
    %p153 = por %p151, %p152
    %s155 = sadd.s32 %s154, 1
    %p158 = scmp.eq.s32.totalorder %s15, 1
    %p159 = scmp.ne.s32.totalorder %s154, %s156
    %p160 = scmp.eq.s32.totalorder %s15, 0
    %p161 = por %p159, %p160
    %p162 = scmp.ne.s32.totalorder %s154, %s156
    %p163 = scmp.eq.s32.totalorder %s20, 1
    %p164 = por %p162, %p163
    %p165 = scmp.ne.s32.totalorder %s156, %s157
    %p166 = scmp.eq.s32.totalorder %s20, 0
    %p167 = por %p165, %p166
    %p168 = scmp.ne.s32.totalorder %s156, %s157
    %p169 = scmp.eq.s32.totalorder %s21, 1
    %p170 = por %p168, %p169
    %p172 = scmp.ne.s32.totalorder %s157, %s171
    %p173 = scmp.eq.s32.totalorder %s21, 0
    %p174 = por %p172, %p173
    %s176 = sadd.s32 %s175, 1
    %p179 = scmp.eq.s32.totalorder %s15, 1
    %p180 = scmp.ne.s32.totalorder %s175, %s177
    %p181 = scmp.eq.s32.totalorder %s15, 0
    %p182 = por %p180, %p181
    %p183 = scmp.ne.s32.totalorder %s175, %s177
    %p184 = scmp.eq.s32.totalorder %s20, 1
    %p185 = por %p183, %p184
    %p186 = scmp.ne.s32.totalorder %s177, %s178
    %p187 = scmp.eq.s32.totalorder %s20, 0
    %p188 = por %p186, %p187
    %p189 = scmp.ne.s32.totalorder %s177, %s178
    %p190 = scmp.eq.s32.totalorder %s21, 1
    %p191 = por %p189, %p190
    %p193 = scmp.ne.s32.totalorder %s178, %s192
    %p194 = scmp.eq.s32.totalorder %s21, 0
    %p195 = por %p193, %p194
    %s197 = sadd.s32 %s196, 1
    %p200 = scmp.eq.s32.totalorder %s15, 1
    %p201 = scmp.ne.s32.totalorder %s196, %s198
    %p202 = scmp.eq.s32.totalorder %s15, 0
    %p203 = por %p201, %p202
    %p204 = scmp.ne.s32.totalorder %s196, %s198
    %p205 = scmp.eq.s32.totalorder %s20, 1
    %p206 = por %p204, %p205
    %p207 = scmp.ne.s32.totalorder %s198, %s199
    %p208 = scmp.eq.s32.totalorder %s20, 0
    %p209 = por %p207, %p208
    %p210 = scmp.ne.s32.totalorder %s198, %s199
    %p211 = scmp.eq.s32.totalorder %s21, 1
    %p212 = por %p210, %p211
    %p214 = scmp.ne.s32.totalorder %s199, %s213
    %p215 = scmp.eq.s32.totalorder %s21, 0
    %p216 = por %p214, %p215
    %s217 = ssub.s32 %s15, %s22
    %p218 = scmp.eq.s32.totalorder %s217, 0
    %s220 = sadd.s32 %s219, 1
    %s221 = scalar_select %p218, %s219, %s220
    %p224 = pneg %p218
    %p225 = scmp.eq.s32.totalorder %s15, 1
    %p226 = por %p224, %p225
    %p227 = scmp.ne.s32.totalorder %s219, %s222
    %p228 = scmp.eq.s32.totalorder %s15, 0
    %p229 = por %p227, %p228
    %p230 = scmp.ne.s32.totalorder %s219, %s222
    %p231 = scmp.eq.s32.totalorder %s20, 1
    %p232 = por %p230, %p231
    %p233 = scmp.ne.s32.totalorder %s222, %s223
    %p234 = scmp.eq.s32.totalorder %s20, 0
    %p235 = por %p233, %p234
    %p236 = scmp.ne.s32.totalorder %s222, %s223
    %p237 = scmp.eq.s32.totalorder %s21, 1
    %p238 = por %p236, %p237
    %p240 = scmp.ne.s32.totalorder %s223, %s239
    %p241 = scmp.eq.s32.totalorder %s21, 0
    %p242 = por %p240, %p241
    %p243 = scmp.le.s32.totalorder 1, %s15
    %p244 = scmp.lt.s32.totalorder %s15, 3
    %p245 = pnand %p243, %p244
    %p246 = pneg %p245
    // Predicated region
    $region9: #{autoencoder_forward.1} parent=5 // pred_check
      _
    $region10: #{autoencoder_forward.1} parent=5 // pred_check_branch
      %248 = sbr.rel (%p245) target = $region12
    $region11: #{autoencoder_forward.1} parent=5 // pred_region
      %s249 = ssub.s32 %s15, 1
      // Predicated region
      $region13: #{autoencoder_forward.1} parent=11 // pred_check
        %p250 = pneg %p62
      $region14: #{autoencoder_forward.1} parent=11 // pred_check_branch
        %252 = sbr.rel (%p250) target = $region16
      $region15: #{autoencoder_forward.1} parent=11 // pred_region
        _
      $region16: #{autoencoder_forward.1} parent=11 // pred_fallthru
        _
      // Predicated region
      $region17: #{autoencoder_forward.1} parent=11 // pred_check
        %p253 = pneg %p83
      $region18: #{autoencoder_forward.1} parent=11 // pred_check_branch
        %255 = sbr.rel (%p253) target = $region20
      $region19: #{autoencoder_forward.1} parent=11 // pred_region
        _
      $region20: #{autoencoder_forward.1} parent=11 // pred_fallthru
        _
      // Predicated region
      $region21: #{autoencoder_forward.1} parent=11 // pred_check
        %p256 = pneg %p104
      $region22: #{autoencoder_forward.1} parent=11 // pred_check_branch
        %258 = sbr.rel (%p256) target = $region24
      $region23: #{autoencoder_forward.1} parent=11 // pred_region
        _
      $region24: #{autoencoder_forward.1} parent=11 // pred_fallthru
        _
      // Predicated region
      $region25: #{autoencoder_forward.1} parent=11 // pred_check
        %p259 = pneg %p125
      $region26: #{autoencoder_forward.1} parent=11 // pred_check_branch
        %261 = sbr.rel (%p259) target = $region28
      $region27: #{autoencoder_forward.1} parent=11 // pred_region
        _
      $region28: #{autoencoder_forward.1} parent=11 // pred_fallthru
        _
      // Predicated region
      $region29: #{autoencoder_forward.1} parent=11 // pred_check
        %p262 = pneg %p146
      $region30: #{autoencoder_forward.1} parent=11 // pred_check_branch
        %264 = sbr.rel (%p262) target = $region32
      $region31: #{autoencoder_forward.1} parent=11 // pred_region
        _
      $region32: #{autoencoder_forward.1} parent=11 // pred_fallthru
        _
      // Predicated region
      $region33: #{autoencoder_forward.1} parent=11 // pred_check
        %p265 = pneg %p167
      $region34: #{autoencoder_forward.1} parent=11 // pred_check_branch
        %267 = sbr.rel (%p265) target = $region36
      $region35: #{autoencoder_forward.1} parent=11 // pred_region
        _
      $region36: #{autoencoder_forward.1} parent=11 // pred_fallthru
        _
      // Predicated region
      $region37: #{autoencoder_forward.1} parent=11 // pred_check
        %p268 = pneg %p188
      $region38: #{autoencoder_forward.1} parent=11 // pred_check_branch
        %270 = sbr.rel (%p268) target = $region40
      $region39: #{autoencoder_forward.1} parent=11 // pred_region
        _
      $region40: #{autoencoder_forward.1} parent=11 // pred_fallthru
        _
      // Predicated region
      $region41: #{autoencoder_forward.1} parent=11 // pred_check
        %p271 = pneg %p209
      $region42: #{autoencoder_forward.1} parent=11 // pred_check_branch
        %273 = sbr.rel (%p271) target = $region44
      $region43: #{autoencoder_forward.1} parent=11 // pred_region
        _
      $region44: #{autoencoder_forward.1} parent=11 // pred_fallthru
        _
    $region12: #{autoencoder_forward.1} parent=5 // pred_fallthru
      _
    %p274 = scmp.lt.s32.totalorder %s15, 2
    // Predicated region
    $region45: #{autoencoder_forward.1} parent=5 // pred_check
      %p275 = pneg %p274
    $region46: #{autoencoder_forward.1} parent=5 // pred_check_branch
      %277 = sbr.rel (%p275) target = $region48
    $region47: #{autoencoder_forward.1} parent=5 // pred_region
      // Predicated region
      $region49: #{autoencoder_forward.1} parent=47 // pred_check
        %p278 = pneg %p35
      $region50: #{autoencoder_forward.1} parent=47 // pred_check_branch
        %280 = sbr.rel (%p278) target = $region52
      $region51: #{autoencoder_forward.1} parent=47 // pred_region
        %s281 = smul.u32 32, %s15
        %p282 = scmp.lt.s32.totalorder %s281, 63
        %s283 = scalar_select %p282, %s281, 63
        %s284 = smul.addr %s283, 7
        %s285 = smul.addr %s284, 4
        %s286 = scalar_lea.vmem %s0, %s285
        %s287 = smul.u32 32, %s15
      $region52: #{autoencoder_forward.1} parent=47 // pred_fallthru
        _
    $region48: #{autoencoder_forward.1} parent=5 // pred_fallthru
      _
    %p288 = scmp.le.s32.totalorder 1, %s15
    %p289 = scmp.lt.s32.totalorder %s15, 3
    %p290 = pnand %p288, %p289
    %p291 = pneg %p290
    // Predicated region
    $region53: #{autoencoder_forward.1} parent=5 // pred_check
      _
    $region54: #{autoencoder_forward.1} parent=5 // pred_check_branch
      %293 = sbr.rel (%p290) target = $region56
    $region55: #{autoencoder_forward.1} parent=5 // pred_region
      %s294 = ssub.s32 %s15, 1
      %s295 = smul.u32 32, %s20
      %p296 = scmp.lt.s32.totalorder %s295, 63
      %s297 = scalar_select %p296, %s295, 63
      %s298 = smul.addr %s297, 7
      %s299 = smul.addr %s298, 4
      %s300 = scalar_lea.vmem %s0, %s299
      %p301 = pneg %p41
      %p302 = pneg %p38
      %p303 = pneg %p62
      %p304 = pneg %p59
      %p305 = pneg %p83
      %p306 = pneg %p80
      %p307 = pneg %p104
      %p308 = pneg %p101
      %p309 = pneg %p125
      %p310 = pneg %p122
      %p311 = pneg %p146
      %p312 = pneg %p143
      %p313 = pneg %p167
      %p314 = pneg %p164
      %p315 = pneg %p188
      %p316 = pneg %p185
      %p317 = pneg %p209
      %p318 = pneg %p206
      %p319 = pneg %p235
      %p320 = pneg %p232
      %s321 = smul.u32 32, %s20
      %p322 = scmp.lt.s32.totalorder %s321, 63
      %s323 = scalar_select %p322, %s321, 63
      %s324 = smul.addr %s323, 7
      %s325 = smul.addr %s324, 8
      %s326 = scalar_lea.vmem %s9, %s325
      %s327 = smul.u32 32, %s20
      %p328 = scmp.lt.s32.totalorder %s327, 63
      %s329 = scalar_select %p328, %s327, 63
      %s330 = smul.addr %s329, 7
      %s331 = smul.addr %s330, 4
      %s332 = scalar_lea.vmem %s0, %s331
      %s333 = smul.u32 32, %s20
      %s334 = smul.u32 32, %s20
      %p335 = scmp.lt.s32.totalorder %s334, 63
      %s336 = scalar_select %p335, %s334, 63
      %s337 = smul.addr %s336, 7
      %s338 = smul.addr %s337, 8
      %s339 = scalar_lea.vmem %s9, %s338
      %s340 = smul.u32 32, %s20
      %v342 = vld [vmem:[%s332] sm:$0xff]
      %v343 = vld [vmem:[%s332 + $0x8] sm:$0xff]
      %v344 = vld [vmem:[%s332 + $0x10] sm:$0xff]
      %v345 = vld [vmem:[%s332 + $0x18] sm:$0xf]
      %v346 = vld [vmem:[%s332 + $0x1c] sm:$0xff]
      %v347 = vld [vmem:[%s332 + $0x24] sm:$0xff]
      %v348 = vld [vmem:[%s332 + $0x2c] sm:$0xff]
      %v349 = vld [vmem:[%s332 + $0x34] sm:$0xf]
      %v350 = vld [vmem:[%s332 + $0x38] sm:$0xff]
      %v351 = vld [vmem:[%s332 + $0x40] sm:$0xff]
      %v352 = vld [vmem:[%s332 + $0x48] sm:$0xff]
      %v353 = vld [vmem:[%s332 + $0x50] sm:$0xf]
      %v354 = vld [vmem:[%s332 + $0x54] sm:$0xff]
      %v355 = vld [vmem:[%s332 + $0x5c] sm:$0xff]
      %v356 = vld [vmem:[%s332 + $0x64] sm:$0xff]
      %v357 = vld [vmem:[%s332 + $0x6c] sm:$0xf]
      %v358 = vld [vmem:[%s332 + $0x70] sm:$0xff]
      %v359 = vld [vmem:[%s332 + $0x78] sm:$0xff]
      %v360 = vld [vmem:[%s332 + $0x80] sm:$0xff]
      %v361 = vld [vmem:[%s332 + $0x88] sm:$0xf]
      %v362 = vld [vmem:[%s332 + $0x8c] sm:$0xff]
      %v363 = vld [vmem:[%s332 + $0x94] sm:$0xff]
      %v364 = vld [vmem:[%s332 + $0x9c] sm:$0xff]
      %v365 = vld [vmem:[%s332 + $0xa4] sm:$0xf]
      %v366 = vld [vmem:[%s332 + $0xa8] sm:$0xff]
      %v367 = vld [vmem:[%s332 + $0xb0] sm:$0xff]
      %v368 = vld [vmem:[%s332 + $0xb8] sm:$0xff]
      %v369 = vld [vmem:[%s332 + $0xc0] sm:$0xf]
      %v370 = vld [vmem:[%s332 + $0xc4] sm:$0xff]
      %v371 = vld [vmem:[%s332 + $0xcc] sm:$0xff]
      %v372 = vld [vmem:[%s332 + $0xd4] sm:$0xff]
      %v373 = vld [vmem:[%s332 + $0xdc] sm:$0xf]
      %v374 = vld [vmem:[%s332 + $0xe0] sm:$0xff]
      %v375 = vld [vmem:[%s332 + $0xe8] sm:$0xff]
      %v376 = vld [vmem:[%s332 + $0xf0] sm:$0xff]
      %v377 = vld [vmem:[%s332 + $0xf8] sm:$0xf]
      %v378 = vld [vmem:[%s332 + $0xfc] sm:$0xff]
      %v379 = vld [vmem:[%s332 + $0x104] sm:$0xff]
      %v380 = vld [vmem:[%s332 + $0x10c] sm:$0xff]
      %v381 = vld [vmem:[%s332 + $0x114] sm:$0xf]
      %v382 = vld [vmem:[%s332 + $0x118] sm:$0xff]
      %v383 = vld [vmem:[%s332 + $0x120] sm:$0xff]
      %v384 = vld [vmem:[%s332 + $0x128] sm:$0xff]
      %v385 = vld [vmem:[%s332 + $0x130] sm:$0xf]
      %v386 = vld [vmem:[%s332 + $0x134] sm:$0xff]
      %v387 = vld [vmem:[%s332 + $0x13c] sm:$0xff]
      %v388 = vld [vmem:[%s332 + $0x144] sm:$0xff]
      %v389 = vld [vmem:[%s332 + $0x14c] sm:$0xf]
      %v390 = vld [vmem:[%s332 + $0x150] sm:$0xff]
      %v391 = vld [vmem:[%s332 + $0x158] sm:$0xff]
      %v392 = vld [vmem:[%s332 + $0x160] sm:$0xff]
      %v393 = vld [vmem:[%s332 + $0x168] sm:$0xf]
      %v394 = vld [vmem:[%s332 + $0x16c] sm:$0xff]
      %v395 = vld [vmem:[%s332 + $0x174] sm:$0xff]
      %v396 = vld [vmem:[%s332 + $0x17c] sm:$0xff]
      %v397 = vld [vmem:[%s332 + $0x184] sm:$0xf]
      %v398 = vld [vmem:[%s332 + $0x188] sm:$0xff]
      %v399 = vld [vmem:[%s332 + $0x190] sm:$0xff]
      %v400 = vld [vmem:[%s332 + $0x198] sm:$0xff]
      %v401 = vld [vmem:[%s332 + $0x1a0] sm:$0xf]
      %v402 = vld [vmem:[%s332 + $0x1a4] sm:$0xff]
      %v403 = vld [vmem:[%s332 + $0x1ac] sm:$0xff]
      %v404 = vld [vmem:[%s332 + $0x1b4] sm:$0xff]
      %v405 = vld [vmem:[%s332 + $0x1bc] sm:$0xf]
      %v406 = vld [vmem:[%s332 + $0x1c0] sm:$0xff]
      %v407 = vld [vmem:[%s332 + $0x1c8] sm:$0xff]
      %v408 = vld [vmem:[%s332 + $0x1d0] sm:$0xff]
      %v409 = vld [vmem:[%s332 + $0x1d8] sm:$0xf]
      %v410 = vld [vmem:[%s332 + $0x1dc] sm:$0xff]
      %v411 = vld [vmem:[%s332 + $0x1e4] sm:$0xff]
      %v412 = vld [vmem:[%s332 + $0x1ec] sm:$0xff]
      %v413 = vld [vmem:[%s332 + $0x1f4] sm:$0xf]
      %v414 = vld [vmem:[%s332 + $0x1f8] sm:$0xff]
      %v415 = vld [vmem:[%s332 + $0x200] sm:$0xff]
      %v416 = vld [vmem:[%s332 + $0x208] sm:$0xff]
      %v417 = vld [vmem:[%s332 + $0x210] sm:$0xf]
      %v418 = vld [vmem:[%s332 + $0x214] sm:$0xff]
      %v419 = vld [vmem:[%s332 + $0x21c] sm:$0xff]
      %v420 = vld [vmem:[%s332 + $0x224] sm:$0xff]
      %v421 = vld [vmem:[%s332 + $0x22c] sm:$0xf]
      %v422 = vld [vmem:[%s332 + $0x230] sm:$0xff]
      %v423 = vld [vmem:[%s332 + $0x238] sm:$0xff]
      %v424 = vld [vmem:[%s332 + $0x240] sm:$0xff]
      %v425 = vld [vmem:[%s332 + $0x248] sm:$0xf]
      %v426 = vld [vmem:[%s332 + $0x24c] sm:$0xff]
      %v427 = vld [vmem:[%s332 + $0x254] sm:$0xff]
      %v428 = vld [vmem:[%s332 + $0x25c] sm:$0xff]
      %v429 = vld [vmem:[%s332 + $0x264] sm:$0xf]
      %v430 = vld [vmem:[%s332 + $0x268] sm:$0xff]
      %v431 = vld [vmem:[%s332 + $0x270] sm:$0xff]
      %v432 = vld [vmem:[%s332 + $0x278] sm:$0xff]
      %v433 = vld [vmem:[%s332 + $0x280] sm:$0xf]
      %v434 = vld [vmem:[%s332 + $0x284] sm:$0xff]
      %v435 = vld [vmem:[%s332 + $0x28c] sm:$0xff]
      %v436 = vld [vmem:[%s332 + $0x294] sm:$0xff]
      %v437 = vld [vmem:[%s332 + $0x29c] sm:$0xf]
      %v438 = vld [vmem:[%s332 + $0x2a0] sm:$0xff]
      %v439 = vld [vmem:[%s332 + $0x2a8] sm:$0xff]
      %v440 = vld [vmem:[%s332 + $0x2b0] sm:$0xff]
      %v441 = vld [vmem:[%s332 + $0x2b8] sm:$0xf]
      %v442 = vld [vmem:[%s332 + $0x2bc] sm:$0xff]
      %v443 = vld [vmem:[%s332 + $0x2c4] sm:$0xff]
      %v444 = vld [vmem:[%s332 + $0x2cc] sm:$0xff]
      %v445 = vld [vmem:[%s332 + $0x2d4] sm:$0xf]
      %v446 = vld [vmem:[%s332 + $0x2d8] sm:$0xff]
      %v447 = vld [vmem:[%s332 + $0x2e0] sm:$0xff]
      %v448 = vld [vmem:[%s332 + $0x2e8] sm:$0xff]
      %v449 = vld [vmem:[%s332 + $0x2f0] sm:$0xf]
      %v450 = vld [vmem:[%s332 + $0x2f4] sm:$0xff]
      %v451 = vld [vmem:[%s332 + $0x2fc] sm:$0xff]
      %v452 = vld [vmem:[%s332 + $0x304] sm:$0xff]
      %v453 = vld [vmem:[%s332 + $0x30c] sm:$0xf]
      %v454 = vld [vmem:[%s332 + $0x310] sm:$0xff]
      %v455 = vld [vmem:[%s332 + $0x318] sm:$0xff]
      %v456 = vld [vmem:[%s332 + $0x320] sm:$0xff]
      %v457 = vld [vmem:[%s332 + $0x328] sm:$0xf]
      %v458 = vld [vmem:[%s332 + $0x32c] sm:$0xff]
      %v459 = vld [vmem:[%s332 + $0x334] sm:$0xff]
      %v460 = vld [vmem:[%s332 + $0x33c] sm:$0xff]
      %v461 = vld [vmem:[%s332 + $0x344] sm:$0xf]
      %v462 = vld [vmem:[%s332 + $0x348] sm:$0xff]
      %v463 = vld [vmem:[%s332 + $0x350] sm:$0xff]
      %v464 = vld [vmem:[%s332 + $0x358] sm:$0xff]
      %v465 = vld [vmem:[%s332 + $0x360] sm:$0xf]
      %v466 = vld [vmem:[%s332 + $0x364] sm:$0xff]
      %v467 = vld [vmem:[%s332 + $0x36c] sm:$0xff]
      %v468 = vld [vmem:[%s332 + $0x374] sm:$0xff]
      %v469 = vld [vmem:[%s332 + $0x37c] sm:$0xf]
      %v470 = vld [vmem:[%s1] sm:$0xf]
      %v471 = vld [vmem:[%s1 + $0x4] sm:$0xf]
      %v472 = vld [vmem:[%s1 + $0x8] sm:$0xf]
      %v473 = vld [vmem:[%s1 + $0xc] sm:$0xf]
      %v474 = vld [vmem:[%s1 + $0x10] sm:$0xf]
      %v475 = vld [vmem:[%s1 + $0x14] sm:$0xf]
      %v476 = vld [vmem:[%s1 + $0x18] sm:$0xf]
      %v477 = vld [vmem:[%s1 + $0x1c] sm:$0xf]
      %v478 = vld [vmem:[%s1 + $0x20] sm:$0xf]
      %v479 = vld [vmem:[%s1 + $0x24] sm:$0xf]
      %v480 = vld [vmem:[%s1 + $0x28] sm:$0xf]
      %v481 = vld [vmem:[%s1 + $0x2c] sm:$0xf]
      %v482 = vld [vmem:[%s1 + $0x30] sm:$0xf]
      %v483 = vld [vmem:[%s1 + $0x34] sm:$0xf]
      %v484 = vld [vmem:[%s1 + $0x38] sm:$0xf]
      %v485 = vld [vmem:[%s1 + $0x3c] sm:$0xf]
      %v486 = vld [vmem:[%s1 + $0x40] sm:$0xf]
      %v487 = vld [vmem:[%s1 + $0x44] sm:$0xf]
      %v488 = vld [vmem:[%s1 + $0x48] sm:$0xf]
      %v489 = vld [vmem:[%s1 + $0x4c] sm:$0xf]
      %v490 = vld [vmem:[%s1 + $0x50] sm:$0xf]
      %v491 = vld [vmem:[%s1 + $0x54] sm:$0xf]
      %v492 = vld [vmem:[%s1 + $0x58] sm:$0xf]
      %v493 = vld [vmem:[%s1 + $0x5c] sm:$0xf]
      %v494 = vld [vmem:[%s1 + $0x60] sm:$0xf]
      %v495 = vld [vmem:[%s1 + $0x64] sm:$0xf]
      %v496 = vld [vmem:[%s1 + $0x68] sm:$0xf]
      %v497 = vld [vmem:[%s1 + $0x6c] sm:$0xf]
      %v498 = vld [vmem:[%s1 + $0x70] sm:$0xf]
      %v499 = vld [vmem:[%s1 + $0x74] sm:$0xf]
      %v500 = vld [vmem:[%s1 + $0x78] sm:$0xf]
      %v501 = vld [vmem:[%s1 + $0x7c] sm:$0xf]
      %v502 = vld [vmem:[%s1 + $0x80] sm:$0xf]
      %v503 = vld [vmem:[%s1 + $0x84] sm:$0xf]
      %v504 = vld [vmem:[%s1 + $0x88] sm:$0xf]
      %v505 = vld [vmem:[%s1 + $0x8c] sm:$0xf]
      %v506 = vld [vmem:[%s1 + $0x90] sm:$0xf]
      %v507 = vld [vmem:[%s1 + $0x94] sm:$0xf]
      %v508 = vld [vmem:[%s1 + $0x98] sm:$0xf]
      %v509 = vld [vmem:[%s1 + $0x9c] sm:$0xf]
      %v510 = vld [vmem:[%s1 + $0xa0] sm:$0xf]
      %v511 = vld [vmem:[%s1 + $0xa4] sm:$0xf]
      %v512 = vld [vmem:[%s1 + $0xa8] sm:$0xf]
      %v513 = vld [vmem:[%s1 + $0xac] sm:$0xf]
      %v514 = vld [vmem:[%s1 + $0xb0] sm:$0xf]
      %v515 = vld [vmem:[%s1 + $0xb4] sm:$0xf]
      %v516 = vld [vmem:[%s1 + $0xb8] sm:$0xf]
      %v517 = vld [vmem:[%s1 + $0xbc] sm:$0xf]
      %v518 = vld [vmem:[%s1 + $0xc0] sm:$0xf]
      %v519 = vld [vmem:[%s1 + $0xc4] sm:$0xf]
      %v520 = vld [vmem:[%s1 + $0xc8] sm:$0xf]
      %v521 = vld [vmem:[%s1 + $0xcc] sm:$0xf]
      %v522 = vld [vmem:[%s1 + $0xd0] sm:$0xf]
      %v523 = vld [vmem:[%s1 + $0xd4] sm:$0xf]
      %v524 = vld [vmem:[%s1 + $0xd8] sm:$0xf]
      %v525 = vld [vmem:[%s1 + $0xdc] sm:$0xf]
      %v526 = vld [vmem:[%s1 + $0xe0] sm:$0xf]
      %v527 = vld [vmem:[%s1 + $0xe4] sm:$0xf]
      %v528 = vld [vmem:[%s1 + $0xe8] sm:$0xf]
      %v529 = vld [vmem:[%s1 + $0xec] sm:$0xf]
      %v530 = vld [vmem:[%s1 + $0xf0] sm:$0xf]
      %v531 = vld [vmem:[%s1 + $0xf4] sm:$0xf]
      %v532 = vld [vmem:[%s1 + $0xf8] sm:$0xf]
      %v533 = vld [vmem:[%s1 + $0xfc] sm:$0xf]
      %v534 = vld [vmem:[%s1 + $0x100] sm:$0xf]
      %v535 = vld [vmem:[%s1 + $0x104] sm:$0xf]
      %v536 = vld [vmem:[%s1 + $0x108] sm:$0xf]
      %v537 = vld [vmem:[%s1 + $0x10c] sm:$0xf]
      %v538 = vld [vmem:[%s1 + $0x110] sm:$0xf]
      %v539 = vld [vmem:[%s1 + $0x114] sm:$0xf]
      %v540 = vld [vmem:[%s1 + $0x118] sm:$0xf]
      %v541 = vld [vmem:[%s1 + $0x11c] sm:$0xf]
      %v542 = vld [vmem:[%s1 + $0x120] sm:$0xf]
      %v543 = vld [vmem:[%s1 + $0x124] sm:$0xf]
      %v544 = vld [vmem:[%s1 + $0x128] sm:$0xf]
      %v545 = vld [vmem:[%s1 + $0x12c] sm:$0xf]
      %v546 = vld [vmem:[%s1 + $0x130] sm:$0xf]
      %v547 = vld [vmem:[%s1 + $0x134] sm:$0xf]
      %v548 = vld [vmem:[%s1 + $0x138] sm:$0xf]
      %v549 = vld [vmem:[%s1 + $0x13c] sm:$0xf]
      %v550 = vld [vmem:[%s1 + $0x140] sm:$0xf]
      %v551 = vld [vmem:[%s1 + $0x144] sm:$0xf]
      %v552 = vld [vmem:[%s1 + $0x148] sm:$0xf]
      %v553 = vld [vmem:[%s1 + $0x14c] sm:$0xf]
      %v554 = vld [vmem:[%s1 + $0x150] sm:$0xf]
      %v555 = vld [vmem:[%s1 + $0x154] sm:$0xf]
      %v556 = vld [vmem:[%s1 + $0x158] sm:$0xf]
      %v557 = vld [vmem:[%s1 + $0x15c] sm:$0xf]
      %v558 = vld [vmem:[%s1 + $0x160] sm:$0xf]
      %v559 = vld [vmem:[%s1 + $0x164] sm:$0xf]
      %v560 = vld [vmem:[%s1 + $0x168] sm:$0xf]
      %v561 = vld [vmem:[%s1 + $0x16c] sm:$0xf]
      %v562 = vld [vmem:[%s1 + $0x170] sm:$0xf]
      %v563 = vld [vmem:[%s1 + $0x174] sm:$0xf]
      %v564 = vld [vmem:[%s1 + $0x178] sm:$0xf]
      %v565 = vld [vmem:[%s1 + $0x17c] sm:$0xf]
      %v566 = vld [vmem:[%s1 + $0x180] sm:$0xf]
      %v567 = vld [vmem:[%s1 + $0x184] sm:$0xf]
      %v568 = vld [vmem:[%s2] sm:$0x1]
      %v570 = vlaneseq
      %v571 = vshrl.u32 %v570, 7
      %v572 = vsub.s32 0, %v571
      %v573 = vrot.slane %v568, %v572
      %v703 = vunpack.c.l.b16 %v342
      %v704 = vunpack.c.h.b16 %v342
      %v705 = vunpack.c.l.b16 %v343
      %v706 = vunpack.c.h.b16 %v343
      %v707 = vunpack.c.l.b16 %v344
      %v708 = vunpack.c.h.b16 %v344
      %v709 = vunpack.c.l.b16 %v345
      %v710 = vunpack.c.l.b16 %v346
      %v711 = vunpack.c.h.b16 %v346
      %v712 = vunpack.c.l.b16 %v347
      %v713 = vunpack.c.h.b16 %v347
      %v714 = vunpack.c.l.b16 %v348
      %v715 = vunpack.c.h.b16 %v348
      %v716 = vunpack.c.l.b16 %v349
      %v717 = vunpack.c.l.b16 %v350
      %v718 = vunpack.c.h.b16 %v350
      %v719 = vunpack.c.l.b16 %v351
      %v720 = vunpack.c.h.b16 %v351
      %v721 = vunpack.c.l.b16 %v352
      %v722 = vunpack.c.h.b16 %v352
      %v723 = vunpack.c.l.b16 %v353
      %v724 = vunpack.c.l.b16 %v354
      %v725 = vunpack.c.h.b16 %v354
      %v726 = vunpack.c.l.b16 %v355
      %v727 = vunpack.c.h.b16 %v355
      %v728 = vunpack.c.l.b16 %v356
      %v729 = vunpack.c.h.b16 %v356
      %v730 = vunpack.c.l.b16 %v357
      %v731 = vunpack.c.l.b16 %v358
      %v732 = vunpack.c.h.b16 %v358
      %v733 = vunpack.c.l.b16 %v359
      %v734 = vunpack.c.h.b16 %v359
      %v735 = vunpack.c.l.b16 %v360
      %v736 = vunpack.c.h.b16 %v360
      %v737 = vunpack.c.l.b16 %v361
      %v738 = vunpack.c.l.b16 %v362
      %v739 = vunpack.c.h.b16 %v362
      %v740 = vunpack.c.l.b16 %v363
      %v741 = vunpack.c.h.b16 %v363
      %v742 = vunpack.c.l.b16 %v364
      %v743 = vunpack.c.h.b16 %v364
      %v744 = vunpack.c.l.b16 %v365
      %v745 = vunpack.c.l.b16 %v366
      %v746 = vunpack.c.h.b16 %v366
      %v747 = vunpack.c.l.b16 %v367
      %v748 = vunpack.c.h.b16 %v367
      %v749 = vunpack.c.l.b16 %v368
      %v750 = vunpack.c.h.b16 %v368
      %v751 = vunpack.c.l.b16 %v369
      %v752 = vunpack.c.l.b16 %v370
      %v753 = vunpack.c.h.b16 %v370
      %v754 = vunpack.c.l.b16 %v371
      %v755 = vunpack.c.h.b16 %v371
      %v756 = vunpack.c.l.b16 %v372
      %v757 = vunpack.c.h.b16 %v372
      %v758 = vunpack.c.l.b16 %v373
      %v759 = vunpack.c.l.b16 %v374
      %v760 = vunpack.c.h.b16 %v374
      %v761 = vunpack.c.l.b16 %v375
      %v762 = vunpack.c.h.b16 %v375
      %v763 = vunpack.c.l.b16 %v376
      %v764 = vunpack.c.h.b16 %v376
      %v765 = vunpack.c.l.b16 %v377
      %v766 = vunpack.c.l.b16 %v378
      %v767 = vunpack.c.h.b16 %v378
      %v768 = vunpack.c.l.b16 %v379
      %v769 = vunpack.c.h.b16 %v379
      %v770 = vunpack.c.l.b16 %v380
      %v771 = vunpack.c.h.b16 %v380
      %v772 = vunpack.c.l.b16 %v381
      %v773 = vunpack.c.l.b16 %v382
      %v774 = vunpack.c.h.b16 %v382
      %v775 = vunpack.c.l.b16 %v383
      %v776 = vunpack.c.h.b16 %v383
      %v777 = vunpack.c.l.b16 %v384
      %v778 = vunpack.c.h.b16 %v384
      %v779 = vunpack.c.l.b16 %v385
      %v780 = vunpack.c.l.b16 %v386
      %v781 = vunpack.c.h.b16 %v386
      %v782 = vunpack.c.l.b16 %v387
      %v783 = vunpack.c.h.b16 %v387
      %v784 = vunpack.c.l.b16 %v388
      %v785 = vunpack.c.h.b16 %v388
      %v786 = vunpack.c.l.b16 %v389
      %v787 = vunpack.c.l.b16 %v390
      %v788 = vunpack.c.h.b16 %v390
      %v789 = vunpack.c.l.b16 %v391
      %v790 = vunpack.c.h.b16 %v391
      %v791 = vunpack.c.l.b16 %v392
      %v792 = vunpack.c.h.b16 %v392
      %v793 = vunpack.c.l.b16 %v393
      %v794 = vunpack.c.l.b16 %v394
      %v795 = vunpack.c.h.b16 %v394
      %v796 = vunpack.c.l.b16 %v395
      %v797 = vunpack.c.h.b16 %v395
      %v798 = vunpack.c.l.b16 %v396
      %v799 = vunpack.c.h.b16 %v396
      %v800 = vunpack.c.l.b16 %v397
      %v801 = vunpack.c.l.b16 %v398
      %v802 = vunpack.c.h.b16 %v398
      %v803 = vunpack.c.l.b16 %v399
      %v804 = vunpack.c.h.b16 %v399
      %v805 = vunpack.c.l.b16 %v400
      %v806 = vunpack.c.h.b16 %v400
      %v807 = vunpack.c.l.b16 %v401
      %v808 = vunpack.c.l.b16 %v402
      %v809 = vunpack.c.h.b16 %v402
      %v810 = vunpack.c.l.b16 %v403
      %v811 = vunpack.c.h.b16 %v403
      %v812 = vunpack.c.l.b16 %v404
      %v813 = vunpack.c.h.b16 %v404
      %v814 = vunpack.c.l.b16 %v405
      %v815 = vunpack.c.l.b16 %v406
      %v816 = vunpack.c.h.b16 %v406
      %v817 = vunpack.c.l.b16 %v407
      %v818 = vunpack.c.h.b16 %v407
      %v819 = vunpack.c.l.b16 %v408
      %v820 = vunpack.c.h.b16 %v408
      %v821 = vunpack.c.l.b16 %v409
      %v822 = vunpack.c.l.b16 %v410
      %v823 = vunpack.c.h.b16 %v410
      %v824 = vunpack.c.l.b16 %v411
      %v825 = vunpack.c.h.b16 %v411
      %v826 = vunpack.c.l.b16 %v412
      %v827 = vunpack.c.h.b16 %v412
      %v828 = vunpack.c.l.b16 %v413
      %v829 = vunpack.c.l.b16 %v414
      %v830 = vunpack.c.h.b16 %v414
      %v831 = vunpack.c.l.b16 %v415
      %v832 = vunpack.c.h.b16 %v415
      %v833 = vunpack.c.l.b16 %v416
      %v834 = vunpack.c.h.b16 %v416
      %v835 = vunpack.c.l.b16 %v417
      %v836 = vunpack.c.l.b16 %v418
      %v837 = vunpack.c.h.b16 %v418
      %v838 = vunpack.c.l.b16 %v419
      %v839 = vunpack.c.h.b16 %v419
      %v840 = vunpack.c.l.b16 %v420
      %v841 = vunpack.c.h.b16 %v420
      %v842 = vunpack.c.l.b16 %v421
      %v843 = vunpack.c.l.b16 %v422
      %v844 = vunpack.c.h.b16 %v422
      %v845 = vunpack.c.l.b16 %v423
      %v846 = vunpack.c.h.b16 %v423
      %v847 = vunpack.c.l.b16 %v424
      %v848 = vunpack.c.h.b16 %v424
      %v849 = vunpack.c.l.b16 %v425
      %v850 = vunpack.c.l.b16 %v426
      %v851 = vunpack.c.h.b16 %v426
      %v852 = vunpack.c.l.b16 %v427
      %v853 = vunpack.c.h.b16 %v427
      %v854 = vunpack.c.l.b16 %v428
      %v855 = vunpack.c.h.b16 %v428
      %v856 = vunpack.c.l.b16 %v429
      %v857 = vunpack.c.l.b16 %v430
      %v858 = vunpack.c.h.b16 %v430
      %v859 = vunpack.c.l.b16 %v431
      %v860 = vunpack.c.h.b16 %v431
      %v861 = vunpack.c.l.b16 %v432
      %v862 = vunpack.c.h.b16 %v432
      %v863 = vunpack.c.l.b16 %v433
      %v864 = vunpack.c.l.b16 %v434
      %v865 = vunpack.c.h.b16 %v434
      %v866 = vunpack.c.l.b16 %v435
      %v867 = vunpack.c.h.b16 %v435
      %v868 = vunpack.c.l.b16 %v436
      %v869 = vunpack.c.h.b16 %v436
      %v870 = vunpack.c.l.b16 %v437
      %v871 = vunpack.c.l.b16 %v438
      %v872 = vunpack.c.h.b16 %v438
      %v873 = vunpack.c.l.b16 %v439
      %v874 = vunpack.c.h.b16 %v439
      %v875 = vunpack.c.l.b16 %v440
      %v876 = vunpack.c.h.b16 %v440
      %v877 = vunpack.c.l.b16 %v441
      %v878 = vunpack.c.l.b16 %v442
      %v879 = vunpack.c.h.b16 %v442
      %v880 = vunpack.c.l.b16 %v443
      %v881 = vunpack.c.h.b16 %v443
      %v882 = vunpack.c.l.b16 %v444
      %v883 = vunpack.c.h.b16 %v444
      %v884 = vunpack.c.l.b16 %v445
      %v885 = vunpack.c.l.b16 %v446
      %v886 = vunpack.c.h.b16 %v446
      %v887 = vunpack.c.l.b16 %v447
      %v888 = vunpack.c.h.b16 %v447
      %v889 = vunpack.c.l.b16 %v448
      %v890 = vunpack.c.h.b16 %v448
      %v891 = vunpack.c.l.b16 %v449
      %v892 = vunpack.c.l.b16 %v450
      %v893 = vunpack.c.h.b16 %v450
      %v894 = vunpack.c.l.b16 %v451
      %v895 = vunpack.c.h.b16 %v451
      %v896 = vunpack.c.l.b16 %v452
      %v897 = vunpack.c.h.b16 %v452
      %v898 = vunpack.c.l.b16 %v453
      %v899 = vunpack.c.l.b16 %v454
      %v900 = vunpack.c.h.b16 %v454
      %v901 = vunpack.c.l.b16 %v455
      %v902 = vunpack.c.h.b16 %v455
      %v903 = vunpack.c.l.b16 %v456
      %v904 = vunpack.c.h.b16 %v456
      %v905 = vunpack.c.l.b16 %v457
      %v906 = vunpack.c.l.b16 %v458
      %v907 = vunpack.c.h.b16 %v458
      %v908 = vunpack.c.l.b16 %v459
      %v909 = vunpack.c.h.b16 %v459
      %v910 = vunpack.c.l.b16 %v460
      %v911 = vunpack.c.h.b16 %v460
      %v912 = vunpack.c.l.b16 %v461
      %v913 = vunpack.c.l.b16 %v462
      %v914 = vunpack.c.h.b16 %v462
      %v915 = vunpack.c.l.b16 %v463
      %v916 = vunpack.c.h.b16 %v463
      %v917 = vunpack.c.l.b16 %v464
      %v918 = vunpack.c.h.b16 %v464
      %v919 = vunpack.c.l.b16 %v465
      %v920 = vunpack.c.l.b16 %v466
      %v921 = vunpack.c.h.b16 %v466
      %v922 = vunpack.c.l.b16 %v467
      %v923 = vunpack.c.h.b16 %v467
      %v924 = vunpack.c.l.b16 %v468
      %v925 = vunpack.c.h.b16 %v468
      %v926 = vunpack.c.l.b16 %v469
      %v927 = vpack.c.b16 %v710, %v703
      %v928 = vpack.c.b16 %v711, %v704
      %v929 = vpack.c.b16 %v712, %v705
      %v930 = vpack.c.b16 %v713, %v706
      %v931 = vpack.c.b16 %v714, %v707
      %v932 = vpack.c.b16 %v715, %v708
      %v933 = vpack.c.b16 %v716, %v709
      %v934 = vpack.c.b16 %v724, %v717
      %v935 = vpack.c.b16 %v725, %v718
      %v936 = vpack.c.b16 %v726, %v719
      %v937 = vpack.c.b16 %v727, %v720
      %v938 = vpack.c.b16 %v728, %v721
      %v939 = vpack.c.b16 %v729, %v722
      %v940 = vpack.c.b16 %v730, %v723
      %v941 = vpack.c.b16 %v738, %v731
      %v942 = vpack.c.b16 %v739, %v732
      %v943 = vpack.c.b16 %v740, %v733
      %v944 = vpack.c.b16 %v741, %v734
      %v945 = vpack.c.b16 %v742, %v735
      %v946 = vpack.c.b16 %v743, %v736
      %v947 = vpack.c.b16 %v744, %v737
      %v948 = vpack.c.b16 %v752, %v745
      %v949 = vpack.c.b16 %v753, %v746
      %v950 = vpack.c.b16 %v754, %v747
      %v951 = vpack.c.b16 %v755, %v748
      %v952 = vpack.c.b16 %v756, %v749
      %v953 = vpack.c.b16 %v757, %v750
      %v954 = vpack.c.b16 %v758, %v751
      %v955 = vpack.c.b16 %v766, %v759
      %v956 = vpack.c.b16 %v767, %v760
      %v957 = vpack.c.b16 %v768, %v761
      %v958 = vpack.c.b16 %v769, %v762
      %v959 = vpack.c.b16 %v770, %v763
      %v960 = vpack.c.b16 %v771, %v764
      %v961 = vpack.c.b16 %v772, %v765
      %v962 = vpack.c.b16 %v780, %v773
      %v963 = vpack.c.b16 %v781, %v774
      %v964 = vpack.c.b16 %v782, %v775
      %v965 = vpack.c.b16 %v783, %v776
      %v966 = vpack.c.b16 %v784, %v777
      %v967 = vpack.c.b16 %v785, %v778
      %v968 = vpack.c.b16 %v786, %v779
      %v969 = vpack.c.b16 %v794, %v787
      %v970 = vpack.c.b16 %v795, %v788
      %v971 = vpack.c.b16 %v796, %v789
      %v972 = vpack.c.b16 %v797, %v790
      %v973 = vpack.c.b16 %v798, %v791
      %v974 = vpack.c.b16 %v799, %v792
      %v975 = vpack.c.b16 %v800, %v793
      %v976 = vpack.c.b16 %v808, %v801
      %v977 = vpack.c.b16 %v809, %v802
      %v978 = vpack.c.b16 %v810, %v803
      %v979 = vpack.c.b16 %v811, %v804
      %v980 = vpack.c.b16 %v812, %v805
      %v981 = vpack.c.b16 %v813, %v806
      %v982 = vpack.c.b16 %v814, %v807
      %v983 = vpack.c.b16 %v822, %v815
      %v984 = vpack.c.b16 %v823, %v816
      %v985 = vpack.c.b16 %v824, %v817
      %v986 = vpack.c.b16 %v825, %v818
      %v987 = vpack.c.b16 %v826, %v819
      %v988 = vpack.c.b16 %v827, %v820
      %v989 = vpack.c.b16 %v828, %v821
      %v990 = vpack.c.b16 %v836, %v829
      %v991 = vpack.c.b16 %v837, %v830
      %v992 = vpack.c.b16 %v838, %v831
      %v993 = vpack.c.b16 %v839, %v832
      %v994 = vpack.c.b16 %v840, %v833
      %v995 = vpack.c.b16 %v841, %v834
      %v996 = vpack.c.b16 %v842, %v835
      %v997 = vpack.c.b16 %v850, %v843
      %v998 = vpack.c.b16 %v851, %v844
      %v999 = vpack.c.b16 %v852, %v845
      %v1000 = vpack.c.b16 %v853, %v846
      %v1001 = vpack.c.b16 %v854, %v847
      %v1002 = vpack.c.b16 %v855, %v848
      %v1003 = vpack.c.b16 %v856, %v849
      %v1004 = vpack.c.b16 %v864, %v857
      %v1005 = vpack.c.b16 %v865, %v858
      %v1006 = vpack.c.b16 %v866, %v859
      %v1007 = vpack.c.b16 %v867, %v860
      %v1008 = vpack.c.b16 %v868, %v861
      %v1009 = vpack.c.b16 %v869, %v862
      %v1010 = vpack.c.b16 %v870, %v863
      %v1011 = vpack.c.b16 %v878, %v871
      %v1012 = vpack.c.b16 %v879, %v872
      %v1013 = vpack.c.b16 %v880, %v873
      %v1014 = vpack.c.b16 %v881, %v874
      %v1015 = vpack.c.b16 %v882, %v875
      %v1016 = vpack.c.b16 %v883, %v876
      %v1017 = vpack.c.b16 %v884, %v877
      %v1018 = vpack.c.b16 %v892, %v885
      %v1019 = vpack.c.b16 %v893, %v886
      %v1020 = vpack.c.b16 %v894, %v887
      %v1021 = vpack.c.b16 %v895, %v888
      %v1022 = vpack.c.b16 %v896, %v889
      %v1023 = vpack.c.b16 %v897, %v890
      %v1024 = vpack.c.b16 %v898, %v891
      %v1025 = vpack.c.b16 %v906, %v899
      %v1026 = vpack.c.b16 %v907, %v900
      %v1027 = vpack.c.b16 %v908, %v901
      %v1028 = vpack.c.b16 %v909, %v902
      %v1029 = vpack.c.b16 %v910, %v903
      %v1030 = vpack.c.b16 %v911, %v904
      %v1031 = vpack.c.b16 %v912, %v905
      %v1032 = vpack.c.b16 %v920, %v913
      %v1033 = vpack.c.b16 %v921, %v914
      %v1034 = vpack.c.b16 %v922, %v915
      %v1035 = vpack.c.b16 %v923, %v916
      %v1036 = vpack.c.b16 %v924, %v917
      %v1037 = vpack.c.b16 %v925, %v918
      %v1038 = vpack.c.b16 %v926, %v919
      %v1233 = vunpack.c.l.b16 %v470
      %v1234 = vunpack.c.l.b16 %v471
      %v1235 = vunpack.c.l.b16 %v472
      %v1236 = vunpack.c.l.b16 %v473
      %v1237 = vunpack.c.l.b16 %v474
      %v1238 = vunpack.c.l.b16 %v475
      %v1239 = vunpack.c.l.b16 %v476
      %v1240 = vunpack.c.l.b16 %v477
      %v1241 = vunpack.c.l.b16 %v478
      %v1242 = vunpack.c.l.b16 %v479
      %v1243 = vunpack.c.l.b16 %v480
      %v1244 = vunpack.c.l.b16 %v481
      %v1245 = vunpack.c.l.b16 %v482
      %v1246 = vunpack.c.l.b16 %v483
      %v1247 = vunpack.c.l.b16 %v484
      %v1248 = vunpack.c.l.b16 %v485
      %v1249 = vunpack.c.l.b16 %v486
      %v1250 = vunpack.c.l.b16 %v487
      %v1251 = vunpack.c.l.b16 %v488
      %v1252 = vunpack.c.l.b16 %v489
      %v1253 = vunpack.c.l.b16 %v490
      %v1254 = vunpack.c.l.b16 %v491
      %v1255 = vunpack.c.l.b16 %v492
      %v1256 = vunpack.c.l.b16 %v493
      %v1257 = vunpack.c.l.b16 %v494
      %v1258 = vunpack.c.l.b16 %v495
      %v1259 = vunpack.c.l.b16 %v496
      %v1260 = vunpack.c.l.b16 %v497
      %v1261 = vunpack.c.l.b16 %v498
      %v1262 = vunpack.c.l.b16 %v499
      %v1263 = vunpack.c.l.b16 %v500
      %v1264 = vunpack.c.l.b16 %v501
      %v1265 = vunpack.c.l.b16 %v502
      %v1266 = vunpack.c.l.b16 %v503
      %v1267 = vunpack.c.l.b16 %v504
      %v1268 = vunpack.c.l.b16 %v505
      %v1269 = vunpack.c.l.b16 %v506
      %v1270 = vunpack.c.l.b16 %v507
      %v1271 = vunpack.c.l.b16 %v508
      %v1272 = vunpack.c.l.b16 %v509
      %v1273 = vunpack.c.l.b16 %v510
      %v1274 = vunpack.c.l.b16 %v511
      %v1275 = vunpack.c.l.b16 %v512
      %v1276 = vunpack.c.l.b16 %v513
      %v1277 = vunpack.c.l.b16 %v514
      %v1278 = vunpack.c.l.b16 %v515
      %v1279 = vunpack.c.l.b16 %v516
      %v1280 = vunpack.c.l.b16 %v517
      %v1281 = vunpack.c.l.b16 %v518
      %v1282 = vunpack.c.l.b16 %v519
      %v1283 = vunpack.c.l.b16 %v520
      %v1284 = vunpack.c.l.b16 %v521
      %v1285 = vunpack.c.l.b16 %v522
      %v1286 = vunpack.c.l.b16 %v523
      %v1287 = vunpack.c.l.b16 %v524
      %v1288 = vunpack.c.l.b16 %v525
      %v1289 = vunpack.c.l.b16 %v526
      %v1290 = vunpack.c.l.b16 %v527
      %v1291 = vunpack.c.l.b16 %v528
      %v1292 = vunpack.c.l.b16 %v529
      %v1293 = vunpack.c.l.b16 %v530
      %v1294 = vunpack.c.l.b16 %v531
      %v1295 = vunpack.c.l.b16 %v532
      %v1296 = vunpack.c.l.b16 %v533
      %v1297 = vunpack.c.l.b16 %v534
      %v1298 = vunpack.c.l.b16 %v535
      %v1299 = vunpack.c.l.b16 %v536
      %v1300 = vunpack.c.l.b16 %v537
      %v1301 = vunpack.c.l.b16 %v538
      %v1302 = vunpack.c.l.b16 %v539
      %v1303 = vunpack.c.l.b16 %v540
      %v1304 = vunpack.c.l.b16 %v541
      %v1305 = vunpack.c.l.b16 %v542
      %v1306 = vunpack.c.l.b16 %v543
      %v1307 = vunpack.c.l.b16 %v544
      %v1308 = vunpack.c.l.b16 %v545
      %v1309 = vunpack.c.l.b16 %v546
      %v1310 = vunpack.c.l.b16 %v547
      %v1311 = vunpack.c.l.b16 %v548
      %v1312 = vunpack.c.l.b16 %v549
      %v1313 = vunpack.c.l.b16 %v550
      %v1314 = vunpack.c.l.b16 %v551
      %v1315 = vunpack.c.l.b16 %v552
      %v1316 = vunpack.c.l.b16 %v553
      %v1317 = vunpack.c.l.b16 %v554
      %v1318 = vunpack.c.l.b16 %v555
      %v1319 = vunpack.c.l.b16 %v556
      %v1320 = vunpack.c.l.b16 %v557
      %v1321 = vunpack.c.l.b16 %v558
      %v1322 = vunpack.c.l.b16 %v559
      %v1323 = vunpack.c.l.b16 %v560
      %v1324 = vunpack.c.l.b16 %v561
      %v1325 = vunpack.c.l.b16 %v562
      %v1326 = vunpack.c.l.b16 %v563
      %v1327 = vunpack.c.l.b16 %v564
      %v1328 = vunpack.c.l.b16 %v565
      %v1329 = vunpack.c.l.b16 %v566
      %v1330 = vunpack.c.l.b16 %v567
      %v1331 = vpack.c.b16 %v1234, %v1233
      %v1332 = vpack.c.b16 %v1236, %v1235
      %v1333 = vpack.c.b16 %v1238, %v1237
      %v1334 = vpack.c.b16 %v1240, %v1239
      %v1335 = vpack.c.b16 %v1242, %v1241
      %v1336 = vpack.c.b16 %v1244, %v1243
      %v1337 = vpack.c.b16 %v1246, %v1245
      %v1338 = vpack.c.b16 %v1248, %v1247
      %v1339 = vpack.c.b16 %v1250, %v1249
      %v1340 = vpack.c.b16 %v1252, %v1251
      %v1341 = vpack.c.b16 %v1254, %v1253
      %v1342 = vpack.c.b16 %v1256, %v1255
      %v1343 = vpack.c.b16 %v1258, %v1257
      %v1344 = vpack.c.b16 %v1260, %v1259
      %v1345 = vpack.c.b16 %v1262, %v1261
      %v1346 = vpack.c.b16 %v1264, %v1263
      %v1347 = vpack.c.b16 %v1266, %v1265
      %v1348 = vpack.c.b16 %v1268, %v1267
      %v1349 = vpack.c.b16 %v1270, %v1269
      %v1350 = vpack.c.b16 %v1272, %v1271
      %v1351 = vpack.c.b16 %v1274, %v1273
      %v1352 = vpack.c.b16 %v1276, %v1275
      %v1353 = vpack.c.b16 %v1278, %v1277
      %v1354 = vpack.c.b16 %v1280, %v1279
      %v1355 = vpack.c.b16 %v1282, %v1281
      %v1356 = vpack.c.b16 %v1284, %v1283
      %v1357 = vpack.c.b16 %v1286, %v1285
      %v1358 = vpack.c.b16 %v1288, %v1287
      %v1359 = vpack.c.b16 %v1290, %v1289
      %v1360 = vpack.c.b16 %v1292, %v1291
      %v1361 = vpack.c.b16 %v1294, %v1293
      %v1362 = vpack.c.b16 %v1296, %v1295
      %v1363 = vpack.c.b16 %v1298, %v1297
      %v1364 = vpack.c.b16 %v1300, %v1299
      %v1365 = vpack.c.b16 %v1302, %v1301
      %v1366 = vpack.c.b16 %v1304, %v1303
      %v1367 = vpack.c.b16 %v1306, %v1305
      %v1368 = vpack.c.b16 %v1308, %v1307
      %v1369 = vpack.c.b16 %v1310, %v1309
      %v1370 = vpack.c.b16 %v1312, %v1311
      %v1371 = vpack.c.b16 %v1314, %v1313
      %v1372 = vpack.c.b16 %v1316, %v1315
      %v1373 = vpack.c.b16 %v1318, %v1317
      %v1374 = vpack.c.b16 %v1320, %v1319
      %v1375 = vpack.c.b16 %v1322, %v1321
      %v1376 = vpack.c.b16 %v1324, %v1323
      %v1377 = vpack.c.b16 %v1326, %v1325
      %v1378 = vpack.c.b16 %v1328, %v1327
      %v1379 = vpack.c.b16 %v1330, %v1329
      %vm1429 = vcmask 130048
      %v1431 = vsel %vm1429, %v933, 0
      %v1434 = vsel %vm1429, %v940, 0
      %v1437 = vsel %vm1429, %v947, 0
      %v1440 = vsel %vm1429, %v954, 0
      %v1443 = vsel %vm1429, %v961, 0
      %v1446 = vsel %vm1429, %v968, 0
      %v1449 = vsel %vm1429, %v975, 0
      %v1452 = vsel %vm1429, %v982, 0
      %v1455 = vsel %vm1429, %v989, 0
      %v1458 = vsel %vm1429, %v996, 0
      %v1461 = vsel %vm1429, %v1003, 0
      %v1464 = vsel %vm1429, %v1010, 0
      %v1467 = vsel %vm1429, %v1017, 0
      %v1470 = vsel %vm1429, %v1024, 0
      %v1473 = vsel %vm1429, %v1031, 0
      %v1476 = vsel %vm1429, %v1038, 0
      %1478 = vmatprep.subr.bf16.mxu0 0
      %1479 = vmatpush1.bf16.msra.mxu0 %v1331
      %1480 = vmatprep.subr.bf16.mxu0 0
      %1481 = vmatpush1.bf16.msra.mxu0 %v1332
      %1482 = vmatprep.subr.bf16.mxu0 0
      %1483 = vmatpush1.bf16.msra.mxu0 %v1333
      %1484 = vmatprep.subr.bf16.mxu0 0
      %1485 = vmatpush1.bf16.msra.mxu0 %v1334
      %1486 = vmatprep.subr.bf16.mxu0 0
      %1487 = vmatpush1.bf16.msra.mxu0 %v1335
      %1488 = vmatprep.subr.bf16.mxu0 0
      %1489 = vmatpush1.bf16.msra.mxu0 %v1336
      %1490 = vmatprep.subr.bf16.mxu0 0
      %1491 = vmatpush1.bf16.msra.mxu0 %v1337
      %1492 = vmatprep.subr.bf16.mxu0 0
      %1493 = vmatpush1.bf16.msra.mxu0 %v1338
      %1494 = vmatprep.subr.bf16.mxu0 0
      %1495 = vmatpush1.bf16.msra.mxu0 %v1339
      %1496 = vmatprep.subr.bf16.mxu0 0
      %1497 = vmatpush1.bf16.msra.mxu0 %v1340
      %1498 = vmatprep.subr.bf16.mxu0 0
      %1499 = vmatpush1.bf16.msra.mxu0 %v1341
      %1500 = vmatprep.subr.bf16.mxu0 0
      %1501 = vmatpush1.bf16.msra.mxu0 %v1342
      %1502 = vmatprep.subr.bf16.mxu0 0
      %1503 = vmatpush1.bf16.msra.mxu0 %v1343
      %1504 = vmatprep.subr.bf16.mxu0 0
      %1505 = vmatpush1.bf16.msra.mxu0 %v1344
      %1506 = vmatprep.subr.bf16.mxu0 0
      %1507 = vmatpush1.bf16.msra.mxu0 %v1345
      %1508 = vmatprep.subr.bf16.mxu0 0
      %1509 = vmatpush1.bf16.msra.mxu0 %v1346
      %1510 = vmatprep.mubr.bf16.mxu0 %v928
      %1511 = vmatmul.mubr.bf16.gmra.mrb[0].mxu0 %v927
      %v1512 = vpop.f32.mrb[0].mxu0
      %v1513 = vadd.f32 %v573, %v1512
      %v1514 = vpop.f32.mrb[0].mxu0
      %v1515 = vpop.f32.mrb[0].mxu0
      %v1516 = vadd.f32 %v573, %v1515
      %v1517 = vpop.f32.mrb[0].mxu0
      %1518 = vmatprep.mubr.bf16.mxu0 %v935
      %1519 = vmatmul.mubr.bf16.gmra.mrb[0].mxu0 %v934
      %v1520 = vpop.f32.mrb[0].mxu0
      %v1521 = vadd.f32 %v573, %v1520
      %v1522 = vpop.f32.mrb[0].mxu0
      %v1523 = vpop.f32.mrb[0].mxu0
      %v1524 = vadd.f32 %v573, %v1523
      %v1525 = vpop.f32.mrb[0].mxu0
      %1526 = vmatprep.mubr.bf16.mxu0 %v942
      %1527 = vmatmul.mubr.bf16.gmra.mrb[0].mxu0 %v941
      %v1528 = vpop.f32.mrb[0].mxu0
      %v1529 = vadd.f32 %v573, %v1528
      %v1530 = vpop.f32.mrb[0].mxu0
      %v1531 = vpop.f32.mrb[0].mxu0
      %v1532 = vadd.f32 %v573, %v1531
      %v1533 = vpop.f32.mrb[0].mxu0
      %1534 = vmatprep.mubr.bf16.mxu0 %v949
      %1535 = vmatmul.mubr.bf16.gmra.mrb[0].mxu0 %v948
      %v1536 = vpop.f32.mrb[0].mxu0
      %v1537 = vadd.f32 %v573, %v1536
      %v1538 = vpop.f32.mrb[0].mxu0
      %v1539 = vpop.f32.mrb[0].mxu0
      %v1540 = vadd.f32 %v573, %v1539
      %v1541 = vpop.f32.mrb[0].mxu0
      %1542 = vmatprep.mubr.bf16.mxu0 %v956
      %1543 = vmatmul.mubr.bf16.gmra.mrb[0].mxu0 %v955
      %v1544 = vpop.f32.mrb[0].mxu0
      %v1545 = vadd.f32 %v573, %v1544
      %v1546 = vpop.f32.mrb[0].mxu0
      %v1547 = vpop.f32.mrb[0].mxu0
      %v1548 = vadd.f32 %v573, %v1547
      %v1549 = vpop.f32.mrb[0].mxu0
      %1550 = vmatprep.mubr.bf16.mxu0 %v963
      %1551 = vmatmul.mubr.bf16.gmra.mrb[0].mxu0 %v962
      %v1552 = vpop.f32.mrb[0].mxu0
      %v1553 = vadd.f32 %v573, %v1552
      %v1554 = vpop.f32.mrb[0].mxu0
      %v1555 = vpop.f32.mrb[0].mxu0
      %v1556 = vadd.f32 %v573, %v1555
      %v1557 = vpop.f32.mrb[0].mxu0
      %1558 = vmatprep.mubr.bf16.mxu0 %v970
      %1559 = vmatmul.mubr.bf16.gmra.mrb[0].mxu0 %v969
      %v1560 = vpop.f32.mrb[0].mxu0
      %v1561 = vadd.f32 %v573, %v1560
      %v1562 = vpop.f32.mrb[0].mxu0
      %v1563 = vpop.f32.mrb[0].mxu0
      %v1564 = vadd.f32 %v573, %v1563
      %v1565 = vpop.f32.mrb[0].mxu0
      %1566 = vmatprep.mubr.bf16.mxu0 %v977
      %1567 = vmatmul.mubr.bf16.gmra.mrb[0].mxu0 %v976
      %v1568 = vpop.f32.mrb[0].mxu0
      %v1569 = vadd.f32 %v573, %v1568
      %v1570 = vpop.f32.mrb[0].mxu0
      %v1571 = vpop.f32.mrb[0].mxu0
      %v1572 = vadd.f32 %v573, %v1571
      %v1573 = vpop.f32.mrb[0].mxu0
      %1574 = vmatprep.mubr.bf16.mxu0 %v984
      %1575 = vmatmul.mubr.bf16.gmra.mrb[0].mxu0 %v983
      %v1576 = vpop.f32.mrb[0].mxu0
      %v1577 = vadd.f32 %v573, %v1576
      %v1578 = vpop.f32.mrb[0].mxu0
      %v1579 = vpop.f32.mrb[0].mxu0
      %v1580 = vadd.f32 %v573, %v1579
      %v1581 = vpop.f32.mrb[0].mxu0
      %1582 = vmatprep.mubr.bf16.mxu0 %v991
      %1583 = vmatmul.mubr.bf16.gmra.mrb[0].mxu0 %v990
      %v1584 = vpop.f32.mrb[0].mxu0
      %v1585 = vadd.f32 %v573, %v1584
      %v1586 = vpop.f32.mrb[0].mxu0
      %v1587 = vpop.f32.mrb[0].mxu0
      %v1588 = vadd.f32 %v573, %v1587
      %v1589 = vpop.f32.mrb[0].mxu0
      %1590 = vmatprep.mubr.bf16.mxu0 %v998
      %1591 = vmatmul.mubr.bf16.gmra.mrb[0].mxu0 %v997
      %v1592 = vpop.f32.mrb[0].mxu0
      %v1593 = vadd.f32 %v573, %v1592
      %v1594 = vpop.f32.mrb[0].mxu0
      %v1595 = vpop.f32.mrb[0].mxu0
      %v1596 = vadd.f32 %v573, %v1595
      %v1597 = vpop.f32.mrb[0].mxu0
      %1598 = vmatprep.mubr.bf16.mxu0 %v1005
      %1599 = vmatmul.mubr.bf16.gmra.mrb[0].mxu0 %v1004
      %v1600 = vpop.f32.mrb[0].mxu0
      %v1601 = vadd.f32 %v573, %v1600
      %v1602 = vpop.f32.mrb[0].mxu0
      %v1603 = vpop.f32.mrb[0].mxu0
      %v1604 = vadd.f32 %v573, %v1603
      %v1605 = vpop.f32.mrb[0].mxu0
      %1606 = vmatprep.mubr.bf16.mxu0 %v1012
      %1607 = vmatmul.mubr.bf16.gmra.mrb[0].mxu0 %v1011
      %v1608 = vpop.f32.mrb[0].mxu0
      %v1609 = vadd.f32 %v573, %v1608
      %v1610 = vpop.f32.mrb[0].mxu0
      %v1611 = vpop.f32.mrb[0].mxu0
      %v1612 = vadd.f32 %v573, %v1611
      %v1613 = vpop.f32.mrb[0].mxu0
      %1614 = vmatprep.mubr.bf16.mxu0 %v1019
      %1615 = vmatmul.mubr.bf16.gmra.mrb[0].mxu0 %v1018
      %v1616 = vpop.f32.mrb[0].mxu0
      %v1617 = vadd.f32 %v573, %v1616
      %v1618 = vpop.f32.mrb[0].mxu0
      %v1619 = vpop.f32.mrb[0].mxu0
      %v1620 = vadd.f32 %v573, %v1619
      %v1621 = vpop.f32.mrb[0].mxu0
      %1622 = vmatprep.mubr.bf16.mxu0 %v1026
      %1623 = vmatmul.mubr.bf16.gmra.mrb[0].mxu0 %v1025
      %v1624 = vpop.f32.mrb[0].mxu0
      %v1625 = vadd.f32 %v573, %v1624
      %v1626 = vpop.f32.mrb[0].mxu0
      %v1627 = vpop.f32.mrb[0].mxu0
      %v1628 = vadd.f32 %v573, %v1627
      %v1629 = vpop.f32.mrb[0].mxu0
      %1630 = vmatprep.mubr.bf16.mxu0 %v1033
      %1631 = vmatmul.mubr.bf16.gmra.mrb[0].mxu0 %v1032
      %v1632 = vpop.f32.mrb[0].mxu0
      %v1633 = vadd.f32 %v573, %v1632
      %v1634 = vpop.f32.mrb[0].mxu0
      %v1635 = vpop.f32.mrb[0].mxu0
      %v1636 = vadd.f32 %v573, %v1635
      %v1637 = vpop.f32.mrb[0].mxu0
      %1638 = vdwg.mxu0
      %1639 = vmatprep.subr.bf16.mxu0 0
      %1640 = vmatpush1.bf16.msra.mxu0 %v1347
      %1641 = vmatprep.subr.bf16.mxu0 0
      %1642 = vmatpush1.bf16.msra.mxu0 %v1348
      %1643 = vmatprep.subr.bf16.mxu0 0
      %1644 = vmatpush1.bf16.msra.mxu0 %v1349
      %1645 = vmatprep.subr.bf16.mxu0 0
      %1646 = vmatpush1.bf16.msra.mxu0 %v1350
      %1647 = vmatprep.subr.bf16.mxu0 0
      %1648 = vmatpush1.bf16.msra.mxu0 %v1351
      %1649 = vmatprep.subr.bf16.mxu0 0
      %1650 = vmatpush1.bf16.msra.mxu0 %v1352
      %1651 = vmatprep.subr.bf16.mxu0 0
      %1652 = vmatpush1.bf16.msra.mxu0 %v1353
      %1653 = vmatprep.subr.bf16.mxu0 0
      %1654 = vmatpush1.bf16.msra.mxu0 %v1354
      %1655 = vmatprep.subr.bf16.mxu0 0
      %1656 = vmatpush1.bf16.msra.mxu0 %v1355
      %1657 = vmatprep.subr.bf16.mxu0 0
      %1658 = vmatpush1.bf16.msra.mxu0 %v1356
      %1659 = vmatprep.subr.bf16.mxu0 0
      %1660 = vmatpush1.bf16.msra.mxu0 %v1357
      %1661 = vmatprep.subr.bf16.mxu0 0
      %1662 = vmatpush1.bf16.msra.mxu0 %v1358
      %1663 = vmatprep.subr.bf16.mxu0 0
      %1664 = vmatpush1.bf16.msra.mxu0 %v1359
      %1665 = vmatprep.subr.bf16.mxu0 0
      %1666 = vmatpush1.bf16.msra.mxu0 %v1360
      %1667 = vmatprep.subr.bf16.mxu0 0
      %1668 = vmatpush1.bf16.msra.mxu0 %v1361
      %1669 = vmatprep.subr.bf16.mxu0 0
      %1670 = vmatpush1.bf16.msra.mxu0 %v1362
      %1671 = vmatprep.mubr.bf16.mxu0 %v930
      %1672 = vmatmul.mubr.bf16.gmra.mrb[0].mxu0 %v929
      %v1673 = vpop.f32.mrb[0].mxu0
      %v1674 = vadd.f32 %v1513, %v1673
      %v1675 = vpop.f32.mrb[0].mxu0
      %v1676 = vpop.f32.mrb[0].mxu0
      %v1677 = vadd.f32 %v1516, %v1676
      %v1678 = vpop.f32.mrb[0].mxu0
      %1679 = vmatprep.mubr.bf16.mxu0 %v937
      %1680 = vmatmul.mubr.bf16.gmra.mrb[0].mxu0 %v936
      %v1681 = vpop.f32.mrb[0].mxu0
      %v1682 = vadd.f32 %v1521, %v1681
      %v1683 = vpop.f32.mrb[0].mxu0
      %v1684 = vpop.f32.mrb[0].mxu0
      %v1685 = vadd.f32 %v1524, %v1684
      %v1686 = vpop.f32.mrb[0].mxu0
      %1687 = vmatprep.mubr.bf16.mxu0 %v944
      %1688 = vmatmul.mubr.bf16.gmra.mrb[0].mxu0 %v943
      %v1689 = vpop.f32.mrb[0].mxu0
      %v1690 = vadd.f32 %v1529, %v1689
      %v1691 = vpop.f32.mrb[0].mxu0
      %v1692 = vpop.f32.mrb[0].mxu0
      %v1693 = vadd.f32 %v1532, %v1692
      %v1694 = vpop.f32.mrb[0].mxu0
      %1695 = vmatprep.mubr.bf16.mxu0 %v951
      %1696 = vmatmul.mubr.bf16.gmra.mrb[0].mxu0 %v950
      %v1697 = vpop.f32.mrb[0].mxu0
      %v1698 = vadd.f32 %v1537, %v1697
      %v1699 = vpop.f32.mrb[0].mxu0
      %v1700 = vpop.f32.mrb[0].mxu0
      %v1701 = vadd.f32 %v1540, %v1700
      %v1702 = vpop.f32.mrb[0].mxu0
      %1703 = vmatprep.mubr.bf16.mxu0 %v958
      %1704 = vmatmul.mubr.bf16.gmra.mrb[0].mxu0 %v957
      %v1705 = vpop.f32.mrb[0].mxu0
      %v1706 = vadd.f32 %v1545, %v1705
      %v1707 = vpop.f32.mrb[0].mxu0
      %v1708 = vpop.f32.mrb[0].mxu0
      %v1709 = vadd.f32 %v1548, %v1708
      %v1710 = vpop.f32.mrb[0].mxu0
      %1711 = vmatprep.mubr.bf16.mxu0 %v965
      %1712 = vmatmul.mubr.bf16.gmra.mrb[0].mxu0 %v964
      %v1713 = vpop.f32.mrb[0].mxu0
      %v1714 = vadd.f32 %v1553, %v1713
      %v1715 = vpop.f32.mrb[0].mxu0
      %v1716 = vpop.f32.mrb[0].mxu0
      %v1717 = vadd.f32 %v1556, %v1716
      %v1718 = vpop.f32.mrb[0].mxu0
      %1719 = vmatprep.mubr.bf16.mxu0 %v972
      %1720 = vmatmul.mubr.bf16.gmra.mrb[0].mxu0 %v971
      %v1721 = vpop.f32.mrb[0].mxu0
      %v1722 = vadd.f32 %v1561, %v1721
      %v1723 = vpop.f32.mrb[0].mxu0
      %v1724 = vpop.f32.mrb[0].mxu0
      %v1725 = vadd.f32 %v1564, %v1724
      %v1726 = vpop.f32.mrb[0].mxu0
      %1727 = vmatprep.mubr.bf16.mxu0 %v979
      %1728 = vmatmul.mubr.bf16.gmra.mrb[0].mxu0 %v978
      %v1729 = vpop.f32.mrb[0].mxu0
      %v1730 = vadd.f32 %v1569, %v1729
      %v1731 = vpop.f32.mrb[0].mxu0
      %v1732 = vpop.f32.mrb[0].mxu0
      %v1733 = vadd.f32 %v1572, %v1732
      %v1734 = vpop.f32.mrb[0].mxu0
      %1735 = vmatprep.mubr.bf16.mxu0 %v986
      %1736 = vmatmul.mubr.bf16.gmra.mrb[0].mxu0 %v985
      %v1737 = vpop.f32.mrb[0].mxu0
      %v1738 = vadd.f32 %v1577, %v1737
      %v1739 = vpop.f32.mrb[0].mxu0
      %v1740 = vpop.f32.mrb[0].mxu0
      %v1741 = vadd.f32 %v1580, %v1740
      %v1742 = vpop.f32.mrb[0].mxu0
      %1743 = vmatprep.mubr.bf16.mxu0 %v993
      %1744 = vmatmul.mubr.bf16.gmra.mrb[0].mxu0 %v992
      %v1745 = vpop.f32.mrb[0].mxu0
      %v1746 = vadd.f32 %v1585, %v1745
      %v1747 = vpop.f32.mrb[0].mxu0
      %v1748 = vpop.f32.mrb[0].mxu0
      %v1749 = vadd.f32 %v1588, %v1748
      %v1750 = vpop.f32.mrb[0].mxu0
      %1751 = vmatprep.mubr.bf16.mxu0 %v1000
      %1752 = vmatmul.mubr.bf16.gmra.mrb[0].mxu0 %v999
      %v1753 = vpop.f32.mrb[0].mxu0
      %v1754 = vadd.f32 %v1593, %v1753
      %v1755 = vpop.f32.mrb[0].mxu0
      %v1756 = vpop.f32.mrb[0].mxu0
      %v1757 = vadd.f32 %v1596, %v1756
      %v1758 = vpop.f32.mrb[0].mxu0
      %1759 = vmatprep.mubr.bf16.mxu0 %v1007
      %1760 = vmatmul.mubr.bf16.gmra.mrb[0].mxu0 %v1006
      %v1761 = vpop.f32.mrb[0].mxu0
      %v1762 = vadd.f32 %v1601, %v1761
      %v1763 = vpop.f32.mrb[0].mxu0
      %v1764 = vpop.f32.mrb[0].mxu0
      %v1765 = vadd.f32 %v1604, %v1764
      %v1766 = vpop.f32.mrb[0].mxu0
      %1767 = vmatprep.mubr.bf16.mxu0 %v1014
      %1768 = vmatmul.mubr.bf16.gmra.mrb[0].mxu0 %v1013
      %v1769 = vpop.f32.mrb[0].mxu0
      %v1770 = vadd.f32 %v1609, %v1769
      %v1771 = vpop.f32.mrb[0].mxu0
      %v1772 = vpop.f32.mrb[0].mxu0
      %v1773 = vadd.f32 %v1612, %v1772
      %v1774 = vpop.f32.mrb[0].mxu0
      %1775 = vmatprep.mubr.bf16.mxu0 %v1021
      %1776 = vmatmul.mubr.bf16.gmra.mrb[0].mxu0 %v1020
      %v1777 = vpop.f32.mrb[0].mxu0
      %v1778 = vadd.f32 %v1617, %v1777
      %v1779 = vpop.f32.mrb[0].mxu0
      %v1780 = vpop.f32.mrb[0].mxu0
      %v1781 = vadd.f32 %v1620, %v1780
      %v1782 = vpop.f32.mrb[0].mxu0
      %1783 = vmatprep.mubr.bf16.mxu0 %v1028
      %1784 = vmatmul.mubr.bf16.gmra.mrb[0].mxu0 %v1027
      %v1785 = vpop.f32.mrb[0].mxu0
      %v1786 = vadd.f32 %v1625, %v1785
      %v1787 = vpop.f32.mrb[0].mxu0
      %v1788 = vpop.f32.mrb[0].mxu0
      %v1789 = vadd.f32 %v1628, %v1788
      %v1790 = vpop.f32.mrb[0].mxu0
      %1791 = vmatprep.mubr.bf16.mxu0 %v1035
      %1792 = vmatmul.mubr.bf16.gmra.mrb[0].mxu0 %v1034
      %v1793 = vpop.f32.mrb[0].mxu0
      %v1794 = vadd.f32 %v1633, %v1793
      %v1795 = vpop.f32.mrb[0].mxu0
      %v1796 = vpop.f32.mrb[0].mxu0
      %v1797 = vadd.f32 %v1636, %v1796
      %v1798 = vpop.f32.mrb[0].mxu0
      %1799 = vdwg.mxu0
      %1800 = vmatprep.subr.bf16.mxu0 0
      %1801 = vmatpush1.bf16.msra.mxu0 %v1363
      %1802 = vmatprep.subr.bf16.mxu0 0
      %1803 = vmatpush1.bf16.msra.mxu0 %v1364
      %1804 = vmatprep.subr.bf16.mxu0 0
      %1805 = vmatpush1.bf16.msra.mxu0 %v1365
      %1806 = vmatprep.subr.bf16.mxu0 0
      %1807 = vmatpush1.bf16.msra.mxu0 %v1366
      %1808 = vmatprep.subr.bf16.mxu0 0
      %1809 = vmatpush1.bf16.msra.mxu0 %v1367
      %1810 = vmatprep.subr.bf16.mxu0 0
      %1811 = vmatpush1.bf16.msra.mxu0 %v1368
      %1812 = vmatprep.subr.bf16.mxu0 0
      %1813 = vmatpush1.bf16.msra.mxu0 %v1369
      %1814 = vmatprep.subr.bf16.mxu0 0
      %1815 = vmatpush1.bf16.msra.mxu0 %v1370
      %1816 = vmatprep.subr.bf16.mxu0 0
      %1817 = vmatpush1.bf16.msra.mxu0 %v1371
      %1818 = vmatprep.subr.bf16.mxu0 0
      %1819 = vmatpush1.bf16.msra.mxu0 %v1372
      %1820 = vmatprep.subr.bf16.mxu0 0
      %1821 = vmatpush1.bf16.msra.mxu0 %v1373
      %1822 = vmatprep.subr.bf16.mxu0 0
      %1823 = vmatpush1.bf16.msra.mxu0 %v1374
      %1824 = vmatprep.subr.bf16.mxu0 0
      %1825 = vmatpush1.bf16.msra.mxu0 %v1375
      %1826 = vmatprep.subr.bf16.mxu0 0
      %1827 = vmatpush1.bf16.msra.mxu0 %v1376
      %1828 = vmatprep.subr.bf16.mxu0 0
      %1829 = vmatpush1.bf16.msra.mxu0 %v1377
      %1830 = vmatprep.subr.bf16.mxu0 0
      %1831 = vmatpush1.bf16.msra.mxu0 %v1378
      %1832 = vmatprep.mubr.bf16.mxu0 %v932
      %1833 = vmatmul.mubr.bf16.gmra.mrb[0].mxu0 %v931
      %v1834 = vpop.f32.mrb[0].mxu0
      %v1835 = vadd.f32 %v1674, %v1834
      %v1836 = vpop.f32.mrb[0].mxu0
      %v1837 = vpop.f32.mrb[0].mxu0
      %v1838 = vadd.f32 %v1677, %v1837
      %v1839 = vpop.f32.mrb[0].mxu0
      %1840 = vmatprep.mubr.bf16.mxu0 %v939
      %1841 = vmatmul.mubr.bf16.gmra.mrb[0].mxu0 %v938
      %v1842 = vpop.f32.mrb[0].mxu0
      %v1843 = vadd.f32 %v1682, %v1842
      %v1844 = vpop.f32.mrb[0].mxu0
      %v1845 = vpop.f32.mrb[0].mxu0
      %v1846 = vadd.f32 %v1685, %v1845
      %v1847 = vpop.f32.mrb[0].mxu0
      %1848 = vmatprep.mubr.bf16.mxu0 %v946
      %1849 = vmatmul.mubr.bf16.gmra.mrb[0].mxu0 %v945
      %v1850 = vpop.f32.mrb[0].mxu0
      %v1851 = vadd.f32 %v1690, %v1850
      %v1852 = vpop.f32.mrb[0].mxu0
      %v1853 = vpop.f32.mrb[0].mxu0
      %v1854 = vadd.f32 %v1693, %v1853
      %v1855 = vpop.f32.mrb[0].mxu0
      %1856 = vmatprep.mubr.bf16.mxu0 %v953
      %1857 = vmatmul.mubr.bf16.gmra.mrb[0].mxu0 %v952
      %v1858 = vpop.f32.mrb[0].mxu0
      %v1859 = vadd.f32 %v1698, %v1858
      %v1860 = vpop.f32.mrb[0].mxu0
      %v1861 = vpop.f32.mrb[0].mxu0
      %v1862 = vadd.f32 %v1701, %v1861
      %v1863 = vpop.f32.mrb[0].mxu0
      %1864 = vmatprep.mubr.bf16.mxu0 %v960
      %1865 = vmatmul.mubr.bf16.gmra.mrb[0].mxu0 %v959
      %v1866 = vpop.f32.mrb[0].mxu0
      %v1867 = vadd.f32 %v1706, %v1866
      %v1868 = vpop.f32.mrb[0].mxu0
      %v1869 = vpop.f32.mrb[0].mxu0
      %v1870 = vadd.f32 %v1709, %v1869
      %v1871 = vpop.f32.mrb[0].mxu0
      %1872 = vmatprep.mubr.bf16.mxu0 %v967
      %1873 = vmatmul.mubr.bf16.gmra.mrb[0].mxu0 %v966
      %v1874 = vpop.f32.mrb[0].mxu0
      %v1875 = vadd.f32 %v1714, %v1874
      %v1876 = vpop.f32.mrb[0].mxu0
      %v1877 = vpop.f32.mrb[0].mxu0
      %v1878 = vadd.f32 %v1717, %v1877
      %v1879 = vpop.f32.mrb[0].mxu0
      %1880 = vmatprep.mubr.bf16.mxu0 %v974
      %1881 = vmatmul.mubr.bf16.gmra.mrb[0].mxu0 %v973
      %v1882 = vpop.f32.mrb[0].mxu0
      %v1883 = vadd.f32 %v1722, %v1882
      %v1884 = vpop.f32.mrb[0].mxu0
      %v1885 = vpop.f32.mrb[0].mxu0
      %v1886 = vadd.f32 %v1725, %v1885
      %v1887 = vpop.f32.mrb[0].mxu0
      %1888 = vmatprep.mubr.bf16.mxu0 %v981
      %1889 = vmatmul.mubr.bf16.gmra.mrb[0].mxu0 %v980
      %v1890 = vpop.f32.mrb[0].mxu0
      %v1891 = vadd.f32 %v1730, %v1890
      %v1892 = vpop.f32.mrb[0].mxu0
      %v1893 = vpop.f32.mrb[0].mxu0
      %v1894 = vadd.f32 %v1733, %v1893
      %v1895 = vpop.f32.mrb[0].mxu0
      %1896 = vmatprep.mubr.bf16.mxu0 %v988
      %1897 = vmatmul.mubr.bf16.gmra.mrb[0].mxu0 %v987
      %v1898 = vpop.f32.mrb[0].mxu0
      %v1899 = vadd.f32 %v1738, %v1898
      %v1900 = vpop.f32.mrb[0].mxu0
      %v1901 = vpop.f32.mrb[0].mxu0
      %v1902 = vadd.f32 %v1741, %v1901
      %v1903 = vpop.f32.mrb[0].mxu0
      %1904 = vmatprep.mubr.bf16.mxu0 %v995
      %1905 = vmatmul.mubr.bf16.gmra.mrb[0].mxu0 %v994
      %v1906 = vpop.f32.mrb[0].mxu0
      %v1907 = vadd.f32 %v1746, %v1906
      %v1908 = vpop.f32.mrb[0].mxu0
      %v1909 = vpop.f32.mrb[0].mxu0
      %v1910 = vadd.f32 %v1749, %v1909
      %v1911 = vpop.f32.mrb[0].mxu0
      %1912 = vmatprep.mubr.bf16.mxu0 %v1002
      %1913 = vmatmul.mubr.bf16.gmra.mrb[0].mxu0 %v1001
      %v1914 = vpop.f32.mrb[0].mxu0
      %v1915 = vadd.f32 %v1754, %v1914
      %v1916 = vpop.f32.mrb[0].mxu0
      %v1917 = vpop.f32.mrb[0].mxu0
      %v1918 = vadd.f32 %v1757, %v1917
      %v1919 = vpop.f32.mrb[0].mxu0
      %1920 = vmatprep.mubr.bf16.mxu0 %v1009
      %1921 = vmatmul.mubr.bf16.gmra.mrb[0].mxu0 %v1008
      %v1922 = vpop.f32.mrb[0].mxu0
      %v1923 = vadd.f32 %v1762, %v1922
      %v1924 = vpop.f32.mrb[0].mxu0
      %v1925 = vpop.f32.mrb[0].mxu0
      %v1926 = vadd.f32 %v1765, %v1925
      %v1927 = vpop.f32.mrb[0].mxu0
      %1928 = vmatprep.mubr.bf16.mxu0 %v1016
      %1929 = vmatmul.mubr.bf16.gmra.mrb[0].mxu0 %v1015
      %v1930 = vpop.f32.mrb[0].mxu0
      %v1931 = vadd.f32 %v1770, %v1930
      %v1932 = vpop.f32.mrb[0].mxu0
      %v1933 = vpop.f32.mrb[0].mxu0
      %v1934 = vadd.f32 %v1773, %v1933
      %v1935 = vpop.f32.mrb[0].mxu0
      %1936 = vmatprep.mubr.bf16.mxu0 %v1023
      %1937 = vmatmul.mubr.bf16.gmra.mrb[0].mxu0 %v1022
      %v1938 = vpop.f32.mrb[0].mxu0
      %v1939 = vadd.f32 %v1778, %v1938
      %v1940 = vpop.f32.mrb[0].mxu0
      %v1941 = vpop.f32.mrb[0].mxu0
      %v1942 = vadd.f32 %v1781, %v1941
      %v1943 = vpop.f32.mrb[0].mxu0
      %1944 = vmatprep.mubr.bf16.mxu0 %v1030
      %1945 = vmatmul.mubr.bf16.gmra.mrb[0].mxu0 %v1029
      %v1946 = vpop.f32.mrb[0].mxu0
      %v1947 = vadd.f32 %v1786, %v1946
      %v1948 = vpop.f32.mrb[0].mxu0
      %v1949 = vpop.f32.mrb[0].mxu0
      %v1950 = vadd.f32 %v1789, %v1949
      %v1951 = vpop.f32.mrb[0].mxu0
      %1952 = vmatprep.mubr.bf16.mxu0 %v1037
      %1953 = vmatmul.mubr.bf16.gmra.mrb[0].mxu0 %v1036
      %v1954 = vpop.f32.mrb[0].mxu0
      %v1955 = vadd.f32 %v1794, %v1954
      %v1956 = vpop.f32.mrb[0].mxu0
      %v1957 = vpop.f32.mrb[0].mxu0
      %v1958 = vadd.f32 %v1797, %v1957
      %v1959 = vpop.f32.mrb[0].mxu0
      %1960 = vdwg.mxu0
      %1961 = vmatprep.subr.bf16.mxu0 0
      %1962 = vmatpush1.bf16.msra.mxu0 %v1379
      %1963 = vmatprep.subr.bf16.mxu0 0
      %1964 = vmatpush1.bf16.msra.mxu0 0
      %1965 = vmatprep.subr.bf16.mxu0 0
      %1966 = vmatpush1.bf16.msra.mxu0 0
      %1967 = vmatprep.subr.bf16.mxu0 0
      %1968 = vmatpush1.bf16.msra.mxu0 0
      %1969 = vmatprep.subr.bf16.mxu0 0
      %1970 = vmatpush1.bf16.msra.mxu0 0
      %1971 = vmatprep.subr.bf16.mxu0 0
      %1972 = vmatpush1.bf16.msra.mxu0 0
      %1973 = vmatprep.subr.bf16.mxu0 0
      %1974 = vmatpush1.bf16.msra.mxu0 0
      %1975 = vmatprep.subr.bf16.mxu0 0
      %1976 = vmatpush1.bf16.msra.mxu0 0
      %1977 = vmatprep.subr.bf16.mxu0 0
      %1978 = vmatpush1.bf16.msra.mxu0 0
      %1979 = vmatprep.subr.bf16.mxu0 0
      %1980 = vmatpush1.bf16.msra.mxu0 0
      %1981 = vmatprep.subr.bf16.mxu0 0
      %1982 = vmatpush1.bf16.msra.mxu0 0
      %1983 = vmatprep.subr.bf16.mxu0 0
      %1984 = vmatpush1.bf16.msra.mxu0 0
      %1985 = vmatprep.subr.bf16.mxu0 0
      %1986 = vmatpush1.bf16.msra.mxu0 0
      %1987 = vmatprep.subr.bf16.mxu0 0
      %1988 = vmatpush1.bf16.msra.mxu0 0
      %1989 = vmatprep.subr.bf16.mxu0 0
      %1990 = vmatpush1.bf16.msra.mxu0 0
      %1991 = vmatprep.subr.bf16.mxu0 0
      %1992 = vmatpush1.bf16.msra.mxu0 0
      %1993 = vmatprep.mubr.bf16.mxu0 0
      %1994 = vmatmul.mubr.bf16.gmra.mrb[0].mxu0 %v1431
      %v1995 = vpop.f32.mrb[0].mxu0
      %v1996 = vadd.f32 %v1835, %v1995
      %v1997 = vpop.f32.mrb[0].mxu0
      %v1998 = vpop.f32.mrb[0].mxu0
      %v1999 = vadd.f32 %v1838, %v1998
      %v2000 = vpop.f32.mrb[0].mxu0
      %2001 = vmatprep.mubr.bf16.mxu0 0
      %2002 = vmatmul.mubr.bf16.gmra.mrb[0].mxu0 %v1434
      %v2003 = vpop.f32.mrb[0].mxu0
      %v2004 = vadd.f32 %v1843, %v2003
      %v2005 = vpop.f32.mrb[0].mxu0
      %v2006 = vpop.f32.mrb[0].mxu0
      %v2007 = vadd.f32 %v1846, %v2006
      %v2008 = vpop.f32.mrb[0].mxu0
      %2009 = vmatprep.mubr.bf16.mxu0 0
      %2010 = vmatmul.mubr.bf16.gmra.mrb[0].mxu0 %v1437
      %v2011 = vpop.f32.mrb[0].mxu0
      %v2012 = vadd.f32 %v1851, %v2011
      %v2013 = vpop.f32.mrb[0].mxu0
      %v2014 = vpop.f32.mrb[0].mxu0
      %v2015 = vadd.f32 %v1854, %v2014
      %v2016 = vpop.f32.mrb[0].mxu0
      %2017 = vmatprep.mubr.bf16.mxu0 0
      %2018 = vmatmul.mubr.bf16.gmra.mrb[0].mxu0 %v1440
      %v2019 = vpop.f32.mrb[0].mxu0
      %v2020 = vadd.f32 %v1859, %v2019
      %v2021 = vpop.f32.mrb[0].mxu0
      %v2022 = vpop.f32.mrb[0].mxu0
      %v2023 = vadd.f32 %v1862, %v2022
      %v2024 = vpop.f32.mrb[0].mxu0
      %2025 = vmatprep.mubr.bf16.mxu0 0
      %2026 = vmatmul.mubr.bf16.gmra.mrb[0].mxu0 %v1443
      %v2027 = vpop.f32.mrb[0].mxu0
      %v2028 = vadd.f32 %v1867, %v2027
      %v2029 = vpop.f32.mrb[0].mxu0
      %v2030 = vpop.f32.mrb[0].mxu0
      %v2031 = vadd.f32 %v1870, %v2030
      %v2032 = vpop.f32.mrb[0].mxu0
      %2033 = vmatprep.mubr.bf16.mxu0 0
      %2034 = vmatmul.mubr.bf16.gmra.mrb[0].mxu0 %v1446
      %v2035 = vpop.f32.mrb[0].mxu0
      %v2036 = vadd.f32 %v1875, %v2035
      %v2037 = vpop.f32.mrb[0].mxu0
      %v2038 = vpop.f32.mrb[0].mxu0
      %v2039 = vadd.f32 %v1878, %v2038
      %v2040 = vpop.f32.mrb[0].mxu0
      %2041 = vmatprep.mubr.bf16.mxu0 0
      %2042 = vmatmul.mubr.bf16.gmra.mrb[0].mxu0 %v1449
      %v2043 = vpop.f32.mrb[0].mxu0
      %v2044 = vadd.f32 %v1883, %v2043
      %v2045 = vpop.f32.mrb[0].mxu0
      %v2046 = vpop.f32.mrb[0].mxu0
      %v2047 = vadd.f32 %v1886, %v2046
      %v2048 = vpop.f32.mrb[0].mxu0
      %2049 = vmatprep.mubr.bf16.mxu0 0
      %2050 = vmatmul.mubr.bf16.gmra.mrb[0].mxu0 %v1452
      %v2051 = vpop.f32.mrb[0].mxu0
      %v2052 = vadd.f32 %v1891, %v2051
      %v2053 = vpop.f32.mrb[0].mxu0
      %v2054 = vpop.f32.mrb[0].mxu0
      %v2055 = vadd.f32 %v1894, %v2054
      %v2056 = vpop.f32.mrb[0].mxu0
      %2057 = vmatprep.mubr.bf16.mxu0 0
      %2058 = vmatmul.mubr.bf16.gmra.mrb[0].mxu0 %v1455
      %v2059 = vpop.f32.mrb[0].mxu0
      %v2060 = vadd.f32 %v1899, %v2059
      %v2061 = vpop.f32.mrb[0].mxu0
      %v2062 = vpop.f32.mrb[0].mxu0
      %v2063 = vadd.f32 %v1902, %v2062
      %v2064 = vpop.f32.mrb[0].mxu0
      %2065 = vmatprep.mubr.bf16.mxu0 0
      %2066 = vmatmul.mubr.bf16.gmra.mrb[0].mxu0 %v1458
      %v2067 = vpop.f32.mrb[0].mxu0
      %v2068 = vadd.f32 %v1907, %v2067
      %v2069 = vpop.f32.mrb[0].mxu0
      %v2070 = vpop.f32.mrb[0].mxu0
      %v2071 = vadd.f32 %v1910, %v2070
      %v2072 = vpop.f32.mrb[0].mxu0
      %2073 = vmatprep.mubr.bf16.mxu0 0
      %2074 = vmatmul.mubr.bf16.gmra.mrb[0].mxu0 %v1461
      %v2075 = vpop.f32.mrb[0].mxu0
      %v2076 = vadd.f32 %v1915, %v2075
      %v2077 = vpop.f32.mrb[0].mxu0
      %v2078 = vpop.f32.mrb[0].mxu0
      %v2079 = vadd.f32 %v1918, %v2078
      %v2080 = vpop.f32.mrb[0].mxu0
      %2081 = vmatprep.mubr.bf16.mxu0 0
      %2082 = vmatmul.mubr.bf16.gmra.mrb[0].mxu0 %v1464
      %v2083 = vpop.f32.mrb[0].mxu0
      %v2084 = vadd.f32 %v1923, %v2083
      %v2085 = vpop.f32.mrb[0].mxu0
      %v2086 = vpop.f32.mrb[0].mxu0
      %v2087 = vadd.f32 %v1926, %v2086
      %v2088 = vpop.f32.mrb[0].mxu0
      %2089 = vmatprep.mubr.bf16.mxu0 0
      %2090 = vmatmul.mubr.bf16.gmra.mrb[0].mxu0 %v1467
      %v2091 = vpop.f32.mrb[0].mxu0
      %v2092 = vadd.f32 %v1931, %v2091
      %v2093 = vpop.f32.mrb[0].mxu0
      %v2094 = vpop.f32.mrb[0].mxu0
      %v2095 = vadd.f32 %v1934, %v2094
      %v2096 = vpop.f32.mrb[0].mxu0
      %2097 = vmatprep.mubr.bf16.mxu0 0
      %2098 = vmatmul.mubr.bf16.gmra.mrb[0].mxu0 %v1470
      %v2099 = vpop.f32.mrb[0].mxu0
      %v2100 = vadd.f32 %v1939, %v2099
      %v2101 = vpop.f32.mrb[0].mxu0
      %v2102 = vpop.f32.mrb[0].mxu0
      %v2103 = vadd.f32 %v1942, %v2102
      %v2104 = vpop.f32.mrb[0].mxu0
      %2105 = vmatprep.mubr.bf16.mxu0 0
      %2106 = vmatmul.mubr.bf16.gmra.mrb[0].mxu0 %v1473
      %v2107 = vpop.f32.mrb[0].mxu0
      %v2108 = vadd.f32 %v1947, %v2107
      %v2109 = vpop.f32.mrb[0].mxu0
      %v2110 = vpop.f32.mrb[0].mxu0
      %v2111 = vadd.f32 %v1950, %v2110
      %v2112 = vpop.f32.mrb[0].mxu0
      %2113 = vmatprep.mubr.bf16.mxu0 0
      %2114 = vmatmul.mubr.bf16.gmra.mrb[0].mxu0 %v1476
      %v2115 = vpop.f32.mrb[0].mxu0
      %v2116 = vadd.f32 %v1955, %v2115
      %v2117 = vpop.f32.mrb[0].mxu0
      %v2118 = vpop.f32.mrb[0].mxu0
      %v2119 = vadd.f32 %v1958, %v2118
      %v2120 = vpop.f32.mrb[0].mxu0
      %2121 = vdwg.mxu0
      %v2122 = vmax.f32 %v1996, 0.0
      %v2123 = vmax.f32 %v1999, 0.0
      %v2124 = vmax.f32 %v2004, 0.0
      %v2125 = vmax.f32 %v2007, 0.0
      %v2126 = vmax.f32 %v2012, 0.0
      %v2127 = vmax.f32 %v2015, 0.0
      %v2128 = vmax.f32 %v2020, 0.0
      %v2129 = vmax.f32 %v2023, 0.0
      %v2130 = vmax.f32 %v2028, 0.0
      %v2131 = vmax.f32 %v2031, 0.0
      %v2132 = vmax.f32 %v2036, 0.0
      %v2133 = vmax.f32 %v2039, 0.0
      %v2134 = vmax.f32 %v2044, 0.0
      %v2135 = vmax.f32 %v2047, 0.0
      %v2136 = vmax.f32 %v2052, 0.0
      %v2137 = vmax.f32 %v2055, 0.0
      %v2138 = vmax.f32 %v2060, 0.0
      %v2139 = vmax.f32 %v2063, 0.0
      %v2140 = vmax.f32 %v2068, 0.0
      %v2141 = vmax.f32 %v2071, 0.0
      %v2142 = vmax.f32 %v2076, 0.0
      %v2143 = vmax.f32 %v2079, 0.0
      %v2144 = vmax.f32 %v2084, 0.0
      %v2145 = vmax.f32 %v2087, 0.0
      %v2146 = vmax.f32 %v2092, 0.0
      %v2147 = vmax.f32 %v2095, 0.0
      %v2148 = vmax.f32 %v2100, 0.0
      %v2149 = vmax.f32 %v2103, 0.0
      %v2150 = vmax.f32 %v2108, 0.0
      %v2151 = vmax.f32 %v2111, 0.0
      %v2152 = vmax.f32 %v2116, 0.0
      %v2153 = vmax.f32 %v2119, 0.0
      %v2154 = vpack.c.bf16 %v2123, %v2122
      %v2155 = vpack.c.bf16 %v2125, %v2124
      %v2156 = vpack.c.bf16 %v2127, %v2126
      %v2157 = vpack.c.bf16 %v2129, %v2128
      %v2158 = vpack.c.bf16 %v2131, %v2130
      %v2159 = vpack.c.bf16 %v2133, %v2132
      %v2160 = vpack.c.bf16 %v2135, %v2134
      %v2161 = vpack.c.bf16 %v2137, %v2136
      %v2162 = vpack.c.bf16 %v2139, %v2138
      %v2163 = vpack.c.bf16 %v2141, %v2140
      %v2164 = vpack.c.bf16 %v2143, %v2142
      %v2165 = vpack.c.bf16 %v2145, %v2144
      %v2166 = vpack.c.bf16 %v2147, %v2146
      %v2167 = vpack.c.bf16 %v2149, %v2148
      %v2168 = vpack.c.bf16 %v2151, %v2150
      %v2169 = vpack.c.bf16 %v2153, %v2152
      %v2170 = vld [vmem:[%s3] sm:$0xf]
      %v2171 = vld [vmem:[%s3 + $0x4] sm:$0xf]
      %v2172 = vld [vmem:[%s3 + $0x8] sm:$0xf]
      %v2173 = vld [vmem:[%s3 + $0xc] sm:$0xf]
      %v2174 = vld [vmem:[%s3 + $0x10] sm:$0xf]
      %v2175 = vld [vmem:[%s3 + $0x14] sm:$0xf]
      %v2176 = vld [vmem:[%s3 + $0x18] sm:$0xf]
      %v2177 = vld [vmem:[%s3 + $0x1c] sm:$0xf]
      %v2178 = vld [vmem:[%s3 + $0x20] sm:$0xf]
      %v2179 = vld [vmem:[%s3 + $0x24] sm:$0xf]
      %v2180 = vld [vmem:[%s3 + $0x28] sm:$0xf]
      %v2181 = vld [vmem:[%s3 + $0x2c] sm:$0xf]
      %v2182 = vld [vmem:[%s3 + $0x30] sm:$0xf]
      %v2183 = vld [vmem:[%s3 + $0x34] sm:$0xf]
      %v2184 = vld [vmem:[%s3 + $0x38] sm:$0xf]
      %v2185 = vld [vmem:[%s3 + $0x3c] sm:$0xf]
      %v2186 = vld [vmem:[%s4] sm:$0x1]
      %v2188 = vlaneseq
      %v2189 = vshrl.u32 %v2188, 7
      %v2190 = vsub.s32 0, %v2189
      %v2191 = vrot.slane %v2186, %v2190
      %v2209 = vunpack.c.l.b16 %v2170
      %v2210 = vunpack.c.l.b16 %v2171
      %v2211 = vunpack.c.l.b16 %v2172
      %v2212 = vunpack.c.l.b16 %v2173
      %v2213 = vunpack.c.l.b16 %v2174
      %v2214 = vunpack.c.l.b16 %v2175
      %v2215 = vunpack.c.l.b16 %v2176
      %v2216 = vunpack.c.l.b16 %v2177
      %v2217 = vunpack.c.l.b16 %v2178
      %v2218 = vunpack.c.l.b16 %v2179
      %v2219 = vunpack.c.l.b16 %v2180
      %v2220 = vunpack.c.l.b16 %v2181
      %v2221 = vunpack.c.l.b16 %v2182
      %v2222 = vunpack.c.l.b16 %v2183
      %v2223 = vunpack.c.l.b16 %v2184
      %v2224 = vunpack.c.l.b16 %v2185
      %v2225 = vpack.c.b16 %v2210, %v2209
      %v2226 = vpack.c.b16 %v2212, %v2211
      %v2227 = vpack.c.b16 %v2214, %v2213
      %v2228 = vpack.c.b16 %v2216, %v2215
      %v2229 = vpack.c.b16 %v2218, %v2217
      %v2230 = vpack.c.b16 %v2220, %v2219
      %v2231 = vpack.c.b16 %v2222, %v2221
      %v2232 = vpack.c.b16 %v2224, %v2223
      %2241 = vmatprep.subr.bf16.mxu0 0
      %2242 = vmatpush1.bf16.msra.mxu0 %v2225
      %2243 = vmatprep.subr.bf16.mxu0 0
      %2244 = vmatpush1.bf16.msra.mxu0 %v2226
      %2245 = vmatprep.subr.bf16.mxu0 0
      %2246 = vmatpush1.bf16.msra.mxu0 %v2227
      %2247 = vmatprep.subr.bf16.mxu0 0
      %2248 = vmatpush1.bf16.msra.mxu0 %v2228
      %2249 = vmatprep.subr.bf16.mxu0 0
      %2250 = vmatpush1.bf16.msra.mxu0 %v2229
      %2251 = vmatprep.subr.bf16.mxu0 0
      %2252 = vmatpush1.bf16.msra.mxu0 %v2230
      %2253 = vmatprep.subr.bf16.mxu0 0
      %2254 = vmatpush1.bf16.msra.mxu0 %v2231
      %2255 = vmatprep.subr.bf16.mxu0 0
      %2256 = vmatpush1.bf16.msra.mxu0 %v2232
      %2257 = vmatprep.subr.bf16.mxu0 0
      %2258 = vmatpush1.bf16.msra.mxu0 0
      %2259 = vmatprep.subr.bf16.mxu0 0
      %2260 = vmatpush1.bf16.msra.mxu0 0
      %2261 = vmatprep.subr.bf16.mxu0 0
      %2262 = vmatpush1.bf16.msra.mxu0 0
      %2263 = vmatprep.subr.bf16.mxu0 0
      %2264 = vmatpush1.bf16.msra.mxu0 0
      %2265 = vmatprep.subr.bf16.mxu0 0
      %2266 = vmatpush1.bf16.msra.mxu0 0
      %2267 = vmatprep.subr.bf16.mxu0 0
      %2268 = vmatpush1.bf16.msra.mxu0 0
      %2269 = vmatprep.subr.bf16.mxu0 0
      %2270 = vmatpush1.bf16.msra.mxu0 0
      %2271 = vmatprep.subr.bf16.mxu0 0
      %2272 = vmatpush1.bf16.msra.mxu0 0
      %2273 = vmatprep.mubr.bf16.mxu0 0
      %2274 = vmatmul.mubr.bf16.gmra.mrb[0].mxu0 %v2154
      %v2275 = vpop.f32.mrb[0].mxu0
      %v2276 = vadd.f32 %v2191, %v2275
      %v2277 = vpop.f32.mrb[0].mxu0
      %v2278 = vpop.f32.mrb[0].mxu0
      %v2279 = vadd.f32 %v2191, %v2278
      %v2280 = vpop.f32.mrb[0].mxu0
      %2281 = vmatprep.mubr.bf16.mxu0 0
      %2282 = vmatmul.mubr.bf16.gmra.mrb[0].mxu0 %v2155
      %v2283 = vpop.f32.mrb[0].mxu0
      %v2284 = vadd.f32 %v2191, %v2283
      %v2285 = vpop.f32.mrb[0].mxu0
      %v2286 = vpop.f32.mrb[0].mxu0
      %v2287 = vadd.f32 %v2191, %v2286
      %v2288 = vpop.f32.mrb[0].mxu0
      %2289 = vmatprep.mubr.bf16.mxu0 0
      %2290 = vmatmul.mubr.bf16.gmra.mrb[0].mxu0 %v2156
      %v2291 = vpop.f32.mrb[0].mxu0
      %v2292 = vadd.f32 %v2191, %v2291
      %v2293 = vpop.f32.mrb[0].mxu0
      %v2294 = vpop.f32.mrb[0].mxu0
      %v2295 = vadd.f32 %v2191, %v2294
      %v2296 = vpop.f32.mrb[0].mxu0
      %2297 = vmatprep.mubr.bf16.mxu0 0
      %2298 = vmatmul.mubr.bf16.gmra.mrb[0].mxu0 %v2157
      %v2299 = vpop.f32.mrb[0].mxu0
      %v2300 = vadd.f32 %v2191, %v2299
      %v2301 = vpop.f32.mrb[0].mxu0
      %v2302 = vpop.f32.mrb[0].mxu0
      %v2303 = vadd.f32 %v2191, %v2302
      %v2304 = vpop.f32.mrb[0].mxu0
      %2305 = vmatprep.mubr.bf16.mxu0 0
      %2306 = vmatmul.mubr.bf16.gmra.mrb[0].mxu0 %v2158
      %v2307 = vpop.f32.mrb[0].mxu0
      %v2308 = vadd.f32 %v2191, %v2307
      %v2309 = vpop.f32.mrb[0].mxu0
      %v2310 = vpop.f32.mrb[0].mxu0
      %v2311 = vadd.f32 %v2191, %v2310
      %v2312 = vpop.f32.mrb[0].mxu0
      %2313 = vmatprep.mubr.bf16.mxu0 0
      %2314 = vmatmul.mubr.bf16.gmra.mrb[0].mxu0 %v2159
      %v2315 = vpop.f32.mrb[0].mxu0
      %v2316 = vadd.f32 %v2191, %v2315
      %v2317 = vpop.f32.mrb[0].mxu0
      %v2318 = vpop.f32.mrb[0].mxu0
      %v2319 = vadd.f32 %v2191, %v2318
      %v2320 = vpop.f32.mrb[0].mxu0
      %2321 = vmatprep.mubr.bf16.mxu0 0
      %2322 = vmatmul.mubr.bf16.gmra.mrb[0].mxu0 %v2160
      %v2323 = vpop.f32.mrb[0].mxu0
      %v2324 = vadd.f32 %v2191, %v2323
      %v2325 = vpop.f32.mrb[0].mxu0
      %v2326 = vpop.f32.mrb[0].mxu0
      %v2327 = vadd.f32 %v2191, %v2326
      %v2328 = vpop.f32.mrb[0].mxu0
      %2329 = vmatprep.mubr.bf16.mxu0 0
      %2330 = vmatmul.mubr.bf16.gmra.mrb[0].mxu0 %v2161
      %v2331 = vpop.f32.mrb[0].mxu0
      %v2332 = vadd.f32 %v2191, %v2331
      %v2333 = vpop.f32.mrb[0].mxu0
      %v2334 = vpop.f32.mrb[0].mxu0
      %v2335 = vadd.f32 %v2191, %v2334
      %v2336 = vpop.f32.mrb[0].mxu0
      %2337 = vmatprep.mubr.bf16.mxu0 0
      %2338 = vmatmul.mubr.bf16.gmra.mrb[0].mxu0 %v2162
      %v2339 = vpop.f32.mrb[0].mxu0
      %v2340 = vadd.f32 %v2191, %v2339
      %v2341 = vpop.f32.mrb[0].mxu0
      %v2342 = vpop.f32.mrb[0].mxu0
      %v2343 = vadd.f32 %v2191, %v2342
      %v2344 = vpop.f32.mrb[0].mxu0
      %2345 = vmatprep.mubr.bf16.mxu0 0
      %2346 = vmatmul.mubr.bf16.gmra.mrb[0].mxu0 %v2163
      %v2347 = vpop.f32.mrb[0].mxu0
      %v2348 = vadd.f32 %v2191, %v2347
      %v2349 = vpop.f32.mrb[0].mxu0
      %v2350 = vpop.f32.mrb[0].mxu0
      %v2351 = vadd.f32 %v2191, %v2350
      %v2352 = vpop.f32.mrb[0].mxu0
      %2353 = vmatprep.mubr.bf16.mxu0 0
      %2354 = vmatmul.mubr.bf16.gmra.mrb[0].mxu0 %v2164
      %v2355 = vpop.f32.mrb[0].mxu0
      %v2356 = vadd.f32 %v2191, %v2355
      %v2357 = vpop.f32.mrb[0].mxu0
      %v2358 = vpop.f32.mrb[0].mxu0
      %v2359 = vadd.f32 %v2191, %v2358
      %v2360 = vpop.f32.mrb[0].mxu0
      %2361 = vmatprep.mubr.bf16.mxu0 0
      %2362 = vmatmul.mubr.bf16.gmra.mrb[0].mxu0 %v2165
      %v2363 = vpop.f32.mrb[0].mxu0
      %v2364 = vadd.f32 %v2191, %v2363
      %v2365 = vpop.f32.mrb[0].mxu0
      %v2366 = vpop.f32.mrb[0].mxu0
      %v2367 = vadd.f32 %v2191, %v2366
      %v2368 = vpop.f32.mrb[0].mxu0
      %2369 = vmatprep.mubr.bf16.mxu0 0
      %2370 = vmatmul.mubr.bf16.gmra.mrb[0].mxu0 %v2166
      %v2371 = vpop.f32.mrb[0].mxu0
      %v2372 = vadd.f32 %v2191, %v2371
      %v2373 = vpop.f32.mrb[0].mxu0
      %v2374 = vpop.f32.mrb[0].mxu0
      %v2375 = vadd.f32 %v2191, %v2374
      %v2376 = vpop.f32.mrb[0].mxu0
      %2377 = vmatprep.mubr.bf16.mxu0 0
      %2378 = vmatmul.mubr.bf16.gmra.mrb[0].mxu0 %v2167
      %v2379 = vpop.f32.mrb[0].mxu0
      %v2380 = vadd.f32 %v2191, %v2379
      %v2381 = vpop.f32.mrb[0].mxu0
      %v2382 = vpop.f32.mrb[0].mxu0
      %v2383 = vadd.f32 %v2191, %v2382
      %v2384 = vpop.f32.mrb[0].mxu0
      %2385 = vmatprep.mubr.bf16.mxu0 0
      %2386 = vmatmul.mubr.bf16.gmra.mrb[0].mxu0 %v2168
      %v2387 = vpop.f32.mrb[0].mxu0
      %v2388 = vadd.f32 %v2191, %v2387
      %v2389 = vpop.f32.mrb[0].mxu0
      %v2390 = vpop.f32.mrb[0].mxu0
      %v2391 = vadd.f32 %v2191, %v2390
      %v2392 = vpop.f32.mrb[0].mxu0
      %2393 = vmatprep.mubr.bf16.mxu0 0
      %2394 = vmatmul.mubr.bf16.gmra.mrb[0].mxu0 %v2169
      %v2395 = vpop.f32.mrb[0].mxu0
      %v2396 = vadd.f32 %v2191, %v2395
      %v2397 = vpop.f32.mrb[0].mxu0
      %v2398 = vpop.f32.mrb[0].mxu0
      %v2399 = vadd.f32 %v2191, %v2398
      %v2400 = vpop.f32.mrb[0].mxu0
      %2401 = vdwg.mxu0
      %v2402 = vmax.f32 %v2276, 0.0
      %v2403 = vmax.f32 %v2279, 0.0
      %v2404 = vmax.f32 %v2284, 0.0
      %v2405 = vmax.f32 %v2287, 0.0
      %v2406 = vmax.f32 %v2292, 0.0
      %v2407 = vmax.f32 %v2295, 0.0
      %v2408 = vmax.f32 %v2300, 0.0
      %v2409 = vmax.f32 %v2303, 0.0
      %v2410 = vmax.f32 %v2308, 0.0
      %v2411 = vmax.f32 %v2311, 0.0
      %v2412 = vmax.f32 %v2316, 0.0
      %v2413 = vmax.f32 %v2319, 0.0
      %v2414 = vmax.f32 %v2324, 0.0
      %v2415 = vmax.f32 %v2327, 0.0
      %v2416 = vmax.f32 %v2332, 0.0
      %v2417 = vmax.f32 %v2335, 0.0
      %v2418 = vmax.f32 %v2340, 0.0
      %v2419 = vmax.f32 %v2343, 0.0
      %v2420 = vmax.f32 %v2348, 0.0
      %v2421 = vmax.f32 %v2351, 0.0
      %v2422 = vmax.f32 %v2356, 0.0
      %v2423 = vmax.f32 %v2359, 0.0
      %v2424 = vmax.f32 %v2364, 0.0
      %v2425 = vmax.f32 %v2367, 0.0
      %v2426 = vmax.f32 %v2372, 0.0
      %v2427 = vmax.f32 %v2375, 0.0
      %v2428 = vmax.f32 %v2380, 0.0
      %v2429 = vmax.f32 %v2383, 0.0
      %v2430 = vmax.f32 %v2388, 0.0
      %v2431 = vmax.f32 %v2391, 0.0
      %v2432 = vmax.f32 %v2396, 0.0
      %v2433 = vmax.f32 %v2399, 0.0
      %v2434 = vpack.c.bf16 %v2403, %v2402
      %v2435 = vpack.c.bf16 %v2405, %v2404
      %v2436 = vpack.c.bf16 %v2407, %v2406
      %v2437 = vpack.c.bf16 %v2409, %v2408
      %v2438 = vpack.c.bf16 %v2411, %v2410
      %v2439 = vpack.c.bf16 %v2413, %v2412
      %v2440 = vpack.c.bf16 %v2415, %v2414
      %v2441 = vpack.c.bf16 %v2417, %v2416
      %v2442 = vpack.c.bf16 %v2419, %v2418
      %v2443 = vpack.c.bf16 %v2421, %v2420
      %v2444 = vpack.c.bf16 %v2423, %v2422
      %v2445 = vpack.c.bf16 %v2425, %v2424
      %v2446 = vpack.c.bf16 %v2427, %v2426
      %v2447 = vpack.c.bf16 %v2429, %v2428
      %v2448 = vpack.c.bf16 %v2431, %v2430
      %v2449 = vpack.c.bf16 %v2433, %v2432
      %v2450 = vld [vmem:[%s5] sm:$0xf]
      %v2451 = vld [vmem:[%s5 + $0x4] sm:$0xf]
      %v2452 = vld [vmem:[%s5 + $0x8] sm:$0xf]
      %v2453 = vld [vmem:[%s5 + $0xc] sm:$0xf]
      %v2454 = vld [vmem:[%s5 + $0x10] sm:$0xf]
      %v2455 = vld [vmem:[%s5 + $0x14] sm:$0xf]
      %v2456 = vld [vmem:[%s5 + $0x18] sm:$0xf]
      %v2457 = vld [vmem:[%s5 + $0x1c] sm:$0xf]
      %v2458 = vld [vmem:[%s6] sm:$0x1]
      %v2460 = vlaneseq
      %v2461 = vshrl.u32 %v2460, 7
      %v2462 = vsub.s32 0, %v2461
      %v2463 = vrot.slane %v2458, %v2462
      %v2473 = vunpack.c.l.b16 %v2450
      %v2474 = vunpack.c.l.b16 %v2451
      %v2475 = vunpack.c.l.b16 %v2452
      %v2476 = vunpack.c.l.b16 %v2453
      %v2477 = vunpack.c.l.b16 %v2454
      %v2478 = vunpack.c.l.b16 %v2455
      %v2479 = vunpack.c.l.b16 %v2456
      %v2480 = vunpack.c.l.b16 %v2457
      %v2481 = vpack.c.b16 %v2474, %v2473
      %v2482 = vpack.c.b16 %v2476, %v2475
      %v2483 = vpack.c.b16 %v2478, %v2477
      %v2484 = vpack.c.b16 %v2480, %v2479
      %vm2489 = vcmask 523264
      %v2491 = vsel %vm2489, %v2434, 0
      %v2494 = vsel %vm2489, %v2435, 0
      %v2497 = vsel %vm2489, %v2436, 0
      %v2500 = vsel %vm2489, %v2437, 0
      %v2503 = vsel %vm2489, %v2438, 0
      %v2506 = vsel %vm2489, %v2439, 0
      %v2509 = vsel %vm2489, %v2440, 0
      %v2512 = vsel %vm2489, %v2441, 0
      %v2515 = vsel %vm2489, %v2442, 0
      %v2518 = vsel %vm2489, %v2443, 0
      %v2521 = vsel %vm2489, %v2444, 0
      %v2524 = vsel %vm2489, %v2445, 0
      %v2527 = vsel %vm2489, %v2446, 0
      %v2530 = vsel %vm2489, %v2447, 0
      %v2533 = vsel %vm2489, %v2448, 0
      %v2536 = vsel %vm2489, %v2449, 0
      %2538 = vmatprep.subr.bf16.mxu0 0
      %2539 = vmatpush1.bf16.msra.mxu0 %v2481
      %2540 = vmatprep.subr.bf16.mxu0 0
      %2541 = vmatpush1.bf16.msra.mxu0 %v2482
      %2542 = vmatprep.subr.bf16.mxu0 0
      %2543 = vmatpush1.bf16.msra.mxu0 %v2483
      %2544 = vmatprep.subr.bf16.mxu0 0
      %2545 = vmatpush1.bf16.msra.mxu0 %v2484
      %2546 = vmatprep.subr.bf16.mxu0 0
      %2547 = vmatpush1.bf16.msra.mxu0 0
      %2548 = vmatprep.subr.bf16.mxu0 0
      %2549 = vmatpush1.bf16.msra.mxu0 0
      %2550 = vmatprep.subr.bf16.mxu0 0
      %2551 = vmatpush1.bf16.msra.mxu0 0
      %2552 = vmatprep.subr.bf16.mxu0 0
      %2553 = vmatpush1.bf16.msra.mxu0 0
      %2554 = vmatprep.subr.bf16.mxu0 0
      %2555 = vmatpush1.bf16.msra.mxu0 0
      %2556 = vmatprep.subr.bf16.mxu0 0
      %2557 = vmatpush1.bf16.msra.mxu0 0
      %2558 = vmatprep.subr.bf16.mxu0 0
      %2559 = vmatpush1.bf16.msra.mxu0 0
      %2560 = vmatprep.subr.bf16.mxu0 0
      %2561 = vmatpush1.bf16.msra.mxu0 0
      %2562 = vmatprep.subr.bf16.mxu0 0
      %2563 = vmatpush1.bf16.msra.mxu0 0
      %2564 = vmatprep.subr.bf16.mxu0 0
      %2565 = vmatpush1.bf16.msra.mxu0 0
      %2566 = vmatprep.subr.bf16.mxu0 0
      %2567 = vmatpush1.bf16.msra.mxu0 0
      %2568 = vmatprep.subr.bf16.mxu0 0
      %2569 = vmatpush1.bf16.msra.mxu0 0
      %2570 = vmatprep.mubr.bf16.mxu0 0
      %2571 = vmatmul.mubr.bf16.gmra.mrb[0].mxu0 %v2491
      %v2572 = vpop.f32.mrb[0].mxu0
      %v2573 = vadd.f32 %v2463, %v2572
      %v2574 = vpop.f32.mrb[0].mxu0
      %v2575 = vpop.f32.mrb[0].mxu0
      %v2576 = vadd.f32 %v2463, %v2575
      %v2577 = vpop.f32.mrb[0].mxu0
      %2578 = vmatprep.mubr.bf16.mxu0 0
      %2579 = vmatmul.mubr.bf16.gmra.mrb[0].mxu0 %v2494
      %v2580 = vpop.f32.mrb[0].mxu0
      %v2581 = vadd.f32 %v2463, %v2580
      %v2582 = vpop.f32.mrb[0].mxu0
      %v2583 = vpop.f32.mrb[0].mxu0
      %v2584 = vadd.f32 %v2463, %v2583
      %v2585 = vpop.f32.mrb[0].mxu0
      %2586 = vmatprep.mubr.bf16.mxu0 0
      %2587 = vmatmul.mubr.bf16.gmra.mrb[0].mxu0 %v2497
      %v2588 = vpop.f32.mrb[0].mxu0
      %v2589 = vadd.f32 %v2463, %v2588
      %v2590 = vpop.f32.mrb[0].mxu0
      %v2591 = vpop.f32.mrb[0].mxu0
      %v2592 = vadd.f32 %v2463, %v2591
      %v2593 = vpop.f32.mrb[0].mxu0
      %2594 = vmatprep.mubr.bf16.mxu0 0
      %2595 = vmatmul.mubr.bf16.gmra.mrb[0].mxu0 %v2500
      %v2596 = vpop.f32.mrb[0].mxu0
      %v2597 = vadd.f32 %v2463, %v2596
      %v2598 = vpop.f32.mrb[0].mxu0
      %v2599 = vpop.f32.mrb[0].mxu0
      %v2600 = vadd.f32 %v2463, %v2599
      %v2601 = vpop.f32.mrb[0].mxu0
      %2602 = vmatprep.mubr.bf16.mxu0 0
      %2603 = vmatmul.mubr.bf16.gmra.mrb[0].mxu0 %v2503
      %v2604 = vpop.f32.mrb[0].mxu0
      %v2605 = vadd.f32 %v2463, %v2604
      %v2606 = vpop.f32.mrb[0].mxu0
      %v2607 = vpop.f32.mrb[0].mxu0
      %v2608 = vadd.f32 %v2463, %v2607
      %v2609 = vpop.f32.mrb[0].mxu0
      %2610 = vmatprep.mubr.bf16.mxu0 0
      %2611 = vmatmul.mubr.bf16.gmra.mrb[0].mxu0 %v2506
      %v2612 = vpop.f32.mrb[0].mxu0
      %v2613 = vadd.f32 %v2463, %v2612
      %v2614 = vpop.f32.mrb[0].mxu0
      %v2615 = vpop.f32.mrb[0].mxu0
      %v2616 = vadd.f32 %v2463, %v2615
      %v2617 = vpop.f32.mrb[0].mxu0
      %2618 = vmatprep.mubr.bf16.mxu0 0
      %2619 = vmatmul.mubr.bf16.gmra.mrb[0].mxu0 %v2509
      %v2620 = vpop.f32.mrb[0].mxu0
      %v2621 = vadd.f32 %v2463, %v2620
      %v2622 = vpop.f32.mrb[0].mxu0
      %v2623 = vpop.f32.mrb[0].mxu0
      %v2624 = vadd.f32 %v2463, %v2623
      %v2625 = vpop.f32.mrb[0].mxu0
      %2626 = vmatprep.mubr.bf16.mxu0 0
      %2627 = vmatmul.mubr.bf16.gmra.mrb[0].mxu0 %v2512
      %v2628 = vpop.f32.mrb[0].mxu0
      %v2629 = vadd.f32 %v2463, %v2628
      %v2630 = vpop.f32.mrb[0].mxu0
      %v2631 = vpop.f32.mrb[0].mxu0
      %v2632 = vadd.f32 %v2463, %v2631
      %v2633 = vpop.f32.mrb[0].mxu0
      %2634 = vmatprep.mubr.bf16.mxu0 0
      %2635 = vmatmul.mubr.bf16.gmra.mrb[0].mxu0 %v2515
      %v2636 = vpop.f32.mrb[0].mxu0
      %v2637 = vadd.f32 %v2463, %v2636
      %v2638 = vpop.f32.mrb[0].mxu0
      %v2639 = vpop.f32.mrb[0].mxu0
      %v2640 = vadd.f32 %v2463, %v2639
      %v2641 = vpop.f32.mrb[0].mxu0
      %2642 = vmatprep.mubr.bf16.mxu0 0
      %2643 = vmatmul.mubr.bf16.gmra.mrb[0].mxu0 %v2518
      %v2644 = vpop.f32.mrb[0].mxu0
      %v2645 = vadd.f32 %v2463, %v2644
      %v2646 = vpop.f32.mrb[0].mxu0
      %v2647 = vpop.f32.mrb[0].mxu0
      %v2648 = vadd.f32 %v2463, %v2647
      %v2649 = vpop.f32.mrb[0].mxu0
      %2650 = vmatprep.mubr.bf16.mxu0 0
      %2651 = vmatmul.mubr.bf16.gmra.mrb[0].mxu0 %v2521
      %v2652 = vpop.f32.mrb[0].mxu0
      %v2653 = vadd.f32 %v2463, %v2652
      %v2654 = vpop.f32.mrb[0].mxu0
      %v2655 = vpop.f32.mrb[0].mxu0
      %v2656 = vadd.f32 %v2463, %v2655
      %v2657 = vpop.f32.mrb[0].mxu0
      %2658 = vmatprep.mubr.bf16.mxu0 0
      %2659 = vmatmul.mubr.bf16.gmra.mrb[0].mxu0 %v2524
      %v2660 = vpop.f32.mrb[0].mxu0
      %v2661 = vadd.f32 %v2463, %v2660
      %v2662 = vpop.f32.mrb[0].mxu0
      %v2663 = vpop.f32.mrb[0].mxu0
      %v2664 = vadd.f32 %v2463, %v2663
      %v2665 = vpop.f32.mrb[0].mxu0
      %2666 = vmatprep.mubr.bf16.mxu0 0
      %2667 = vmatmul.mubr.bf16.gmra.mrb[0].mxu0 %v2527
      %v2668 = vpop.f32.mrb[0].mxu0
      %v2669 = vadd.f32 %v2463, %v2668
      %v2670 = vpop.f32.mrb[0].mxu0
      %v2671 = vpop.f32.mrb[0].mxu0
      %v2672 = vadd.f32 %v2463, %v2671
      %v2673 = vpop.f32.mrb[0].mxu0
      %2674 = vmatprep.mubr.bf16.mxu0 0
      %2675 = vmatmul.mubr.bf16.gmra.mrb[0].mxu0 %v2530
      %v2676 = vpop.f32.mrb[0].mxu0
      %v2677 = vadd.f32 %v2463, %v2676
      %v2678 = vpop.f32.mrb[0].mxu0
      %v2679 = vpop.f32.mrb[0].mxu0
      %v2680 = vadd.f32 %v2463, %v2679
      %v2681 = vpop.f32.mrb[0].mxu0
      %2682 = vmatprep.mubr.bf16.mxu0 0
      %2683 = vmatmul.mubr.bf16.gmra.mrb[0].mxu0 %v2533
      %v2684 = vpop.f32.mrb[0].mxu0
      %v2685 = vadd.f32 %v2463, %v2684
      %v2686 = vpop.f32.mrb[0].mxu0
      %v2687 = vpop.f32.mrb[0].mxu0
      %v2688 = vadd.f32 %v2463, %v2687
      %v2689 = vpop.f32.mrb[0].mxu0
      %2690 = vmatprep.mubr.bf16.mxu0 0
      %2691 = vmatmul.mubr.bf16.gmra.mrb[0].mxu0 %v2536
      %v2692 = vpop.f32.mrb[0].mxu0
      %v2693 = vadd.f32 %v2463, %v2692
      %v2694 = vpop.f32.mrb[0].mxu0
      %v2695 = vpop.f32.mrb[0].mxu0
      %v2696 = vadd.f32 %v2463, %v2695
      %v2697 = vpop.f32.mrb[0].mxu0
      %2698 = vdwg.mxu0
      %v2699 = vmax.f32 %v2573, 0.0
      %v2700 = vmax.f32 %v2576, 0.0
      %v2701 = vmax.f32 %v2581, 0.0
      %v2702 = vmax.f32 %v2584, 0.0
      %v2703 = vmax.f32 %v2589, 0.0
      %v2704 = vmax.f32 %v2592, 0.0
      %v2705 = vmax.f32 %v2597, 0.0
      %v2706 = vmax.f32 %v2600, 0.0
      %v2707 = vmax.f32 %v2605, 0.0
      %v2708 = vmax.f32 %v2608, 0.0
      %v2709 = vmax.f32 %v2613, 0.0
      %v2710 = vmax.f32 %v2616, 0.0
      %v2711 = vmax.f32 %v2621, 0.0
      %v2712 = vmax.f32 %v2624, 0.0
      %v2713 = vmax.f32 %v2629, 0.0
      %v2714 = vmax.f32 %v2632, 0.0
      %v2715 = vmax.f32 %v2637, 0.0
      %v2716 = vmax.f32 %v2640, 0.0
      %v2717 = vmax.f32 %v2645, 0.0
      %v2718 = vmax.f32 %v2648, 0.0
      %v2719 = vmax.f32 %v2653, 0.0
      %v2720 = vmax.f32 %v2656, 0.0
      %v2721 = vmax.f32 %v2661, 0.0
      %v2722 = vmax.f32 %v2664, 0.0
      %v2723 = vmax.f32 %v2669, 0.0
      %v2724 = vmax.f32 %v2672, 0.0
      %v2725 = vmax.f32 %v2677, 0.0
      %v2726 = vmax.f32 %v2680, 0.0
      %v2727 = vmax.f32 %v2685, 0.0
      %v2728 = vmax.f32 %v2688, 0.0
      %v2729 = vmax.f32 %v2693, 0.0
      %v2730 = vmax.f32 %v2696, 0.0
      %v2731 = vpack.c.bf16 %v2700, %v2699
      %v2732 = vpack.c.bf16 %v2702, %v2701
      %v2733 = vpack.c.bf16 %v2704, %v2703
      %v2734 = vpack.c.bf16 %v2706, %v2705
      %v2735 = vpack.c.bf16 %v2708, %v2707
      %v2736 = vpack.c.bf16 %v2710, %v2709
      %v2737 = vpack.c.bf16 %v2712, %v2711
      %v2738 = vpack.c.bf16 %v2714, %v2713
      %v2739 = vpack.c.bf16 %v2716, %v2715
      %v2740 = vpack.c.bf16 %v2718, %v2717
      %v2741 = vpack.c.bf16 %v2720, %v2719
      %v2742 = vpack.c.bf16 %v2722, %v2721
      %v2743 = vpack.c.bf16 %v2724, %v2723
      %v2744 = vpack.c.bf16 %v2726, %v2725
      %v2745 = vpack.c.bf16 %v2728, %v2727
      %v2746 = vpack.c.bf16 %v2730, %v2729
      %v2747 = vld [vmem:[%s7] sm:$0xff]
      %v2748 = vld [vmem:[%s7 + $0x8] sm:$0xff]
      %v2749 = vld [vmem:[%s7 + $0x10] sm:$0xff]
      %v2750 = vld [vmem:[%s7 + $0x18] sm:$0xf]
      %v2751 = vld [vmem:[%s7 + $0x1c] sm:$0xff]
      %v2752 = vld [vmem:[%s7 + $0x24] sm:$0xff]
      %v2753 = vld [vmem:[%s7 + $0x2c] sm:$0xff]
      %v2754 = vld [vmem:[%s7 + $0x34] sm:$0xf]
      %v2755 = vld [vmem:[%s7 + $0x38] sm:$0xff]
      %v2756 = vld [vmem:[%s7 + $0x40] sm:$0xff]
      %v2757 = vld [vmem:[%s7 + $0x48] sm:$0xff]
      %v2758 = vld [vmem:[%s7 + $0x50] sm:$0xf]
      %v2759 = vld [vmem:[%s7 + $0x54] sm:$0xff]
      %v2760 = vld [vmem:[%s7 + $0x5c] sm:$0xff]
      %v2761 = vld [vmem:[%s7 + $0x64] sm:$0xff]
      %v2762 = vld [vmem:[%s7 + $0x6c] sm:$0xf]
      %v2763 = vld [vmem:[%s7 + $0x70] sm:$0xff]
      %v2764 = vld [vmem:[%s7 + $0x78] sm:$0xff]
      %v2765 = vld [vmem:[%s7 + $0x80] sm:$0xff]
      %v2766 = vld [vmem:[%s7 + $0x88] sm:$0xf]
      %v2767 = vld [vmem:[%s7 + $0x8c] sm:$0xff]
      %v2768 = vld [vmem:[%s7 + $0x94] sm:$0xff]
      %v2769 = vld [vmem:[%s7 + $0x9c] sm:$0xff]
      %v2770 = vld [vmem:[%s7 + $0xa4] sm:$0xf]
      %v2771 = vld [vmem:[%s7 + $0xa8] sm:$0xff]
      %v2772 = vld [vmem:[%s7 + $0xb0] sm:$0xff]
      %v2773 = vld [vmem:[%s7 + $0xb8] sm:$0xff]
      %v2774 = vld [vmem:[%s7 + $0xc0] sm:$0xf]
      %v2775 = vld [vmem:[%s7 + $0xc4] sm:$0xff]
      %v2776 = vld [vmem:[%s7 + $0xcc] sm:$0xff]
      %v2777 = vld [vmem:[%s7 + $0xd4] sm:$0xff]
      %v2778 = vld [vmem:[%s7 + $0xdc] sm:$0xf]
      %v2779 = vld [vmem:[%s7 + $0xe0] sm:$0xff]
      %v2780 = vld [vmem:[%s7 + $0xe8] sm:$0xff]
      %v2781 = vld [vmem:[%s7 + $0xf0] sm:$0xff]
      %v2782 = vld [vmem:[%s7 + $0xf8] sm:$0xf]
      %v2783 = vld [vmem:[%s7 + $0xfc] sm:$0xff]
      %v2784 = vld [vmem:[%s7 + $0x104] sm:$0xff]
      %v2785 = vld [vmem:[%s7 + $0x10c] sm:$0xff]
      %v2786 = vld [vmem:[%s7 + $0x114] sm:$0xf]
      %v2787 = vld [vmem:[%s7 + $0x118] sm:$0xff]
      %v2788 = vld [vmem:[%s7 + $0x120] sm:$0xff]
      %v2789 = vld [vmem:[%s7 + $0x128] sm:$0xff]
      %v2790 = vld [vmem:[%s7 + $0x130] sm:$0xf]
      %v2791 = vld [vmem:[%s7 + $0x134] sm:$0xff]
      %v2792 = vld [vmem:[%s7 + $0x13c] sm:$0xff]
      %v2793 = vld [vmem:[%s7 + $0x144] sm:$0xff]
      %v2794 = vld [vmem:[%s7 + $0x14c] sm:$0xf]
      %v2795 = vld [vmem:[%s7 + $0x150] sm:$0xff]
      %v2796 = vld [vmem:[%s7 + $0x158] sm:$0xff]
      %v2797 = vld [vmem:[%s7 + $0x160] sm:$0xff]
      %v2798 = vld [vmem:[%s7 + $0x168] sm:$0xf]
      %v2799 = vld [vmem:[%s7 + $0x16c] sm:$0xff]
      %v2800 = vld [vmem:[%s7 + $0x174] sm:$0xff]
      %v2801 = vld [vmem:[%s7 + $0x17c] sm:$0xff]
      %v2802 = vld [vmem:[%s7 + $0x184] sm:$0xf]
      %v2803 = vld [vmem:[%s7 + $0x188] sm:$0xff]
      %v2804 = vld [vmem:[%s7 + $0x190] sm:$0xff]
      %v2805 = vld [vmem:[%s7 + $0x198] sm:$0xff]
      %v2806 = vld [vmem:[%s7 + $0x1a0] sm:$0xf]
      %v2807 = vld [vmem:[%s7 + $0x1a4] sm:$0xff]
      %v2808 = vld [vmem:[%s7 + $0x1ac] sm:$0xff]
      %v2809 = vld [vmem:[%s7 + $0x1b4] sm:$0xff]
      %v2810 = vld [vmem:[%s7 + $0x1bc] sm:$0xf]
      %v2811 = vld [vmem:[%s8] sm:$0xff]
      %v2813 = vlaneseq
      %v2814 = vshrl.u32 %v2813, 7
      %v2815 = vsub.s32 0, %v2814
      %v2816 = vrot.slane %v2811, %v2815
      %v2817 = vlaneseq
      %v2818 = vshrl.u32 %v2817, 7
      %v2819 = vsub.s32 1, %v2818
      %v2820 = vrot.slane %v2811, %v2819
      %v2821 = vlaneseq
      %v2822 = vshrl.u32 %v2821, 7
      %v2823 = vsub.s32 2, %v2822
      %v2824 = vrot.slane %v2811, %v2823
      %v2825 = vlaneseq
      %v2826 = vshrl.u32 %v2825, 7
      %v2827 = vsub.s32 3, %v2826
      %v2828 = vrot.slane %v2811, %v2827
      %v2829 = vlaneseq
      %v2830 = vshrl.u32 %v2829, 7
      %v2831 = vsub.s32 4, %v2830
      %v2832 = vrot.slane %v2811, %v2831
      %v2833 = vlaneseq
      %v2834 = vshrl.u32 %v2833, 7
      %v2835 = vsub.s32 5, %v2834
      %v2836 = vrot.slane %v2811, %v2835
      %v2837 = vlaneseq
      %v2838 = vshrl.u32 %v2837, 7
      %v2839 = vsub.s32 6, %v2838
      %v2840 = vrot.slane %v2811, %v2839
      %v2912 = vunpack.c.l.b16 %v2747
      %v2913 = vunpack.c.h.b16 %v2747
      %v2914 = vunpack.c.l.b16 %v2748
      %v2915 = vunpack.c.h.b16 %v2748
      %v2916 = vunpack.c.l.b16 %v2749
      %v2917 = vunpack.c.h.b16 %v2749
      %v2918 = vunpack.c.l.b16 %v2750
      %v2919 = vunpack.c.l.b16 %v2751
      %v2920 = vunpack.c.h.b16 %v2751
      %v2921 = vunpack.c.l.b16 %v2752
      %v2922 = vunpack.c.h.b16 %v2752
      %v2923 = vunpack.c.l.b16 %v2753
      %v2924 = vunpack.c.h.b16 %v2753
      %v2925 = vunpack.c.l.b16 %v2754
      %v2926 = vunpack.c.l.b16 %v2755
      %v2927 = vunpack.c.h.b16 %v2755
      %v2928 = vunpack.c.l.b16 %v2756
      %v2929 = vunpack.c.h.b16 %v2756
      %v2930 = vunpack.c.l.b16 %v2757
      %v2931 = vunpack.c.h.b16 %v2757
      %v2932 = vunpack.c.l.b16 %v2758
      %v2933 = vunpack.c.l.b16 %v2759
      %v2934 = vunpack.c.h.b16 %v2759
      %v2935 = vunpack.c.l.b16 %v2760
      %v2936 = vunpack.c.h.b16 %v2760
      %v2937 = vunpack.c.l.b16 %v2761
      %v2938 = vunpack.c.h.b16 %v2761
      %v2939 = vunpack.c.l.b16 %v2762
      %v2940 = vunpack.c.l.b16 %v2763
      %v2941 = vunpack.c.h.b16 %v2763
      %v2942 = vunpack.c.l.b16 %v2764
      %v2943 = vunpack.c.h.b16 %v2764
      %v2944 = vunpack.c.l.b16 %v2765
      %v2945 = vunpack.c.h.b16 %v2765
      %v2946 = vunpack.c.l.b16 %v2766
      %v2947 = vunpack.c.l.b16 %v2767
      %v2948 = vunpack.c.h.b16 %v2767
      %v2949 = vunpack.c.l.b16 %v2768
      %v2950 = vunpack.c.h.b16 %v2768
      %v2951 = vunpack.c.l.b16 %v2769
      %v2952 = vunpack.c.h.b16 %v2769
      %v2953 = vunpack.c.l.b16 %v2770
      %v2954 = vunpack.c.l.b16 %v2771
      %v2955 = vunpack.c.h.b16 %v2771
      %v2956 = vunpack.c.l.b16 %v2772
      %v2957 = vunpack.c.h.b16 %v2772
      %v2958 = vunpack.c.l.b16 %v2773
      %v2959 = vunpack.c.h.b16 %v2773
      %v2960 = vunpack.c.l.b16 %v2774
      %v2961 = vunpack.c.l.b16 %v2775
      %v2962 = vunpack.c.h.b16 %v2775
      %v2963 = vunpack.c.l.b16 %v2776
      %v2964 = vunpack.c.h.b16 %v2776
      %v2965 = vunpack.c.l.b16 %v2777
      %v2966 = vunpack.c.h.b16 %v2777
      %v2967 = vunpack.c.l.b16 %v2778
      %v2968 = vunpack.c.l.b16 %v2779
      %v2969 = vunpack.c.h.b16 %v2779
      %v2970 = vunpack.c.l.b16 %v2780
      %v2971 = vunpack.c.h.b16 %v2780
      %v2972 = vunpack.c.l.b16 %v2781
      %v2973 = vunpack.c.h.b16 %v2781
      %v2974 = vunpack.c.l.b16 %v2782
      %v2975 = vunpack.c.l.b16 %v2783
      %v2976 = vunpack.c.h.b16 %v2783
      %v2977 = vunpack.c.l.b16 %v2784
      %v2978 = vunpack.c.h.b16 %v2784
      %v2979 = vunpack.c.l.b16 %v2785
      %v2980 = vunpack.c.h.b16 %v2785
      %v2981 = vunpack.c.l.b16 %v2786
      %v2982 = vunpack.c.l.b16 %v2787
      %v2983 = vunpack.c.h.b16 %v2787
      %v2984 = vunpack.c.l.b16 %v2788
      %v2985 = vunpack.c.h.b16 %v2788
      %v2986 = vunpack.c.l.b16 %v2789
      %v2987 = vunpack.c.h.b16 %v2789
      %v2988 = vunpack.c.l.b16 %v2790
      %v2989 = vunpack.c.l.b16 %v2791
      %v2990 = vunpack.c.h.b16 %v2791
      %v2991 = vunpack.c.l.b16 %v2792
      %v2992 = vunpack.c.h.b16 %v2792
      %v2993 = vunpack.c.l.b16 %v2793
      %v2994 = vunpack.c.h.b16 %v2793
      %v2995 = vunpack.c.l.b16 %v2794
      %v2996 = vunpack.c.l.b16 %v2795
      %v2997 = vunpack.c.h.b16 %v2795
      %v2998 = vunpack.c.l.b16 %v2796
      %v2999 = vunpack.c.h.b16 %v2796
      %v3000 = vunpack.c.l.b16 %v2797
      %v3001 = vunpack.c.h.b16 %v2797
      %v3002 = vunpack.c.l.b16 %v2798
      %v3003 = vunpack.c.l.b16 %v2799
      %v3004 = vunpack.c.h.b16 %v2799
      %v3005 = vunpack.c.l.b16 %v2800
      %v3006 = vunpack.c.h.b16 %v2800
      %v3007 = vunpack.c.l.b16 %v2801
      %v3008 = vunpack.c.h.b16 %v2801
      %v3009 = vunpack.c.l.b16 %v2802
      %v3010 = vunpack.c.l.b16 %v2803
      %v3011 = vunpack.c.h.b16 %v2803
      %v3012 = vunpack.c.l.b16 %v2804
      %v3013 = vunpack.c.h.b16 %v2804
      %v3014 = vunpack.c.l.b16 %v2805
      %v3015 = vunpack.c.h.b16 %v2805
      %v3016 = vunpack.c.l.b16 %v2806
      %v3017 = vunpack.c.l.b16 %v2807
      %v3018 = vunpack.c.h.b16 %v2807
      %v3019 = vunpack.c.l.b16 %v2808
      %v3020 = vunpack.c.h.b16 %v2808
      %v3021 = vunpack.c.l.b16 %v2809
      %v3022 = vunpack.c.h.b16 %v2809
      %v3023 = vunpack.c.l.b16 %v2810
      %v3024 = vpack.c.b16 %v2919, %v2912
      %v3025 = vpack.c.b16 %v2920, %v2913
      %v3026 = vpack.c.b16 %v2921, %v2914
      %v3027 = vpack.c.b16 %v2922, %v2915
      %v3028 = vpack.c.b16 %v2923, %v2916
      %v3029 = vpack.c.b16 %v2924, %v2917
      %v3030 = vpack.c.b16 %v2925, %v2918
      %v3031 = vpack.c.b16 %v2933, %v2926
      %v3032 = vpack.c.b16 %v2934, %v2927
      %v3033 = vpack.c.b16 %v2935, %v2928
      %v3034 = vpack.c.b16 %v2936, %v2929
      %v3035 = vpack.c.b16 %v2937, %v2930
      %v3036 = vpack.c.b16 %v2938, %v2931
      %v3037 = vpack.c.b16 %v2939, %v2932
      %v3038 = vpack.c.b16 %v2947, %v2940
      %v3039 = vpack.c.b16 %v2948, %v2941
      %v3040 = vpack.c.b16 %v2949, %v2942
      %v3041 = vpack.c.b16 %v2950, %v2943
      %v3042 = vpack.c.b16 %v2951, %v2944
      %v3043 = vpack.c.b16 %v2952, %v2945
      %v3044 = vpack.c.b16 %v2953, %v2946
      %v3045 = vpack.c.b16 %v2961, %v2954
      %v3046 = vpack.c.b16 %v2962, %v2955
      %v3047 = vpack.c.b16 %v2963, %v2956
      %v3048 = vpack.c.b16 %v2964, %v2957
      %v3049 = vpack.c.b16 %v2965, %v2958
      %v3050 = vpack.c.b16 %v2966, %v2959
      %v3051 = vpack.c.b16 %v2967, %v2960
      %v3052 = vpack.c.b16 %v2975, %v2968
      %v3053 = vpack.c.b16 %v2976, %v2969
      %v3054 = vpack.c.b16 %v2977, %v2970
      %v3055 = vpack.c.b16 %v2978, %v2971
      %v3056 = vpack.c.b16 %v2979, %v2972
      %v3057 = vpack.c.b16 %v2980, %v2973
      %v3058 = vpack.c.b16 %v2981, %v2974
      %v3059 = vpack.c.b16 %v2989, %v2982
      %v3060 = vpack.c.b16 %v2990, %v2983
      %v3061 = vpack.c.b16 %v2991, %v2984
      %v3062 = vpack.c.b16 %v2992, %v2985
      %v3063 = vpack.c.b16 %v2993, %v2986
      %v3064 = vpack.c.b16 %v2994, %v2987
      %v3065 = vpack.c.b16 %v2995, %v2988
      %v3066 = vpack.c.b16 %v3003, %v2996
      %v3067 = vpack.c.b16 %v3004, %v2997
      %v3068 = vpack.c.b16 %v3005, %v2998
      %v3069 = vpack.c.b16 %v3006, %v2999
      %v3070 = vpack.c.b16 %v3007, %v3000
      %v3071 = vpack.c.b16 %v3008, %v3001
      %v3072 = vpack.c.b16 %v3009, %v3002
      %v3073 = vpack.c.b16 %v3017, %v3010
      %v3074 = vpack.c.b16 %v3018, %v3011
      %v3075 = vpack.c.b16 %v3019, %v3012
      %v3076 = vpack.c.b16 %v3020, %v3013
      %v3077 = vpack.c.b16 %v3021, %v3014
      %v3078 = vpack.c.b16 %v3022, %v3015
      %v3079 = vpack.c.b16 %v3023, %v3016
      %3136 = vmatprep.subr.bf16.mxu0 %v3025
      %3137 = vmatpush1.bf16.msra.mxu0 %v3024
      %3138 = vmatprep.subr.bf16.mxu0 %v3032
      %3139 = vmatpush1.bf16.msra.mxu0 %v3031
      %3140 = vmatprep.subr.bf16.mxu0 %v3039
      %3141 = vmatpush1.bf16.msra.mxu0 %v3038
      %3142 = vmatprep.subr.bf16.mxu0 %v3046
      %3143 = vmatpush1.bf16.msra.mxu0 %v3045
      %3144 = vmatprep.subr.bf16.mxu0 %v3053
      %3145 = vmatpush1.bf16.msra.mxu0 %v3052
      %3146 = vmatprep.subr.bf16.mxu0 %v3060
      %3147 = vmatpush1.bf16.msra.mxu0 %v3059
      %3148 = vmatprep.subr.bf16.mxu0 %v3067
      %3149 = vmatpush1.bf16.msra.mxu0 %v3066
      %3150 = vmatprep.subr.bf16.mxu0 %v3074
      %3151 = vmatpush1.bf16.msra.mxu0 %v3073
      %3152 = vmatprep.subr.bf16.mxu0 0
      %3153 = vmatpush1.bf16.msra.mxu0 0
      %3154 = vmatprep.subr.bf16.mxu0 0
      %3155 = vmatpush1.bf16.msra.mxu0 0
      %3156 = vmatprep.subr.bf16.mxu0 0
      %3157 = vmatpush1.bf16.msra.mxu0 0
      %3158 = vmatprep.subr.bf16.mxu0 0
      %3159 = vmatpush1.bf16.msra.mxu0 0
      %3160 = vmatprep.subr.bf16.mxu0 0
      %3161 = vmatpush1.bf16.msra.mxu0 0
      %3162 = vmatprep.subr.bf16.mxu0 0
      %3163 = vmatpush1.bf16.msra.mxu0 0
      %3164 = vmatprep.subr.bf16.mxu0 0
      %3165 = vmatpush1.bf16.msra.mxu0 0
      %3166 = vmatprep.subr.bf16.mxu0 0
      %3167 = vmatpush1.bf16.msra.mxu0 0
      %3168 = vmatprep.mubr.bf16.mxu0 0
      %3169 = vmatmul.mubr.bf16.gmra.mrb[0].mxu0 %v2731
      %v3170 = vpop.f32.mrb[0].mxu0
      %v3171 = vadd.f32 %v2816, %v3170
      %v3172 = vpop.f32.mrb[0].mxu0
      %v3173 = vadd.f32 %v2820, %v3172
      %v3174 = vpop.f32.mrb[0].mxu0
      %v3175 = vadd.f32 %v2816, %v3174
      %v3176 = vpop.f32.mrb[0].mxu0
      %v3177 = vadd.f32 %v2820, %v3176
      %3178 = vmatprep.mubr.bf16.mxu0 0
      %3179 = vmatmul.mubr.bf16.gmra.mrb[0].mxu0 %v2732
      %v3180 = vpop.f32.mrb[0].mxu0
      %v3181 = vadd.f32 %v2816, %v3180
      %v3182 = vpop.f32.mrb[0].mxu0
      %v3183 = vadd.f32 %v2820, %v3182
      %v3184 = vpop.f32.mrb[0].mxu0
      %v3185 = vadd.f32 %v2816, %v3184
      %v3186 = vpop.f32.mrb[0].mxu0
      %v3187 = vadd.f32 %v2820, %v3186
      %3188 = vmatprep.mubr.bf16.mxu0 0
      %3189 = vmatmul.mubr.bf16.gmra.mrb[0].mxu0 %v2733
      %v3190 = vpop.f32.mrb[0].mxu0
      %v3191 = vadd.f32 %v2816, %v3190
      %v3192 = vpop.f32.mrb[0].mxu0
      %v3193 = vadd.f32 %v2820, %v3192
      %v3194 = vpop.f32.mrb[0].mxu0
      %v3195 = vadd.f32 %v2816, %v3194
      %v3196 = vpop.f32.mrb[0].mxu0
      %v3197 = vadd.f32 %v2820, %v3196
      %3198 = vmatprep.mubr.bf16.mxu0 0
      %3199 = vmatmul.mubr.bf16.gmra.mrb[0].mxu0 %v2734
      %v3200 = vpop.f32.mrb[0].mxu0
      %v3201 = vadd.f32 %v2816, %v3200
      %v3202 = vpop.f32.mrb[0].mxu0
      %v3203 = vadd.f32 %v2820, %v3202
      %v3204 = vpop.f32.mrb[0].mxu0
      %v3205 = vadd.f32 %v2816, %v3204
      %v3206 = vpop.f32.mrb[0].mxu0
      %v3207 = vadd.f32 %v2820, %v3206
      %3208 = vmatprep.mubr.bf16.mxu0 0
      %3209 = vmatmul.mubr.bf16.gmra.mrb[0].mxu0 %v2735
      %v3210 = vpop.f32.mrb[0].mxu0
      %v3211 = vadd.f32 %v2816, %v3210
      %v3212 = vpop.f32.mrb[0].mxu0
      %v3213 = vadd.f32 %v2820, %v3212
      %v3214 = vpop.f32.mrb[0].mxu0
      %v3215 = vadd.f32 %v2816, %v3214
      %v3216 = vpop.f32.mrb[0].mxu0
      %v3217 = vadd.f32 %v2820, %v3216
      %3218 = vmatprep.mubr.bf16.mxu0 0
      %3219 = vmatmul.mubr.bf16.gmra.mrb[0].mxu0 %v2736
      %v3220 = vpop.f32.mrb[0].mxu0
      %v3221 = vadd.f32 %v2816, %v3220
      %v3222 = vpop.f32.mrb[0].mxu0
      %v3223 = vadd.f32 %v2820, %v3222
      %v3224 = vpop.f32.mrb[0].mxu0
      %v3225 = vadd.f32 %v2816, %v3224
      %v3226 = vpop.f32.mrb[0].mxu0
      %v3227 = vadd.f32 %v2820, %v3226
      %3228 = vmatprep.mubr.bf16.mxu0 0
      %3229 = vmatmul.mubr.bf16.gmra.mrb[0].mxu0 %v2737
      %v3230 = vpop.f32.mrb[0].mxu0
      %v3231 = vadd.f32 %v2816, %v3230
      %v3232 = vpop.f32.mrb[0].mxu0
      %v3233 = vadd.f32 %v2820, %v3232
      %v3234 = vpop.f32.mrb[0].mxu0
      %v3235 = vadd.f32 %v2816, %v3234
      %v3236 = vpop.f32.mrb[0].mxu0
      %v3237 = vadd.f32 %v2820, %v3236
      %3238 = vmatprep.mubr.bf16.mxu0 0
      %3239 = vmatmul.mubr.bf16.gmra.mrb[0].mxu0 %v2738
      %v3240 = vpop.f32.mrb[0].mxu0
      %v3241 = vadd.f32 %v2816, %v3240
      %v3242 = vpop.f32.mrb[0].mxu0
      %v3243 = vadd.f32 %v2820, %v3242
      %v3244 = vpop.f32.mrb[0].mxu0
      %v3245 = vadd.f32 %v2816, %v3244
      %v3246 = vpop.f32.mrb[0].mxu0
      %v3247 = vadd.f32 %v2820, %v3246
      %3248 = vmatprep.mubr.bf16.mxu0 0
      %3249 = vmatmul.mubr.bf16.gmra.mrb[0].mxu0 %v2739
      %v3250 = vpop.f32.mrb[0].mxu0
      %v3251 = vadd.f32 %v2816, %v3250
      %v3252 = vpop.f32.mrb[0].mxu0
      %v3253 = vadd.f32 %v2820, %v3252
      %v3254 = vpop.f32.mrb[0].mxu0
      %v3255 = vadd.f32 %v2816, %v3254
      %v3256 = vpop.f32.mrb[0].mxu0
      %v3257 = vadd.f32 %v2820, %v3256
      %3258 = vmatprep.mubr.bf16.mxu0 0
      %3259 = vmatmul.mubr.bf16.gmra.mrb[0].mxu0 %v2740
      %v3260 = vpop.f32.mrb[0].mxu0
      %v3261 = vadd.f32 %v2816, %v3260
      %v3262 = vpop.f32.mrb[0].mxu0
      %v3263 = vadd.f32 %v2820, %v3262
      %v3264 = vpop.f32.mrb[0].mxu0
      %v3265 = vadd.f32 %v2816, %v3264
      %v3266 = vpop.f32.mrb[0].mxu0
      %v3267 = vadd.f32 %v2820, %v3266
      %3268 = vmatprep.mubr.bf16.mxu0 0
      %3269 = vmatmul.mubr.bf16.gmra.mrb[0].mxu0 %v2741
      %v3270 = vpop.f32.mrb[0].mxu0
      %v3271 = vadd.f32 %v2816, %v3270
      %v3272 = vpop.f32.mrb[0].mxu0
      %v3273 = vadd.f32 %v2820, %v3272
      %v3274 = vpop.f32.mrb[0].mxu0
      %v3275 = vadd.f32 %v2816, %v3274
      %v3276 = vpop.f32.mrb[0].mxu0
      %v3277 = vadd.f32 %v2820, %v3276
      %3278 = vmatprep.mubr.bf16.mxu0 0
      %3279 = vmatmul.mubr.bf16.gmra.mrb[0].mxu0 %v2742
      %v3280 = vpop.f32.mrb[0].mxu0
      %v3281 = vadd.f32 %v2816, %v3280
      %v3282 = vpop.f32.mrb[0].mxu0
      %v3283 = vadd.f32 %v2820, %v3282
      %v3284 = vpop.f32.mrb[0].mxu0
      %v3285 = vadd.f32 %v2816, %v3284
      %v3286 = vpop.f32.mrb[0].mxu0
      %v3287 = vadd.f32 %v2820, %v3286
      %3288 = vmatprep.mubr.bf16.mxu0 0
      %3289 = vmatmul.mubr.bf16.gmra.mrb[0].mxu0 %v2743
      %v3290 = vpop.f32.mrb[0].mxu0
      %v3291 = vadd.f32 %v2816, %v3290
      %v3292 = vpop.f32.mrb[0].mxu0
      %v3293 = vadd.f32 %v2820, %v3292
      %v3294 = vpop.f32.mrb[0].mxu0
      %v3295 = vadd.f32 %v2816, %v3294
      %v3296 = vpop.f32.mrb[0].mxu0
      %v3297 = vadd.f32 %v2820, %v3296
      %3298 = vmatprep.mubr.bf16.mxu0 0
      %3299 = vmatmul.mubr.bf16.gmra.mrb[0].mxu0 %v2744
      %v3300 = vpop.f32.mrb[0].mxu0
      %v3301 = vadd.f32 %v2816, %v3300
      %v3302 = vpop.f32.mrb[0].mxu0
      %v3303 = vadd.f32 %v2820, %v3302
      %v3304 = vpop.f32.mrb[0].mxu0
      %v3305 = vadd.f32 %v2816, %v3304
      %v3306 = vpop.f32.mrb[0].mxu0
      %v3307 = vadd.f32 %v2820, %v3306
      %3308 = vmatprep.mubr.bf16.mxu0 0
      %3309 = vmatmul.mubr.bf16.gmra.mrb[0].mxu0 %v2745
      %v3310 = vpop.f32.mrb[0].mxu0
      %v3311 = vadd.f32 %v2816, %v3310
      %v3312 = vpop.f32.mrb[0].mxu0
      %v3313 = vadd.f32 %v2820, %v3312
      %v3314 = vpop.f32.mrb[0].mxu0
      %v3315 = vadd.f32 %v2816, %v3314
      %v3316 = vpop.f32.mrb[0].mxu0
      %v3317 = vadd.f32 %v2820, %v3316
      %3318 = vmatprep.mubr.bf16.mxu0 0
      %3319 = vmatmul.mubr.bf16.gmra.mrb[0].mxu0 %v2746
      %v3320 = vpop.f32.mrb[0].mxu0
      %v3321 = vadd.f32 %v2816, %v3320
      %v3322 = vpop.f32.mrb[0].mxu0
      %v3323 = vadd.f32 %v2820, %v3322
      %v3324 = vpop.f32.mrb[0].mxu0
      %v3325 = vadd.f32 %v2816, %v3324
      %v3326 = vpop.f32.mrb[0].mxu0
      %v3327 = vadd.f32 %v2820, %v3326
      %3328 = vdwg.mxu0
      %3329 = vmatprep.subr.bf16.mxu0 %v3027
      %3330 = vmatpush1.bf16.msra.mxu0 %v3026
      %3331 = vmatprep.subr.bf16.mxu0 %v3034
      %3332 = vmatpush1.bf16.msra.mxu0 %v3033
      %3333 = vmatprep.subr.bf16.mxu0 %v3041
      %3334 = vmatpush1.bf16.msra.mxu0 %v3040
      %3335 = vmatprep.subr.bf16.mxu0 %v3048
      %3336 = vmatpush1.bf16.msra.mxu0 %v3047
      %3337 = vmatprep.subr.bf16.mxu0 %v3055
      %3338 = vmatpush1.bf16.msra.mxu0 %v3054
      %3339 = vmatprep.subr.bf16.mxu0 %v3062
      %3340 = vmatpush1.bf16.msra.mxu0 %v3061
      %3341 = vmatprep.subr.bf16.mxu0 %v3069
      %3342 = vmatpush1.bf16.msra.mxu0 %v3068
      %3343 = vmatprep.subr.bf16.mxu0 %v3076
      %3344 = vmatpush1.bf16.msra.mxu0 %v3075
      %3345 = vmatprep.subr.bf16.mxu0 0
      %3346 = vmatpush1.bf16.msra.mxu0 0
      %3347 = vmatprep.subr.bf16.mxu0 0
      %3348 = vmatpush1.bf16.msra.mxu0 0
      %3349 = vmatprep.subr.bf16.mxu0 0
      %3350 = vmatpush1.bf16.msra.mxu0 0
      %3351 = vmatprep.subr.bf16.mxu0 0
      %3352 = vmatpush1.bf16.msra.mxu0 0
      %3353 = vmatprep.subr.bf16.mxu0 0
      %3354 = vmatpush1.bf16.msra.mxu0 0
      %3355 = vmatprep.subr.bf16.mxu0 0
      %3356 = vmatpush1.bf16.msra.mxu0 0
      %3357 = vmatprep.subr.bf16.mxu0 0
      %3358 = vmatpush1.bf16.msra.mxu0 0
      %3359 = vmatprep.subr.bf16.mxu0 0
      %3360 = vmatpush1.bf16.msra.mxu0 0
      %3361 = vmatprep.mubr.bf16.mxu0 0
      %3362 = vmatmul.mubr.bf16.gmra.mrb[0].mxu0 %v2731
      %v3363 = vpop.f32.mrb[0].mxu0
      %v3364 = vadd.f32 %v2824, %v3363
      %v3365 = vpop.f32.mrb[0].mxu0
      %v3366 = vadd.f32 %v2828, %v3365
      %v3367 = vpop.f32.mrb[0].mxu0
      %v3368 = vadd.f32 %v2824, %v3367
      %v3369 = vpop.f32.mrb[0].mxu0
      %v3370 = vadd.f32 %v2828, %v3369
      %3371 = vmatprep.mubr.bf16.mxu0 0
      %3372 = vmatmul.mubr.bf16.gmra.mrb[0].mxu0 %v2732
      %v3373 = vpop.f32.mrb[0].mxu0
      %v3374 = vadd.f32 %v2824, %v3373
      %v3375 = vpop.f32.mrb[0].mxu0
      %v3376 = vadd.f32 %v2828, %v3375
      %v3377 = vpop.f32.mrb[0].mxu0
      %v3378 = vadd.f32 %v2824, %v3377
      %v3379 = vpop.f32.mrb[0].mxu0
      %v3380 = vadd.f32 %v2828, %v3379
      %3381 = vmatprep.mubr.bf16.mxu0 0
      %3382 = vmatmul.mubr.bf16.gmra.mrb[0].mxu0 %v2733
      %v3383 = vpop.f32.mrb[0].mxu0
      %v3384 = vadd.f32 %v2824, %v3383
      %v3385 = vpop.f32.mrb[0].mxu0
      %v3386 = vadd.f32 %v2828, %v3385
      %v3387 = vpop.f32.mrb[0].mxu0
      %v3388 = vadd.f32 %v2824, %v3387
      %v3389 = vpop.f32.mrb[0].mxu0
      %v3390 = vadd.f32 %v2828, %v3389
      %3391 = vmatprep.mubr.bf16.mxu0 0
      %3392 = vmatmul.mubr.bf16.gmra.mrb[0].mxu0 %v2734
      %v3393 = vpop.f32.mrb[0].mxu0
      %v3394 = vadd.f32 %v2824, %v3393
      %v3395 = vpop.f32.mrb[0].mxu0
      %v3396 = vadd.f32 %v2828, %v3395
      %v3397 = vpop.f32.mrb[0].mxu0
      %v3398 = vadd.f32 %v2824, %v3397
      %v3399 = vpop.f32.mrb[0].mxu0
      %v3400 = vadd.f32 %v2828, %v3399
      %3401 = vmatprep.mubr.bf16.mxu0 0
      %3402 = vmatmul.mubr.bf16.gmra.mrb[0].mxu0 %v2735
      %v3403 = vpop.f32.mrb[0].mxu0
      %v3404 = vadd.f32 %v2824, %v3403
      %v3405 = vpop.f32.mrb[0].mxu0
      %v3406 = vadd.f32 %v2828, %v3405
      %v3407 = vpop.f32.mrb[0].mxu0
      %v3408 = vadd.f32 %v2824, %v3407
      %v3409 = vpop.f32.mrb[0].mxu0
      %v3410 = vadd.f32 %v2828, %v3409
      %3411 = vmatprep.mubr.bf16.mxu0 0
      %3412 = vmatmul.mubr.bf16.gmra.mrb[0].mxu0 %v2736
      %v3413 = vpop.f32.mrb[0].mxu0
      %v3414 = vadd.f32 %v2824, %v3413
      %v3415 = vpop.f32.mrb[0].mxu0
      %v3416 = vadd.f32 %v2828, %v3415
      %v3417 = vpop.f32.mrb[0].mxu0
      %v3418 = vadd.f32 %v2824, %v3417
      %v3419 = vpop.f32.mrb[0].mxu0
      %v3420 = vadd.f32 %v2828, %v3419
      %3421 = vmatprep.mubr.bf16.mxu0 0
      %3422 = vmatmul.mubr.bf16.gmra.mrb[0].mxu0 %v2737
      %v3423 = vpop.f32.mrb[0].mxu0
      %v3424 = vadd.f32 %v2824, %v3423
      %v3425 = vpop.f32.mrb[0].mxu0
      %v3426 = vadd.f32 %v2828, %v3425
      %v3427 = vpop.f32.mrb[0].mxu0
      %v3428 = vadd.f32 %v2824, %v3427
      %v3429 = vpop.f32.mrb[0].mxu0
      %v3430 = vadd.f32 %v2828, %v3429
      %3431 = vmatprep.mubr.bf16.mxu0 0
      %3432 = vmatmul.mubr.bf16.gmra.mrb[0].mxu0 %v2738
      %v3433 = vpop.f32.mrb[0].mxu0
      %v3434 = vadd.f32 %v2824, %v3433
      %v3435 = vpop.f32.mrb[0].mxu0
      %v3436 = vadd.f32 %v2828, %v3435
      %v3437 = vpop.f32.mrb[0].mxu0
      %v3438 = vadd.f32 %v2824, %v3437
      %v3439 = vpop.f32.mrb[0].mxu0
      %v3440 = vadd.f32 %v2828, %v3439
      %3441 = vmatprep.mubr.bf16.mxu0 0
      %3442 = vmatmul.mubr.bf16.gmra.mrb[0].mxu0 %v2739
      %v3443 = vpop.f32.mrb[0].mxu0
      %v3444 = vadd.f32 %v2824, %v3443
      %v3445 = vpop.f32.mrb[0].mxu0
      %v3446 = vadd.f32 %v2828, %v3445
      %v3447 = vpop.f32.mrb[0].mxu0
      %v3448 = vadd.f32 %v2824, %v3447
      %v3449 = vpop.f32.mrb[0].mxu0
      %v3450 = vadd.f32 %v2828, %v3449
      %3451 = vmatprep.mubr.bf16.mxu0 0
      %3452 = vmatmul.mubr.bf16.gmra.mrb[0].mxu0 %v2740
      %v3453 = vpop.f32.mrb[0].mxu0
      %v3454 = vadd.f32 %v2824, %v3453
      %v3455 = vpop.f32.mrb[0].mxu0
      %v3456 = vadd.f32 %v2828, %v3455
      %v3457 = vpop.f32.mrb[0].mxu0
      %v3458 = vadd.f32 %v2824, %v3457
      %v3459 = vpop.f32.mrb[0].mxu0
      %v3460 = vadd.f32 %v2828, %v3459
      %3461 = vmatprep.mubr.bf16.mxu0 0
      %3462 = vmatmul.mubr.bf16.gmra.mrb[0].mxu0 %v2741
      %v3463 = vpop.f32.mrb[0].mxu0
      %v3464 = vadd.f32 %v2824, %v3463
      %v3465 = vpop.f32.mrb[0].mxu0
      %v3466 = vadd.f32 %v2828, %v3465
      %v3467 = vpop.f32.mrb[0].mxu0
      %v3468 = vadd.f32 %v2824, %v3467
      %v3469 = vpop.f32.mrb[0].mxu0
      %v3470 = vadd.f32 %v2828, %v3469
      %3471 = vmatprep.mubr.bf16.mxu0 0
      %3472 = vmatmul.mubr.bf16.gmra.mrb[0].mxu0 %v2742
      %v3473 = vpop.f32.mrb[0].mxu0
      %v3474 = vadd.f32 %v2824, %v3473
      %v3475 = vpop.f32.mrb[0].mxu0
      %v3476 = vadd.f32 %v2828, %v3475
      %v3477 = vpop.f32.mrb[0].mxu0
      %v3478 = vadd.f32 %v2824, %v3477
      %v3479 = vpop.f32.mrb[0].mxu0
      %v3480 = vadd.f32 %v2828, %v3479
      %3481 = vmatprep.mubr.bf16.mxu0 0
      %3482 = vmatmul.mubr.bf16.gmra.mrb[0].mxu0 %v2743
      %v3483 = vpop.f32.mrb[0].mxu0
      %v3484 = vadd.f32 %v2824, %v3483
      %v3485 = vpop.f32.mrb[0].mxu0
      %v3486 = vadd.f32 %v2828, %v3485
      %v3487 = vpop.f32.mrb[0].mxu0
      %v3488 = vadd.f32 %v2824, %v3487
      %v3489 = vpop.f32.mrb[0].mxu0
      %v3490 = vadd.f32 %v2828, %v3489
      %3491 = vmatprep.mubr.bf16.mxu0 0
      %3492 = vmatmul.mubr.bf16.gmra.mrb[0].mxu0 %v2744
      %v3493 = vpop.f32.mrb[0].mxu0
      %v3494 = vadd.f32 %v2824, %v3493
      %v3495 = vpop.f32.mrb[0].mxu0
      %v3496 = vadd.f32 %v2828, %v3495
      %v3497 = vpop.f32.mrb[0].mxu0
      %v3498 = vadd.f32 %v2824, %v3497
      %v3499 = vpop.f32.mrb[0].mxu0
      %v3500 = vadd.f32 %v2828, %v3499
      %3501 = vmatprep.mubr.bf16.mxu0 0
      %3502 = vmatmul.mubr.bf16.gmra.mrb[0].mxu0 %v2745
      %v3503 = vpop.f32.mrb[0].mxu0
      %v3504 = vadd.f32 %v2824, %v3503
      %v3505 = vpop.f32.mrb[0].mxu0
      %v3506 = vadd.f32 %v2828, %v3505
      %v3507 = vpop.f32.mrb[0].mxu0
      %v3508 = vadd.f32 %v2824, %v3507
      %v3509 = vpop.f32.mrb[0].mxu0
      %v3510 = vadd.f32 %v2828, %v3509
      %3511 = vmatprep.mubr.bf16.mxu0 0
      %3512 = vmatmul.mubr.bf16.gmra.mrb[0].mxu0 %v2746
      %v3513 = vpop.f32.mrb[0].mxu0
      %v3514 = vadd.f32 %v2824, %v3513
      %v3515 = vpop.f32.mrb[0].mxu0
      %v3516 = vadd.f32 %v2828, %v3515
      %v3517 = vpop.f32.mrb[0].mxu0
      %v3518 = vadd.f32 %v2824, %v3517
      %v3519 = vpop.f32.mrb[0].mxu0
      %v3520 = vadd.f32 %v2828, %v3519
      %3521 = vdwg.mxu0
      %3522 = vmatprep.subr.bf16.mxu0 %v3029
      %3523 = vmatpush1.bf16.msra.mxu0 %v3028
      %3524 = vmatprep.subr.bf16.mxu0 %v3036
      %3525 = vmatpush1.bf16.msra.mxu0 %v3035
      %3526 = vmatprep.subr.bf16.mxu0 %v3043
      %3527 = vmatpush1.bf16.msra.mxu0 %v3042
      %3528 = vmatprep.subr.bf16.mxu0 %v3050
      %3529 = vmatpush1.bf16.msra.mxu0 %v3049
      %3530 = vmatprep.subr.bf16.mxu0 %v3057
      %3531 = vmatpush1.bf16.msra.mxu0 %v3056
      %3532 = vmatprep.subr.bf16.mxu0 %v3064
      %3533 = vmatpush1.bf16.msra.mxu0 %v3063
      %3534 = vmatprep.subr.bf16.mxu0 %v3071
      %3535 = vmatpush1.bf16.msra.mxu0 %v3070
      %3536 = vmatprep.subr.bf16.mxu0 %v3078
      %3537 = vmatpush1.bf16.msra.mxu0 %v3077
      %3538 = vmatprep.subr.bf16.mxu0 0
      %3539 = vmatpush1.bf16.msra.mxu0 0
      %3540 = vmatprep.subr.bf16.mxu0 0
      %3541 = vmatpush1.bf16.msra.mxu0 0
      %3542 = vmatprep.subr.bf16.mxu0 0
      %3543 = vmatpush1.bf16.msra.mxu0 0
      %3544 = vmatprep.subr.bf16.mxu0 0
      %3545 = vmatpush1.bf16.msra.mxu0 0
      %3546 = vmatprep.subr.bf16.mxu0 0
      %3547 = vmatpush1.bf16.msra.mxu0 0
      %3548 = vmatprep.subr.bf16.mxu0 0
      %3549 = vmatpush1.bf16.msra.mxu0 0
      %3550 = vmatprep.subr.bf16.mxu0 0
      %3551 = vmatpush1.bf16.msra.mxu0 0
      %3552 = vmatprep.subr.bf16.mxu0 0
      %3553 = vmatpush1.bf16.msra.mxu0 0
      %3554 = vmatprep.mubr.bf16.mxu0 0
      %3555 = vmatmul.mubr.bf16.gmra.mrb[0].mxu0 %v2731
      %v3556 = vpop.f32.mrb[0].mxu0
      %v3557 = vadd.f32 %v2832, %v3556
      %v3558 = vpop.f32.mrb[0].mxu0
      %v3559 = vadd.f32 %v2836, %v3558
      %v3560 = vpop.f32.mrb[0].mxu0
      %v3561 = vadd.f32 %v2832, %v3560
      %v3562 = vpop.f32.mrb[0].mxu0
      %v3563 = vadd.f32 %v2836, %v3562
      %3564 = vmatprep.mubr.bf16.mxu0 0
      %3565 = vmatmul.mubr.bf16.gmra.mrb[0].mxu0 %v2732
      %v3566 = vpop.f32.mrb[0].mxu0
      %v3567 = vadd.f32 %v2832, %v3566
      %v3568 = vpop.f32.mrb[0].mxu0
      %v3569 = vadd.f32 %v2836, %v3568
      %v3570 = vpop.f32.mrb[0].mxu0
      %v3571 = vadd.f32 %v2832, %v3570
      %v3572 = vpop.f32.mrb[0].mxu0
      %v3573 = vadd.f32 %v2836, %v3572
      %3574 = vmatprep.mubr.bf16.mxu0 0
      %3575 = vmatmul.mubr.bf16.gmra.mrb[0].mxu0 %v2733
      %v3576 = vpop.f32.mrb[0].mxu0
      %v3577 = vadd.f32 %v2832, %v3576
      %v3578 = vpop.f32.mrb[0].mxu0
      %v3579 = vadd.f32 %v2836, %v3578
      %v3580 = vpop.f32.mrb[0].mxu0
      %v3581 = vadd.f32 %v2832, %v3580
      %v3582 = vpop.f32.mrb[0].mxu0
      %v3583 = vadd.f32 %v2836, %v3582
      %3584 = vmatprep.mubr.bf16.mxu0 0
      %3585 = vmatmul.mubr.bf16.gmra.mrb[0].mxu0 %v2734
      %v3586 = vpop.f32.mrb[0].mxu0
      %v3587 = vadd.f32 %v2832, %v3586
      %v3588 = vpop.f32.mrb[0].mxu0
      %v3589 = vadd.f32 %v2836, %v3588
      %v3590 = vpop.f32.mrb[0].mxu0
      %v3591 = vadd.f32 %v2832, %v3590
      %v3592 = vpop.f32.mrb[0].mxu0
      %v3593 = vadd.f32 %v2836, %v3592
      %3594 = vmatprep.mubr.bf16.mxu0 0
      %3595 = vmatmul.mubr.bf16.gmra.mrb[0].mxu0 %v2735
      %v3596 = vpop.f32.mrb[0].mxu0
      %v3597 = vadd.f32 %v2832, %v3596
      %v3598 = vpop.f32.mrb[0].mxu0
      %v3599 = vadd.f32 %v2836, %v3598
      %v3600 = vpop.f32.mrb[0].mxu0
      %v3601 = vadd.f32 %v2832, %v3600
      %v3602 = vpop.f32.mrb[0].mxu0
      %v3603 = vadd.f32 %v2836, %v3602
      %3604 = vmatprep.mubr.bf16.mxu0 0
      %3605 = vmatmul.mubr.bf16.gmra.mrb[0].mxu0 %v2736
      %v3606 = vpop.f32.mrb[0].mxu0
      %v3607 = vadd.f32 %v2832, %v3606
      %v3608 = vpop.f32.mrb[0].mxu0
      %v3609 = vadd.f32 %v2836, %v3608
      %v3610 = vpop.f32.mrb[0].mxu0
      %v3611 = vadd.f32 %v2832, %v3610
      %v3612 = vpop.f32.mrb[0].mxu0
      %v3613 = vadd.f32 %v2836, %v3612
      %3614 = vmatprep.mubr.bf16.mxu0 0
      %3615 = vmatmul.mubr.bf16.gmra.mrb[0].mxu0 %v2737
      %v3616 = vpop.f32.mrb[0].mxu0
      %v3617 = vadd.f32 %v2832, %v3616
      %v3618 = vpop.f32.mrb[0].mxu0
      %v3619 = vadd.f32 %v2836, %v3618
      %v3620 = vpop.f32.mrb[0].mxu0
      %v3621 = vadd.f32 %v2832, %v3620
      %v3622 = vpop.f32.mrb[0].mxu0
      %v3623 = vadd.f32 %v2836, %v3622
      %3624 = vmatprep.mubr.bf16.mxu0 0
      %3625 = vmatmul.mubr.bf16.gmra.mrb[0].mxu0 %v2738
      %v3626 = vpop.f32.mrb[0].mxu0
      %v3627 = vadd.f32 %v2832, %v3626
      %v3628 = vpop.f32.mrb[0].mxu0
      %v3629 = vadd.f32 %v2836, %v3628
      %v3630 = vpop.f32.mrb[0].mxu0
      %v3631 = vadd.f32 %v2832, %v3630
      %v3632 = vpop.f32.mrb[0].mxu0
      %v3633 = vadd.f32 %v2836, %v3632
      %3634 = vmatprep.mubr.bf16.mxu0 0
      %3635 = vmatmul.mubr.bf16.gmra.mrb[0].mxu0 %v2739
      %v3636 = vpop.f32.mrb[0].mxu0
      %v3637 = vadd.f32 %v2832, %v3636
      %v3638 = vpop.f32.mrb[0].mxu0
      %v3639 = vadd.f32 %v2836, %v3638
      %v3640 = vpop.f32.mrb[0].mxu0
      %v3641 = vadd.f32 %v2832, %v3640
      %v3642 = vpop.f32.mrb[0].mxu0
      %v3643 = vadd.f32 %v2836, %v3642
      %3644 = vmatprep.mubr.bf16.mxu0 0
      %3645 = vmatmul.mubr.bf16.gmra.mrb[0].mxu0 %v2740
      %v3646 = vpop.f32.mrb[0].mxu0
      %v3647 = vadd.f32 %v2832, %v3646
      %v3648 = vpop.f32.mrb[0].mxu0
      %v3649 = vadd.f32 %v2836, %v3648
      %v3650 = vpop.f32.mrb[0].mxu0
      %v3651 = vadd.f32 %v2832, %v3650
      %v3652 = vpop.f32.mrb[0].mxu0
      %v3653 = vadd.f32 %v2836, %v3652
      %3654 = vmatprep.mubr.bf16.mxu0 0
      %3655 = vmatmul.mubr.bf16.gmra.mrb[0].mxu0 %v2741
      %v3656 = vpop.f32.mrb[0].mxu0
      %v3657 = vadd.f32 %v2832, %v3656
      %v3658 = vpop.f32.mrb[0].mxu0
      %v3659 = vadd.f32 %v2836, %v3658
      %v3660 = vpop.f32.mrb[0].mxu0
      %v3661 = vadd.f32 %v2832, %v3660
      %v3662 = vpop.f32.mrb[0].mxu0
      %v3663 = vadd.f32 %v2836, %v3662
      %3664 = vmatprep.mubr.bf16.mxu0 0
      %3665 = vmatmul.mubr.bf16.gmra.mrb[0].mxu0 %v2742
      %v3666 = vpop.f32.mrb[0].mxu0
      %v3667 = vadd.f32 %v2832, %v3666
      %v3668 = vpop.f32.mrb[0].mxu0
      %v3669 = vadd.f32 %v2836, %v3668
      %v3670 = vpop.f32.mrb[0].mxu0
      %v3671 = vadd.f32 %v2832, %v3670
      %v3672 = vpop.f32.mrb[0].mxu0
      %v3673 = vadd.f32 %v2836, %v3672
      %3674 = vmatprep.mubr.bf16.mxu0 0
      %3675 = vmatmul.mubr.bf16.gmra.mrb[0].mxu0 %v2743
      %v3676 = vpop.f32.mrb[0].mxu0
      %v3677 = vadd.f32 %v2832, %v3676
      %v3678 = vpop.f32.mrb[0].mxu0
      %v3679 = vadd.f32 %v2836, %v3678
      %v3680 = vpop.f32.mrb[0].mxu0
      %v3681 = vadd.f32 %v2832, %v3680
      %v3682 = vpop.f32.mrb[0].mxu0
      %v3683 = vadd.f32 %v2836, %v3682
      %3684 = vmatprep.mubr.bf16.mxu0 0
      %3685 = vmatmul.mubr.bf16.gmra.mrb[0].mxu0 %v2744
      %v3686 = vpop.f32.mrb[0].mxu0
      %v3687 = vadd.f32 %v2832, %v3686
      %v3688 = vpop.f32.mrb[0].mxu0
      %v3689 = vadd.f32 %v2836, %v3688
      %v3690 = vpop.f32.mrb[0].mxu0
      %v3691 = vadd.f32 %v2832, %v3690
      %v3692 = vpop.f32.mrb[0].mxu0
      %v3693 = vadd.f32 %v2836, %v3692
      %3694 = vmatprep.mubr.bf16.mxu0 0
      %3695 = vmatmul.mubr.bf16.gmra.mrb[0].mxu0 %v2745
      %v3696 = vpop.f32.mrb[0].mxu0
      %v3697 = vadd.f32 %v2832, %v3696
      %v3698 = vpop.f32.mrb[0].mxu0
      %v3699 = vadd.f32 %v2836, %v3698
      %v3700 = vpop.f32.mrb[0].mxu0
      %v3701 = vadd.f32 %v2832, %v3700
      %v3702 = vpop.f32.mrb[0].mxu0
      %v3703 = vadd.f32 %v2836, %v3702
      %3704 = vmatprep.mubr.bf16.mxu0 0
      %3705 = vmatmul.mubr.bf16.gmra.mrb[0].mxu0 %v2746
      %v3706 = vpop.f32.mrb[0].mxu0
      %v3707 = vadd.f32 %v2832, %v3706
      %v3708 = vpop.f32.mrb[0].mxu0
      %v3709 = vadd.f32 %v2836, %v3708
      %v3710 = vpop.f32.mrb[0].mxu0
      %v3711 = vadd.f32 %v2832, %v3710
      %v3712 = vpop.f32.mrb[0].mxu0
      %v3713 = vadd.f32 %v2836, %v3712
      %3714 = vdwg.mxu0
      %3715 = vmatprep.subr.bf16.mxu0 0
      %3716 = vmatpush1.bf16.msra.mxu0 %v3030
      %3717 = vmatprep.subr.bf16.mxu0 0
      %3718 = vmatpush1.bf16.msra.mxu0 %v3037
      %3719 = vmatprep.subr.bf16.mxu0 0
      %3720 = vmatpush1.bf16.msra.mxu0 %v3044
      %3721 = vmatprep.subr.bf16.mxu0 0
      %3722 = vmatpush1.bf16.msra.mxu0 %v3051
      %3723 = vmatprep.subr.bf16.mxu0 0
      %3724 = vmatpush1.bf16.msra.mxu0 %v3058
      %3725 = vmatprep.subr.bf16.mxu0 0
      %3726 = vmatpush1.bf16.msra.mxu0 %v3065
      %3727 = vmatprep.subr.bf16.mxu0 0
      %3728 = vmatpush1.bf16.msra.mxu0 %v3072
      %3729 = vmatprep.subr.bf16.mxu0 0
      %3730 = vmatpush1.bf16.msra.mxu0 %v3079
      %3731 = vmatprep.subr.bf16.mxu0 0
      %3732 = vmatpush1.bf16.msra.mxu0 0
      %3733 = vmatprep.subr.bf16.mxu0 0
      %3734 = vmatpush1.bf16.msra.mxu0 0
      %3735 = vmatprep.subr.bf16.mxu0 0
      %3736 = vmatpush1.bf16.msra.mxu0 0
      %3737 = vmatprep.subr.bf16.mxu0 0
      %3738 = vmatpush1.bf16.msra.mxu0 0
      %3739 = vmatprep.subr.bf16.mxu0 0
      %3740 = vmatpush1.bf16.msra.mxu0 0
      %3741 = vmatprep.subr.bf16.mxu0 0
      %3742 = vmatpush1.bf16.msra.mxu0 0
      %3743 = vmatprep.subr.bf16.mxu0 0
      %3744 = vmatpush1.bf16.msra.mxu0 0
      %3745 = vmatprep.subr.bf16.mxu0 0
      %3746 = vmatpush1.bf16.msra.mxu0 0
      %3747 = vmatprep.mubr.bf16.mxu0 0
      %3748 = vmatmul.mubr.bf16.gmra.mrb[0].mxu0 %v2731
      %v3749 = vpop.f32.mrb[0].mxu0
      %v3750 = vadd.f32 %v2840, %v3749
      %v3751 = vpop.f32.mrb[0].mxu0
      %v3752 = vpop.f32.mrb[0].mxu0
      %v3753 = vadd.f32 %v2840, %v3752
      %v3754 = vpop.f32.mrb[0].mxu0
      %3755 = vmatprep.mubr.bf16.mxu0 0
      %3756 = vmatmul.mubr.bf16.gmra.mrb[0].mxu0 %v2732
      %v3757 = vpop.f32.mrb[0].mxu0
      %v3758 = vadd.f32 %v2840, %v3757
      %v3759 = vpop.f32.mrb[0].mxu0
      %v3760 = vpop.f32.mrb[0].mxu0
      %v3761 = vadd.f32 %v2840, %v3760
      %v3762 = vpop.f32.mrb[0].mxu0
      %3763 = vmatprep.mubr.bf16.mxu0 0
      %3764 = vmatmul.mubr.bf16.gmra.mrb[0].mxu0 %v2733
      %v3765 = vpop.f32.mrb[0].mxu0
      %v3766 = vadd.f32 %v2840, %v3765
      %v3767 = vpop.f32.mrb[0].mxu0
      %v3768 = vpop.f32.mrb[0].mxu0
      %v3769 = vadd.f32 %v2840, %v3768
      %v3770 = vpop.f32.mrb[0].mxu0
      %3771 = vmatprep.mubr.bf16.mxu0 0
      %3772 = vmatmul.mubr.bf16.gmra.mrb[0].mxu0 %v2734
      %v3773 = vpop.f32.mrb[0].mxu0
      %v3774 = vadd.f32 %v2840, %v3773
      %v3775 = vpop.f32.mrb[0].mxu0
      %v3776 = vpop.f32.mrb[0].mxu0
      %v3777 = vadd.f32 %v2840, %v3776
      %v3778 = vpop.f32.mrb[0].mxu0
      %3779 = vmatprep.mubr.bf16.mxu0 0
      %3780 = vmatmul.mubr.bf16.gmra.mrb[0].mxu0 %v2735
      %v3781 = vpop.f32.mrb[0].mxu0
      %v3782 = vadd.f32 %v2840, %v3781
      %v3783 = vpop.f32.mrb[0].mxu0
      %v3784 = vpop.f32.mrb[0].mxu0
      %v3785 = vadd.f32 %v2840, %v3784
      %v3786 = vpop.f32.mrb[0].mxu0
      %3787 = vmatprep.mubr.bf16.mxu0 0
      %3788 = vmatmul.mubr.bf16.gmra.mrb[0].mxu0 %v2736
      %v3789 = vpop.f32.mrb[0].mxu0
      %v3790 = vadd.f32 %v2840, %v3789
      %v3791 = vpop.f32.mrb[0].mxu0
      %v3792 = vpop.f32.mrb[0].mxu0
      %v3793 = vadd.f32 %v2840, %v3792
      %v3794 = vpop.f32.mrb[0].mxu0
      %3795 = vmatprep.mubr.bf16.mxu0 0
      %3796 = vmatmul.mubr.bf16.gmra.mrb[0].mxu0 %v2737
      %v3797 = vpop.f32.mrb[0].mxu0
      %v3798 = vadd.f32 %v2840, %v3797
      %v3799 = vpop.f32.mrb[0].mxu0
      %v3800 = vpop.f32.mrb[0].mxu0
      %v3801 = vadd.f32 %v2840, %v3800
      %v3802 = vpop.f32.mrb[0].mxu0
      %3803 = vmatprep.mubr.bf16.mxu0 0
      %3804 = vmatmul.mubr.bf16.gmra.mrb[0].mxu0 %v2738
      %v3805 = vpop.f32.mrb[0].mxu0
      %v3806 = vadd.f32 %v2840, %v3805
      %v3807 = vpop.f32.mrb[0].mxu0
      %v3808 = vpop.f32.mrb[0].mxu0
      %v3809 = vadd.f32 %v2840, %v3808
      %v3810 = vpop.f32.mrb[0].mxu0
      %3811 = vmatprep.mubr.bf16.mxu0 0
      %3812 = vmatmul.mubr.bf16.gmra.mrb[0].mxu0 %v2739
      %v3813 = vpop.f32.mrb[0].mxu0
      %v3814 = vadd.f32 %v2840, %v3813
      %v3815 = vpop.f32.mrb[0].mxu0
      %v3816 = vpop.f32.mrb[0].mxu0
      %v3817 = vadd.f32 %v2840, %v3816
      %v3818 = vpop.f32.mrb[0].mxu0
      %3819 = vmatprep.mubr.bf16.mxu0 0
      %3820 = vmatmul.mubr.bf16.gmra.mrb[0].mxu0 %v2740
      %v3821 = vpop.f32.mrb[0].mxu0
      %v3822 = vadd.f32 %v2840, %v3821
      %v3823 = vpop.f32.mrb[0].mxu0
      %v3824 = vpop.f32.mrb[0].mxu0
      %v3825 = vadd.f32 %v2840, %v3824
      %v3826 = vpop.f32.mrb[0].mxu0
      %3827 = vmatprep.mubr.bf16.mxu0 0
      %3828 = vmatmul.mubr.bf16.gmra.mrb[0].mxu0 %v2741
      %v3829 = vpop.f32.mrb[0].mxu0
      %v3830 = vadd.f32 %v2840, %v3829
      %v3831 = vpop.f32.mrb[0].mxu0
      %v3832 = vpop.f32.mrb[0].mxu0
      %v3833 = vadd.f32 %v2840, %v3832
      %v3834 = vpop.f32.mrb[0].mxu0
      %3835 = vmatprep.mubr.bf16.mxu0 0
      %3836 = vmatmul.mubr.bf16.gmra.mrb[0].mxu0 %v2742
      %v3837 = vpop.f32.mrb[0].mxu0
      %v3838 = vadd.f32 %v2840, %v3837
      %v3839 = vpop.f32.mrb[0].mxu0
      %v3840 = vpop.f32.mrb[0].mxu0
      %v3841 = vadd.f32 %v2840, %v3840
      %v3842 = vpop.f32.mrb[0].mxu0
      %3843 = vmatprep.mubr.bf16.mxu0 0
      %3844 = vmatmul.mubr.bf16.gmra.mrb[0].mxu0 %v2743
      %v3845 = vpop.f32.mrb[0].mxu0
      %v3846 = vadd.f32 %v2840, %v3845
      %v3847 = vpop.f32.mrb[0].mxu0
      %v3848 = vpop.f32.mrb[0].mxu0
      %v3849 = vadd.f32 %v2840, %v3848
      %v3850 = vpop.f32.mrb[0].mxu0
      %3851 = vmatprep.mubr.bf16.mxu0 0
      %3852 = vmatmul.mubr.bf16.gmra.mrb[0].mxu0 %v2744
      %v3853 = vpop.f32.mrb[0].mxu0
      %v3854 = vadd.f32 %v2840, %v3853
      %v3855 = vpop.f32.mrb[0].mxu0
      %v3856 = vpop.f32.mrb[0].mxu0
      %v3857 = vadd.f32 %v2840, %v3856
      %v3858 = vpop.f32.mrb[0].mxu0
      %3859 = vmatprep.mubr.bf16.mxu0 0
      %3860 = vmatmul.mubr.bf16.gmra.mrb[0].mxu0 %v2745
      %v3861 = vpop.f32.mrb[0].mxu0
      %v3862 = vadd.f32 %v2840, %v3861
      %v3863 = vpop.f32.mrb[0].mxu0
      %v3864 = vpop.f32.mrb[0].mxu0
      %v3865 = vadd.f32 %v2840, %v3864
      %v3866 = vpop.f32.mrb[0].mxu0
      %3867 = vmatprep.mubr.bf16.mxu0 0
      %3868 = vmatmul.mubr.bf16.gmra.mrb[0].mxu0 %v2746
      %v3869 = vpop.f32.mrb[0].mxu0
      %v3870 = vadd.f32 %v2840, %v3869
      %v3871 = vpop.f32.mrb[0].mxu0
      %v3872 = vpop.f32.mrb[0].mxu0
      %v3873 = vadd.f32 %v2840, %v3872
      %v3874 = vpop.f32.mrb[0].mxu0
      %3875 = vdwg.mxu0
      %v3876 = vsub.f32 0.0, %v3171
      %v3877 = vsub.f32 0.0, %v3173
      %v3878 = vsub.f32 0.0, %v3364
      %v3879 = vsub.f32 0.0, %v3366
      %v3880 = vsub.f32 0.0, %v3557
      %v3881 = vsub.f32 0.0, %v3559
      %v3882 = vsub.f32 0.0, %v3750
      %v3883 = vsub.f32 0.0, %v3175
      %v3884 = vsub.f32 0.0, %v3177
      %v3885 = vsub.f32 0.0, %v3368
      %v3886 = vsub.f32 0.0, %v3370
      %v3887 = vsub.f32 0.0, %v3561
      %v3888 = vsub.f32 0.0, %v3563
      %v3889 = vsub.f32 0.0, %v3753
      %v3890 = vsub.f32 0.0, %v3181
      %v3891 = vsub.f32 0.0, %v3183
      %v3892 = vsub.f32 0.0, %v3374
      %v3893 = vsub.f32 0.0, %v3376
      %v3894 = vsub.f32 0.0, %v3567
      %v3895 = vsub.f32 0.0, %v3569
      %v3896 = vsub.f32 0.0, %v3758
      %v3897 = vsub.f32 0.0, %v3185
      %v3898 = vsub.f32 0.0, %v3187
      %v3899 = vsub.f32 0.0, %v3378
      %v3900 = vsub.f32 0.0, %v3380
      %v3901 = vsub.f32 0.0, %v3571
      %v3902 = vsub.f32 0.0, %v3573
      %v3903 = vsub.f32 0.0, %v3761
      %v3904 = vsub.f32 0.0, %v3191
      %v3905 = vsub.f32 0.0, %v3193
      %v3906 = vsub.f32 0.0, %v3384
      %v3907 = vsub.f32 0.0, %v3386
      %v3908 = vsub.f32 0.0, %v3577
      %v3909 = vsub.f32 0.0, %v3579
      %v3910 = vsub.f32 0.0, %v3766
      %v3911 = vsub.f32 0.0, %v3195
      %v3912 = vsub.f32 0.0, %v3197
      %v3913 = vsub.f32 0.0, %v3388
      %v3914 = vsub.f32 0.0, %v3390
      %v3915 = vsub.f32 0.0, %v3581
      %v3916 = vsub.f32 0.0, %v3583
      %v3917 = vsub.f32 0.0, %v3769
      %v3918 = vsub.f32 0.0, %v3201
      %v3919 = vsub.f32 0.0, %v3203
      %v3920 = vsub.f32 0.0, %v3394
      %v3921 = vsub.f32 0.0, %v3396
      %v3922 = vsub.f32 0.0, %v3587
      %v3923 = vsub.f32 0.0, %v3589
      %v3924 = vsub.f32 0.0, %v3774
      %v3925 = vsub.f32 0.0, %v3205
      %v3926 = vsub.f32 0.0, %v3207
      %v3927 = vsub.f32 0.0, %v3398
      %v3928 = vsub.f32 0.0, %v3400
      %v3929 = vsub.f32 0.0, %v3591
      %v3930 = vsub.f32 0.0, %v3593
      %v3931 = vsub.f32 0.0, %v3777
      %v3932 = vsub.f32 0.0, %v3211
      %v3933 = vsub.f32 0.0, %v3213
      %v3934 = vsub.f32 0.0, %v3404
      %v3935 = vsub.f32 0.0, %v3406
      %v3936 = vsub.f32 0.0, %v3597
      %v3937 = vsub.f32 0.0, %v3599
      %v3938 = vsub.f32 0.0, %v3782
      %v3939 = vsub.f32 0.0, %v3215
      %v3940 = vsub.f32 0.0, %v3217
      %v3941 = vsub.f32 0.0, %v3408
      %v3942 = vsub.f32 0.0, %v3410
      %v3943 = vsub.f32 0.0, %v3601
      %v3944 = vsub.f32 0.0, %v3603
      %v3945 = vsub.f32 0.0, %v3785
      %v3946 = vsub.f32 0.0, %v3221
      %v3947 = vsub.f32 0.0, %v3223
      %v3948 = vsub.f32 0.0, %v3414
      %v3949 = vsub.f32 0.0, %v3416
      %v3950 = vsub.f32 0.0, %v3607
      %v3951 = vsub.f32 0.0, %v3609
      %v3952 = vsub.f32 0.0, %v3790
      %v3953 = vsub.f32 0.0, %v3225
      %v3954 = vsub.f32 0.0, %v3227
      %v3955 = vsub.f32 0.0, %v3418
      %v3956 = vsub.f32 0.0, %v3420
      %v3957 = vsub.f32 0.0, %v3611
      %v3958 = vsub.f32 0.0, %v3613
      %v3959 = vsub.f32 0.0, %v3793
      %v3960 = vsub.f32 0.0, %v3231
      %v3961 = vsub.f32 0.0, %v3233
      %v3962 = vsub.f32 0.0, %v3424
      %v3963 = vsub.f32 0.0, %v3426
      %v3964 = vsub.f32 0.0, %v3617
      %v3965 = vsub.f32 0.0, %v3619
      %v3966 = vsub.f32 0.0, %v3798
      %v3967 = vsub.f32 0.0, %v3235
      %v3968 = vsub.f32 0.0, %v3237
      %v3969 = vsub.f32 0.0, %v3428
      %v3970 = vsub.f32 0.0, %v3430
      %v3971 = vsub.f32 0.0, %v3621
      %v3972 = vsub.f32 0.0, %v3623
      %v3973 = vsub.f32 0.0, %v3801
      %v3974 = vsub.f32 0.0, %v3241
      %v3975 = vsub.f32 0.0, %v3243
      %v3976 = vsub.f32 0.0, %v3434
      %v3977 = vsub.f32 0.0, %v3436
      %v3978 = vsub.f32 0.0, %v3627
      %v3979 = vsub.f32 0.0, %v3629
      %v3980 = vsub.f32 0.0, %v3806
      %v3981 = vsub.f32 0.0, %v3245
      %v3982 = vsub.f32 0.0, %v3247
      %v3983 = vsub.f32 0.0, %v3438
      %v3984 = vsub.f32 0.0, %v3440
      %v3985 = vsub.f32 0.0, %v3631
      %v3986 = vsub.f32 0.0, %v3633
      %v3987 = vsub.f32 0.0, %v3809
      %v3988 = vsub.f32 0.0, %v3251
      %v3989 = vsub.f32 0.0, %v3253
      %v3990 = vsub.f32 0.0, %v3444
      %v3991 = vsub.f32 0.0, %v3446
      %v3992 = vsub.f32 0.0, %v3637
      %v3993 = vsub.f32 0.0, %v3639
      %v3994 = vsub.f32 0.0, %v3814
      %v3995 = vsub.f32 0.0, %v3255
      %v3996 = vsub.f32 0.0, %v3257
      %v3997 = vsub.f32 0.0, %v3448
      %v3998 = vsub.f32 0.0, %v3450
      %v3999 = vsub.f32 0.0, %v3641
      %v4000 = vsub.f32 0.0, %v3643
      %v4001 = vsub.f32 0.0, %v3817
      %v4002 = vsub.f32 0.0, %v3261
      %v4003 = vsub.f32 0.0, %v3263
      %v4004 = vsub.f32 0.0, %v3454
      %v4005 = vsub.f32 0.0, %v3456
      %v4006 = vsub.f32 0.0, %v3647
      %v4007 = vsub.f32 0.0, %v3649
      %v4008 = vsub.f32 0.0, %v3822
      %v4009 = vsub.f32 0.0, %v3265
      %v4010 = vsub.f32 0.0, %v3267
      %v4011 = vsub.f32 0.0, %v3458
      %v4012 = vsub.f32 0.0, %v3460
      %v4013 = vsub.f32 0.0, %v3651
      %v4014 = vsub.f32 0.0, %v3653
      %v4015 = vsub.f32 0.0, %v3825
      %v4016 = vsub.f32 0.0, %v3271
      %v4017 = vsub.f32 0.0, %v3273
      %v4018 = vsub.f32 0.0, %v3464
      %v4019 = vsub.f32 0.0, %v3466
      %v4020 = vsub.f32 0.0, %v3657
      %v4021 = vsub.f32 0.0, %v3659
      %v4022 = vsub.f32 0.0, %v3830
      %v4023 = vsub.f32 0.0, %v3275
      %v4024 = vsub.f32 0.0, %v3277
      %v4025 = vsub.f32 0.0, %v3468
      %v4026 = vsub.f32 0.0, %v3470
      %v4027 = vsub.f32 0.0, %v3661
      %v4028 = vsub.f32 0.0, %v3663
      %v4029 = vsub.f32 0.0, %v3833
      %v4030 = vsub.f32 0.0, %v3281
      %v4031 = vsub.f32 0.0, %v3283
      %v4032 = vsub.f32 0.0, %v3474
      %v4033 = vsub.f32 0.0, %v3476
      %v4034 = vsub.f32 0.0, %v3667
      %v4035 = vsub.f32 0.0, %v3669
      %v4036 = vsub.f32 0.0, %v3838
      %v4037 = vsub.f32 0.0, %v3285
      %v4038 = vsub.f32 0.0, %v3287
      %v4039 = vsub.f32 0.0, %v3478
      %v4040 = vsub.f32 0.0, %v3480
      %v4041 = vsub.f32 0.0, %v3671
      %v4042 = vsub.f32 0.0, %v3673
      %v4043 = vsub.f32 0.0, %v3841
      %v4044 = vsub.f32 0.0, %v3291
      %v4045 = vsub.f32 0.0, %v3293
      %v4046 = vsub.f32 0.0, %v3484
      %v4047 = vsub.f32 0.0, %v3486
      %v4048 = vsub.f32 0.0, %v3677
      %v4049 = vsub.f32 0.0, %v3679
      %v4050 = vsub.f32 0.0, %v3846
      %v4051 = vsub.f32 0.0, %v3295
      %v4052 = vsub.f32 0.0, %v3297
      %v4053 = vsub.f32 0.0, %v3488
      %v4054 = vsub.f32 0.0, %v3490
      %v4055 = vsub.f32 0.0, %v3681
      %v4056 = vsub.f32 0.0, %v3683
      %v4057 = vsub.f32 0.0, %v3849
      %v4058 = vsub.f32 0.0, %v3301
      %v4059 = vsub.f32 0.0, %v3303
      %v4060 = vsub.f32 0.0, %v3494
      %v4061 = vsub.f32 0.0, %v3496
      %v4062 = vsub.f32 0.0, %v3687
      %v4063 = vsub.f32 0.0, %v3689
      %v4064 = vsub.f32 0.0, %v3854
      %v4065 = vsub.f32 0.0, %v3305
      %v4066 = vsub.f32 0.0, %v3307
      %v4067 = vsub.f32 0.0, %v3498
      %v4068 = vsub.f32 0.0, %v3500
      %v4069 = vsub.f32 0.0, %v3691
      %v4070 = vsub.f32 0.0, %v3693
      %v4071 = vsub.f32 0.0, %v3857
      %v4072 = vsub.f32 0.0, %v3311
      %v4073 = vsub.f32 0.0, %v3313
      %v4074 = vsub.f32 0.0, %v3504
      %v4075 = vsub.f32 0.0, %v3506
      %v4076 = vsub.f32 0.0, %v3697
      %v4077 = vsub.f32 0.0, %v3699
      %v4078 = vsub.f32 0.0, %v3862
      %v4079 = vsub.f32 0.0, %v3315
      %v4080 = vsub.f32 0.0, %v3317
      %v4081 = vsub.f32 0.0, %v3508
      %v4082 = vsub.f32 0.0, %v3510
      %v4083 = vsub.f32 0.0, %v3701
      %v4084 = vsub.f32 0.0, %v3703
      %v4085 = vsub.f32 0.0, %v3865
      %v4086 = vsub.f32 0.0, %v3321
      %v4087 = vsub.f32 0.0, %v3323
      %v4088 = vsub.f32 0.0, %v3514
      %v4089 = vsub.f32 0.0, %v3516
      %v4090 = vsub.f32 0.0, %v3707
      %v4091 = vsub.f32 0.0, %v3709
      %v4092 = vsub.f32 0.0, %v3870
      %v4093 = vsub.f32 0.0, %v3325
      %v4094 = vsub.f32 0.0, %v3327
      %v4095 = vsub.f32 0.0, %v3518
      %v4096 = vsub.f32 0.0, %v3520
      %v4097 = vsub.f32 0.0, %v3711
      %v4098 = vsub.f32 0.0, %v3713
      %v4099 = vsub.f32 0.0, %v3873
      %v4100 = vmul.f32 %v3876, 1.442695
      %v4101 = vpow.pop %v4100
      %v4102 = vmul.f32 %v3877, 1.442695
      %v4103 = vpow.pop %v4102
      %v4104 = vmul.f32 %v3878, 1.442695
      %v4105 = vpow.pop %v4104
      %v4106 = vmul.f32 %v3879, 1.442695
      %v4107 = vpow.pop %v4106
      %v4108 = vmul.f32 %v3880, 1.442695
      %v4109 = vpow.pop %v4108
      %v4110 = vmul.f32 %v3881, 1.442695
      %v4111 = vpow.pop %v4110
      %v4112 = vmul.f32 %v3882, 1.442695
      %v4113 = vpow.pop %v4112
      %v4114 = vmul.f32 %v3883, 1.442695
      %v4115 = vpow.pop %v4114
      %v4116 = vmul.f32 %v3884, 1.442695
      %v4117 = vpow.pop %v4116
      %v4118 = vmul.f32 %v3885, 1.442695
      %v4119 = vpow.pop %v4118
      %v4120 = vmul.f32 %v3886, 1.442695
      %v4121 = vpow.pop %v4120
      %v4122 = vmul.f32 %v3887, 1.442695
      %v4123 = vpow.pop %v4122
      %v4124 = vmul.f32 %v3888, 1.442695
      %v4125 = vpow.pop %v4124
      %v4126 = vmul.f32 %v3889, 1.442695
      %v4127 = vpow.pop %v4126
      %v4128 = vmul.f32 %v3890, 1.442695
      %v4129 = vpow.pop %v4128
      %v4130 = vmul.f32 %v3891, 1.442695
      %v4131 = vpow.pop %v4130
      %v4132 = vmul.f32 %v3892, 1.442695
      %v4133 = vpow.pop %v4132
      %v4134 = vmul.f32 %v3893, 1.442695
      %v4135 = vpow.pop %v4134
      %v4136 = vmul.f32 %v3894, 1.442695
      %v4137 = vpow.pop %v4136
      %v4138 = vmul.f32 %v3895, 1.442695
      %v4139 = vpow.pop %v4138
      %v4140 = vmul.f32 %v3896, 1.442695
      %v4141 = vpow.pop %v4140
      %v4142 = vmul.f32 %v3897, 1.442695
      %v4143 = vpow.pop %v4142
      %v4144 = vmul.f32 %v3898, 1.442695
      %v4145 = vpow.pop %v4144
      %v4146 = vmul.f32 %v3899, 1.442695
      %v4147 = vpow.pop %v4146
      %v4148 = vmul.f32 %v3900, 1.442695
      %v4149 = vpow.pop %v4148
      %v4150 = vmul.f32 %v3901, 1.442695
      %v4151 = vpow.pop %v4150
      %v4152 = vmul.f32 %v3902, 1.442695
      %v4153 = vpow.pop %v4152
      %v4154 = vmul.f32 %v3903, 1.442695
      %v4155 = vpow.pop %v4154
      %v4156 = vmul.f32 %v3904, 1.442695
      %v4157 = vpow.pop %v4156
      %v4158 = vmul.f32 %v3905, 1.442695
      %v4159 = vpow.pop %v4158
      %v4160 = vmul.f32 %v3906, 1.442695
      %v4161 = vpow.pop %v4160
      %v4162 = vmul.f32 %v3907, 1.442695
      %v4163 = vpow.pop %v4162
      %v4164 = vmul.f32 %v3908, 1.442695
      %v4165 = vpow.pop %v4164
      %v4166 = vmul.f32 %v3909, 1.442695
      %v4167 = vpow.pop %v4166
      %v4168 = vmul.f32 %v3910, 1.442695
      %v4169 = vpow.pop %v4168
      %v4170 = vmul.f32 %v3911, 1.442695
      %v4171 = vpow.pop %v4170
      %v4172 = vmul.f32 %v3912, 1.442695
      %v4173 = vpow.pop %v4172
      %v4174 = vmul.f32 %v3913, 1.442695
      %v4175 = vpow.pop %v4174
      %v4176 = vmul.f32 %v3914, 1.442695
      %v4177 = vpow.pop %v4176
      %v4178 = vmul.f32 %v3915, 1.442695
      %v4179 = vpow.pop %v4178
      %v4180 = vmul.f32 %v3916, 1.442695
      %v4181 = vpow.pop %v4180
      %v4182 = vmul.f32 %v3917, 1.442695
      %v4183 = vpow.pop %v4182
      %v4184 = vmul.f32 %v3918, 1.442695
      %v4185 = vpow.pop %v4184
      %v4186 = vmul.f32 %v3919, 1.442695
      %v4187 = vpow.pop %v4186
      %v4188 = vmul.f32 %v3920, 1.442695
      %v4189 = vpow.pop %v4188
      %v4190 = vmul.f32 %v3921, 1.442695
      %v4191 = vpow.pop %v4190
      %v4192 = vmul.f32 %v3922, 1.442695
      %v4193 = vpow.pop %v4192
      %v4194 = vmul.f32 %v3923, 1.442695
      %v4195 = vpow.pop %v4194
      %v4196 = vmul.f32 %v3924, 1.442695
      %v4197 = vpow.pop %v4196
      %v4198 = vmul.f32 %v3925, 1.442695
      %v4199 = vpow.pop %v4198
      %v4200 = vmul.f32 %v3926, 1.442695
      %v4201 = vpow.pop %v4200
      %v4202 = vmul.f32 %v3927, 1.442695
      %v4203 = vpow.pop %v4202
      %v4204 = vmul.f32 %v3928, 1.442695
      %v4205 = vpow.pop %v4204
      %v4206 = vmul.f32 %v3929, 1.442695
      %v4207 = vpow.pop %v4206
      %v4208 = vmul.f32 %v3930, 1.442695
      %v4209 = vpow.pop %v4208
      %v4210 = vmul.f32 %v3931, 1.442695
      %v4211 = vpow.pop %v4210
      %v4212 = vmul.f32 %v3932, 1.442695
      %v4213 = vpow.pop %v4212
      %v4214 = vmul.f32 %v3933, 1.442695
      %v4215 = vpow.pop %v4214
      %v4216 = vmul.f32 %v3934, 1.442695
      %v4217 = vpow.pop %v4216
      %v4218 = vmul.f32 %v3935, 1.442695
      %v4219 = vpow.pop %v4218
      %v4220 = vmul.f32 %v3936, 1.442695
      %v4221 = vpow.pop %v4220
      %v4222 = vmul.f32 %v3937, 1.442695
      %v4223 = vpow.pop %v4222
      %v4224 = vmul.f32 %v3938, 1.442695
      %v4225 = vpow.pop %v4224
      %v4226 = vmul.f32 %v3939, 1.442695
      %v4227 = vpow.pop %v4226
      %v4228 = vmul.f32 %v3940, 1.442695
      %v4229 = vpow.pop %v4228
      %v4230 = vmul.f32 %v3941, 1.442695
      %v4231 = vpow.pop %v4230
      %v4232 = vmul.f32 %v3942, 1.442695
      %v4233 = vpow.pop %v4232
      %v4234 = vmul.f32 %v3943, 1.442695
      %v4235 = vpow.pop %v4234
      %v4236 = vmul.f32 %v3944, 1.442695
      %v4237 = vpow.pop %v4236
      %v4238 = vmul.f32 %v3945, 1.442695
      %v4239 = vpow.pop %v4238
      %v4240 = vmul.f32 %v3946, 1.442695
      %v4241 = vpow.pop %v4240
      %v4242 = vmul.f32 %v3947, 1.442695
      %v4243 = vpow.pop %v4242
      %v4244 = vmul.f32 %v3948, 1.442695
      %v4245 = vpow.pop %v4244
      %v4246 = vmul.f32 %v3949, 1.442695
      %v4247 = vpow.pop %v4246
      %v4248 = vmul.f32 %v3950, 1.442695
      %v4249 = vpow.pop %v4248
      %v4250 = vmul.f32 %v3951, 1.442695
      %v4251 = vpow.pop %v4250
      %v4252 = vmul.f32 %v3952, 1.442695
      %v4253 = vpow.pop %v4252
      %v4254 = vmul.f32 %v3953, 1.442695
      %v4255 = vpow.pop %v4254
      %v4256 = vmul.f32 %v3954, 1.442695
      %v4257 = vpow.pop %v4256
      %v4258 = vmul.f32 %v3955, 1.442695
      %v4259 = vpow.pop %v4258
      %v4260 = vmul.f32 %v3956, 1.442695
      %v4261 = vpow.pop %v4260
      %v4262 = vmul.f32 %v3957, 1.442695
      %v4263 = vpow.pop %v4262
      %v4264 = vmul.f32 %v3958, 1.442695
      %v4265 = vpow.pop %v4264
      %v4266 = vmul.f32 %v3959, 1.442695
      %v4267 = vpow.pop %v4266
      %v4268 = vmul.f32 %v3960, 1.442695
      %v4269 = vpow.pop %v4268
      %v4270 = vmul.f32 %v3961, 1.442695
      %v4271 = vpow.pop %v4270
      %v4272 = vmul.f32 %v3962, 1.442695
      %v4273 = vpow.pop %v4272
      %v4274 = vmul.f32 %v3963, 1.442695
      %v4275 = vpow.pop %v4274
      %v4276 = vmul.f32 %v3964, 1.442695
      %v4277 = vpow.pop %v4276
      %v4278 = vmul.f32 %v3965, 1.442695
      %v4279 = vpow.pop %v4278
      %v4280 = vmul.f32 %v3966, 1.442695
      %v4281 = vpow.pop %v4280
      %v4282 = vmul.f32 %v3967, 1.442695
      %v4283 = vpow.pop %v4282
      %v4284 = vmul.f32 %v3968, 1.442695
      %v4285 = vpow.pop %v4284
      %v4286 = vmul.f32 %v3969, 1.442695
      %v4287 = vpow.pop %v4286
      %v4288 = vmul.f32 %v3970, 1.442695
      %v4289 = vpow.pop %v4288
      %v4290 = vmul.f32 %v3971, 1.442695
      %v4291 = vpow.pop %v4290
      %v4292 = vmul.f32 %v3972, 1.442695
      %v4293 = vpow.pop %v4292
      %v4294 = vmul.f32 %v3973, 1.442695
      %v4295 = vpow.pop %v4294
      %v4296 = vmul.f32 %v3974, 1.442695
      %v4297 = vpow.pop %v4296
      %v4298 = vmul.f32 %v3975, 1.442695
      %v4299 = vpow.pop %v4298
      %v4300 = vmul.f32 %v3976, 1.442695
      %v4301 = vpow.pop %v4300
      %v4302 = vmul.f32 %v3977, 1.442695
      %v4303 = vpow.pop %v4302
      %v4304 = vmul.f32 %v3978, 1.442695
      %v4305 = vpow.pop %v4304
      %v4306 = vmul.f32 %v3979, 1.442695
      %v4307 = vpow.pop %v4306
      %v4308 = vmul.f32 %v3980, 1.442695
      %v4309 = vpow.pop %v4308
      %v4310 = vmul.f32 %v3981, 1.442695
      %v4311 = vpow.pop %v4310
      %v4312 = vmul.f32 %v3982, 1.442695
      %v4313 = vpow.pop %v4312
      %v4314 = vmul.f32 %v3983, 1.442695
      %v4315 = vpow.pop %v4314
      %v4316 = vmul.f32 %v3984, 1.442695
      %v4317 = vpow.pop %v4316
      %v4318 = vmul.f32 %v3985, 1.442695
      %v4319 = vpow.pop %v4318
      %v4320 = vmul.f32 %v3986, 1.442695
      %v4321 = vpow.pop %v4320
      %v4322 = vmul.f32 %v3987, 1.442695
      %v4323 = vpow.pop %v4322
      %v4324 = vmul.f32 %v3988, 1.442695
      %v4325 = vpow.pop %v4324
      %v4326 = vmul.f32 %v3989, 1.442695
      %v4327 = vpow.pop %v4326
      %v4328 = vmul.f32 %v3990, 1.442695
      %v4329 = vpow.pop %v4328
      %v4330 = vmul.f32 %v3991, 1.442695
      %v4331 = vpow.pop %v4330
      %v4332 = vmul.f32 %v3992, 1.442695
      %v4333 = vpow.pop %v4332
      %v4334 = vmul.f32 %v3993, 1.442695
      %v4335 = vpow.pop %v4334
      %v4336 = vmul.f32 %v3994, 1.442695
      %v4337 = vpow.pop %v4336
      %v4338 = vmul.f32 %v3995, 1.442695
      %v4339 = vpow.pop %v4338
      %v4340 = vmul.f32 %v3996, 1.442695
      %v4341 = vpow.pop %v4340
      %v4342 = vmul.f32 %v3997, 1.442695
      %v4343 = vpow.pop %v4342
      %v4344 = vmul.f32 %v3998, 1.442695
      %v4345 = vpow.pop %v4344
      %v4346 = vmul.f32 %v3999, 1.442695
      %v4347 = vpow.pop %v4346
      %v4348 = vmul.f32 %v4000, 1.442695
      %v4349 = vpow.pop %v4348
      %v4350 = vmul.f32 %v4001, 1.442695
      %v4351 = vpow.pop %v4350
      %v4352 = vmul.f32 %v4002, 1.442695
      %v4353 = vpow.pop %v4352
      %v4354 = vmul.f32 %v4003, 1.442695
      %v4355 = vpow.pop %v4354
      %v4356 = vmul.f32 %v4004, 1.442695
      %v4357 = vpow.pop %v4356
      %v4358 = vmul.f32 %v4005, 1.442695
      %v4359 = vpow.pop %v4358
      %v4360 = vmul.f32 %v4006, 1.442695
      %v4361 = vpow.pop %v4360
      %v4362 = vmul.f32 %v4007, 1.442695
      %v4363 = vpow.pop %v4362
      %v4364 = vmul.f32 %v4008, 1.442695
      %v4365 = vpow.pop %v4364
      %v4366 = vmul.f32 %v4009, 1.442695
      %v4367 = vpow.pop %v4366
      %v4368 = vmul.f32 %v4010, 1.442695
      %v4369 = vpow.pop %v4368
      %v4370 = vmul.f32 %v4011, 1.442695
      %v4371 = vpow.pop %v4370
      %v4372 = vmul.f32 %v4012, 1.442695
      %v4373 = vpow.pop %v4372
      %v4374 = vmul.f32 %v4013, 1.442695
      %v4375 = vpow.pop %v4374
      %v4376 = vmul.f32 %v4014, 1.442695
      %v4377 = vpow.pop %v4376
      %v4378 = vmul.f32 %v4015, 1.442695
      %v4379 = vpow.pop %v4378
      %v4380 = vmul.f32 %v4016, 1.442695
      %v4381 = vpow.pop %v4380
      %v4382 = vmul.f32 %v4017, 1.442695
      %v4383 = vpow.pop %v4382
      %v4384 = vmul.f32 %v4018, 1.442695
      %v4385 = vpow.pop %v4384
      %v4386 = vmul.f32 %v4019, 1.442695
      %v4387 = vpow.pop %v4386
      %v4388 = vmul.f32 %v4020, 1.442695
      %v4389 = vpow.pop %v4388
      %v4390 = vmul.f32 %v4021, 1.442695
      %v4391 = vpow.pop %v4390
      %v4392 = vmul.f32 %v4022, 1.442695
      %v4393 = vpow.pop %v4392
      %v4394 = vmul.f32 %v4023, 1.442695
      %v4395 = vpow.pop %v4394
      %v4396 = vmul.f32 %v4024, 1.442695
      %v4397 = vpow.pop %v4396
      %v4398 = vmul.f32 %v4025, 1.442695
      %v4399 = vpow.pop %v4398
      %v4400 = vmul.f32 %v4026, 1.442695
      %v4401 = vpow.pop %v4400
      %v4402 = vmul.f32 %v4027, 1.442695
      %v4403 = vpow.pop %v4402
      %v4404 = vmul.f32 %v4028, 1.442695
      %v4405 = vpow.pop %v4404
      %v4406 = vmul.f32 %v4029, 1.442695
      %v4407 = vpow.pop %v4406
      %v4408 = vmul.f32 %v4030, 1.442695
      %v4409 = vpow.pop %v4408
      %v4410 = vmul.f32 %v4031, 1.442695
      %v4411 = vpow.pop %v4410
      %v4412 = vmul.f32 %v4032, 1.442695
      %v4413 = vpow.pop %v4412
      %v4414 = vmul.f32 %v4033, 1.442695
      %v4415 = vpow.pop %v4414
      %v4416 = vmul.f32 %v4034, 1.442695
      %v4417 = vpow.pop %v4416
      %v4418 = vmul.f32 %v4035, 1.442695
      %v4419 = vpow.pop %v4418
      %v4420 = vmul.f32 %v4036, 1.442695
      %v4421 = vpow.pop %v4420
      %v4422 = vmul.f32 %v4037, 1.442695
      %v4423 = vpow.pop %v4422
      %v4424 = vmul.f32 %v4038, 1.442695
      %v4425 = vpow.pop %v4424
      %v4426 = vmul.f32 %v4039, 1.442695
      %v4427 = vpow.pop %v4426
      %v4428 = vmul.f32 %v4040, 1.442695
      %v4429 = vpow.pop %v4428
      %v4430 = vmul.f32 %v4041, 1.442695
      %v4431 = vpow.pop %v4430
      %v4432 = vmul.f32 %v4042, 1.442695
      %v4433 = vpow.pop %v4432
      %v4434 = vmul.f32 %v4043, 1.442695
      %v4435 = vpow.pop %v4434
      %v4436 = vmul.f32 %v4044, 1.442695
      %v4437 = vpow.pop %v4436
      %v4438 = vmul.f32 %v4045, 1.442695
      %v4439 = vpow.pop %v4438
      %v4440 = vmul.f32 %v4046, 1.442695
      %v4441 = vpow.pop %v4440
      %v4442 = vmul.f32 %v4047, 1.442695
      %v4443 = vpow.pop %v4442
      %v4444 = vmul.f32 %v4048, 1.442695
      %v4445 = vpow.pop %v4444
      %v4446 = vmul.f32 %v4049, 1.442695
      %v4447 = vpow.pop %v4446
      %v4448 = vmul.f32 %v4050, 1.442695
      %v4449 = vpow.pop %v4448
      %v4450 = vmul.f32 %v4051, 1.442695
      %v4451 = vpow.pop %v4450
      %v4452 = vmul.f32 %v4052, 1.442695
      %v4453 = vpow.pop %v4452
      %v4454 = vmul.f32 %v4053, 1.442695
      %v4455 = vpow.pop %v4454
      %v4456 = vmul.f32 %v4054, 1.442695
      %v4457 = vpow.pop %v4456
      %v4458 = vmul.f32 %v4055, 1.442695
      %v4459 = vpow.pop %v4458
      %v4460 = vmul.f32 %v4056, 1.442695
      %v4461 = vpow.pop %v4460
      %v4462 = vmul.f32 %v4057, 1.442695
      %v4463 = vpow.pop %v4462
      %v4464 = vmul.f32 %v4058, 1.442695
      %v4465 = vpow.pop %v4464
      %v4466 = vmul.f32 %v4059, 1.442695
      %v4467 = vpow.pop %v4466
      %v4468 = vmul.f32 %v4060, 1.442695
      %v4469 = vpow.pop %v4468
      %v4470 = vmul.f32 %v4061, 1.442695
      %v4471 = vpow.pop %v4470
      %v4472 = vmul.f32 %v4062, 1.442695
      %v4473 = vpow.pop %v4472
      %v4474 = vmul.f32 %v4063, 1.442695
      %v4475 = vpow.pop %v4474
      %v4476 = vmul.f32 %v4064, 1.442695
      %v4477 = vpow.pop %v4476
      %v4478 = vmul.f32 %v4065, 1.442695
      %v4479 = vpow.pop %v4478
      %v4480 = vmul.f32 %v4066, 1.442695
      %v4481 = vpow.pop %v4480
      %v4482 = vmul.f32 %v4067, 1.442695
      %v4483 = vpow.pop %v4482
      %v4484 = vmul.f32 %v4068, 1.442695
      %v4485 = vpow.pop %v4484
      %v4486 = vmul.f32 %v4069, 1.442695
      %v4487 = vpow.pop %v4486
      %v4488 = vmul.f32 %v4070, 1.442695
      %v4489 = vpow.pop %v4488
      %v4490 = vmul.f32 %v4071, 1.442695
      %v4491 = vpow.pop %v4490
      %v4492 = vmul.f32 %v4072, 1.442695
      %v4493 = vpow.pop %v4492
      %v4494 = vmul.f32 %v4073, 1.442695
      %v4495 = vpow.pop %v4494
      %v4496 = vmul.f32 %v4074, 1.442695
      %v4497 = vpow.pop %v4496
      %v4498 = vmul.f32 %v4075, 1.442695
      %v4499 = vpow.pop %v4498
      %v4500 = vmul.f32 %v4076, 1.442695
      %v4501 = vpow.pop %v4500
      %v4502 = vmul.f32 %v4077, 1.442695
      %v4503 = vpow.pop %v4502
      %v4504 = vmul.f32 %v4078, 1.442695
      %v4505 = vpow.pop %v4504
      %v4506 = vmul.f32 %v4079, 1.442695
      %v4507 = vpow.pop %v4506
      %v4508 = vmul.f32 %v4080, 1.442695
      %v4509 = vpow.pop %v4508
      %v4510 = vmul.f32 %v4081, 1.442695
      %v4511 = vpow.pop %v4510
      %v4512 = vmul.f32 %v4082, 1.442695
      %v4513 = vpow.pop %v4512
      %v4514 = vmul.f32 %v4083, 1.442695
      %v4515 = vpow.pop %v4514
      %v4516 = vmul.f32 %v4084, 1.442695
      %v4517 = vpow.pop %v4516
      %v4518 = vmul.f32 %v4085, 1.442695
      %v4519 = vpow.pop %v4518
      %v4520 = vmul.f32 %v4086, 1.442695
      %v4521 = vpow.pop %v4520
      %v4522 = vmul.f32 %v4087, 1.442695
      %v4523 = vpow.pop %v4522
      %v4524 = vmul.f32 %v4088, 1.442695
      %v4525 = vpow.pop %v4524
      %v4526 = vmul.f32 %v4089, 1.442695
      %v4527 = vpow.pop %v4526
      %v4528 = vmul.f32 %v4090, 1.442695
      %v4529 = vpow.pop %v4528
      %v4530 = vmul.f32 %v4091, 1.442695
      %v4531 = vpow.pop %v4530
      %v4532 = vmul.f32 %v4092, 1.442695
      %v4533 = vpow.pop %v4532
      %v4534 = vmul.f32 %v4093, 1.442695
      %v4535 = vpow.pop %v4534
      %v4536 = vmul.f32 %v4094, 1.442695
      %v4537 = vpow.pop %v4536
      %v4538 = vmul.f32 %v4095, 1.442695
      %v4539 = vpow.pop %v4538
      %v4540 = vmul.f32 %v4096, 1.442695
      %v4541 = vpow.pop %v4540
      %v4542 = vmul.f32 %v4097, 1.442695
      %v4543 = vpow.pop %v4542
      %v4544 = vmul.f32 %v4098, 1.442695
      %v4545 = vpow.pop %v4544
      %v4546 = vmul.f32 %v4099, 1.442695
      %v4547 = vpow.pop %v4546
      %v4548 = vadd.f32 %v4101, 1.0
      %v4549 = vadd.f32 %v4103, 1.0
      %v4550 = vadd.f32 %v4105, 1.0
      %v4551 = vadd.f32 %v4107, 1.0
      %v4552 = vadd.f32 %v4109, 1.0
      %v4553 = vadd.f32 %v4111, 1.0
      %v4554 = vadd.f32 %v4113, 1.0
      %v4555 = vadd.f32 %v4115, 1.0
      %v4556 = vadd.f32 %v4117, 1.0
      %v4557 = vadd.f32 %v4119, 1.0
      %v4558 = vadd.f32 %v4121, 1.0
      %v4559 = vadd.f32 %v4123, 1.0
      %v4560 = vadd.f32 %v4125, 1.0
      %v4561 = vadd.f32 %v4127, 1.0
      %v4562 = vadd.f32 %v4129, 1.0
      %v4563 = vadd.f32 %v4131, 1.0
      %v4564 = vadd.f32 %v4133, 1.0
      %v4565 = vadd.f32 %v4135, 1.0
      %v4566 = vadd.f32 %v4137, 1.0
      %v4567 = vadd.f32 %v4139, 1.0
      %v4568 = vadd.f32 %v4141, 1.0
      %v4569 = vadd.f32 %v4143, 1.0
      %v4570 = vadd.f32 %v4145, 1.0
      %v4571 = vadd.f32 %v4147, 1.0
      %v4572 = vadd.f32 %v4149, 1.0
      %v4573 = vadd.f32 %v4151, 1.0
      %v4574 = vadd.f32 %v4153, 1.0
      %v4575 = vadd.f32 %v4155, 1.0
      %v4576 = vadd.f32 %v4157, 1.0
      %v4577 = vadd.f32 %v4159, 1.0
      %v4578 = vadd.f32 %v4161, 1.0
      %v4579 = vadd.f32 %v4163, 1.0
      %v4580 = vadd.f32 %v4165, 1.0
      %v4581 = vadd.f32 %v4167, 1.0
      %v4582 = vadd.f32 %v4169, 1.0
      %v4583 = vadd.f32 %v4171, 1.0
      %v4584 = vadd.f32 %v4173, 1.0
      %v4585 = vadd.f32 %v4175, 1.0
      %v4586 = vadd.f32 %v4177, 1.0
      %v4587 = vadd.f32 %v4179, 1.0
      %v4588 = vadd.f32 %v4181, 1.0
      %v4589 = vadd.f32 %v4183, 1.0
      %v4590 = vadd.f32 %v4185, 1.0
      %v4591 = vadd.f32 %v4187, 1.0
      %v4592 = vadd.f32 %v4189, 1.0
      %v4593 = vadd.f32 %v4191, 1.0
      %v4594 = vadd.f32 %v4193, 1.0
      %v4595 = vadd.f32 %v4195, 1.0
      %v4596 = vadd.f32 %v4197, 1.0
      %v4597 = vadd.f32 %v4199, 1.0
      %v4598 = vadd.f32 %v4201, 1.0
      %v4599 = vadd.f32 %v4203, 1.0
      %v4600 = vadd.f32 %v4205, 1.0
      %v4601 = vadd.f32 %v4207, 1.0
      %v4602 = vadd.f32 %v4209, 1.0
      %v4603 = vadd.f32 %v4211, 1.0
      %v4604 = vadd.f32 %v4213, 1.0
      %v4605 = vadd.f32 %v4215, 1.0
      %v4606 = vadd.f32 %v4217, 1.0
      %v4607 = vadd.f32 %v4219, 1.0
      %v4608 = vadd.f32 %v4221, 1.0
      %v4609 = vadd.f32 %v4223, 1.0
      %v4610 = vadd.f32 %v4225, 1.0
      %v4611 = vadd.f32 %v4227, 1.0
      %v4612 = vadd.f32 %v4229, 1.0
      %v4613 = vadd.f32 %v4231, 1.0
      %v4614 = vadd.f32 %v4233, 1.0
      %v4615 = vadd.f32 %v4235, 1.0
      %v4616 = vadd.f32 %v4237, 1.0
      %v4617 = vadd.f32 %v4239, 1.0
      %v4618 = vadd.f32 %v4241, 1.0
      %v4619 = vadd.f32 %v4243, 1.0
      %v4620 = vadd.f32 %v4245, 1.0
      %v4621 = vadd.f32 %v4247, 1.0
      %v4622 = vadd.f32 %v4249, 1.0
      %v4623 = vadd.f32 %v4251, 1.0
      %v4624 = vadd.f32 %v4253, 1.0
      %v4625 = vadd.f32 %v4255, 1.0
      %v4626 = vadd.f32 %v4257, 1.0
      %v4627 = vadd.f32 %v4259, 1.0
      %v4628 = vadd.f32 %v4261, 1.0
      %v4629 = vadd.f32 %v4263, 1.0
      %v4630 = vadd.f32 %v4265, 1.0
      %v4631 = vadd.f32 %v4267, 1.0
      %v4632 = vadd.f32 %v4269, 1.0
      %v4633 = vadd.f32 %v4271, 1.0
      %v4634 = vadd.f32 %v4273, 1.0
      %v4635 = vadd.f32 %v4275, 1.0
      %v4636 = vadd.f32 %v4277, 1.0
      %v4637 = vadd.f32 %v4279, 1.0
      %v4638 = vadd.f32 %v4281, 1.0
      %v4639 = vadd.f32 %v4283, 1.0
      %v4640 = vadd.f32 %v4285, 1.0
      %v4641 = vadd.f32 %v4287, 1.0
      %v4642 = vadd.f32 %v4289, 1.0
      %v4643 = vadd.f32 %v4291, 1.0
      %v4644 = vadd.f32 %v4293, 1.0
      %v4645 = vadd.f32 %v4295, 1.0
      %v4646 = vadd.f32 %v4297, 1.0
      %v4647 = vadd.f32 %v4299, 1.0
      %v4648 = vadd.f32 %v4301, 1.0
      %v4649 = vadd.f32 %v4303, 1.0
      %v4650 = vadd.f32 %v4305, 1.0
      %v4651 = vadd.f32 %v4307, 1.0
      %v4652 = vadd.f32 %v4309, 1.0
      %v4653 = vadd.f32 %v4311, 1.0
      %v4654 = vadd.f32 %v4313, 1.0
      %v4655 = vadd.f32 %v4315, 1.0
      %v4656 = vadd.f32 %v4317, 1.0
      %v4657 = vadd.f32 %v4319, 1.0
      %v4658 = vadd.f32 %v4321, 1.0
      %v4659 = vadd.f32 %v4323, 1.0
      %v4660 = vadd.f32 %v4325, 1.0
      %v4661 = vadd.f32 %v4327, 1.0
      %v4662 = vadd.f32 %v4329, 1.0
      %v4663 = vadd.f32 %v4331, 1.0
      %v4664 = vadd.f32 %v4333, 1.0
      %v4665 = vadd.f32 %v4335, 1.0
      %v4666 = vadd.f32 %v4337, 1.0
      %v4667 = vadd.f32 %v4339, 1.0
      %v4668 = vadd.f32 %v4341, 1.0
      %v4669 = vadd.f32 %v4343, 1.0
      %v4670 = vadd.f32 %v4345, 1.0
      %v4671 = vadd.f32 %v4347, 1.0
      %v4672 = vadd.f32 %v4349, 1.0
      %v4673 = vadd.f32 %v4351, 1.0
      %v4674 = vadd.f32 %v4353, 1.0
      %v4675 = vadd.f32 %v4355, 1.0
      %v4676 = vadd.f32 %v4357, 1.0
      %v4677 = vadd.f32 %v4359, 1.0
      %v4678 = vadd.f32 %v4361, 1.0
      %v4679 = vadd.f32 %v4363, 1.0
      %v4680 = vadd.f32 %v4365, 1.0
      %v4681 = vadd.f32 %v4367, 1.0
      %v4682 = vadd.f32 %v4369, 1.0
      %v4683 = vadd.f32 %v4371, 1.0
      %v4684 = vadd.f32 %v4373, 1.0
      %v4685 = vadd.f32 %v4375, 1.0
      %v4686 = vadd.f32 %v4377, 1.0
      %v4687 = vadd.f32 %v4379, 1.0
      %v4688 = vadd.f32 %v4381, 1.0
      %v4689 = vadd.f32 %v4383, 1.0
      %v4690 = vadd.f32 %v4385, 1.0
      %v4691 = vadd.f32 %v4387, 1.0
      %v4692 = vadd.f32 %v4389, 1.0
      %v4693 = vadd.f32 %v4391, 1.0
      %v4694 = vadd.f32 %v4393, 1.0
      %v4695 = vadd.f32 %v4395, 1.0
      %v4696 = vadd.f32 %v4397, 1.0
      %v4697 = vadd.f32 %v4399, 1.0
      %v4698 = vadd.f32 %v4401, 1.0
      %v4699 = vadd.f32 %v4403, 1.0
      %v4700 = vadd.f32 %v4405, 1.0
      %v4701 = vadd.f32 %v4407, 1.0
      %v4702 = vadd.f32 %v4409, 1.0
      %v4703 = vadd.f32 %v4411, 1.0
      %v4704 = vadd.f32 %v4413, 1.0
      %v4705 = vadd.f32 %v4415, 1.0
      %v4706 = vadd.f32 %v4417, 1.0
      %v4707 = vadd.f32 %v4419, 1.0
      %v4708 = vadd.f32 %v4421, 1.0
      %v4709 = vadd.f32 %v4423, 1.0
      %v4710 = vadd.f32 %v4425, 1.0
      %v4711 = vadd.f32 %v4427, 1.0
      %v4712 = vadd.f32 %v4429, 1.0
      %v4713 = vadd.f32 %v4431, 1.0
      %v4714 = vadd.f32 %v4433, 1.0
      %v4715 = vadd.f32 %v4435, 1.0
      %v4716 = vadd.f32 %v4437, 1.0
      %v4717 = vadd.f32 %v4439, 1.0
      %v4718 = vadd.f32 %v4441, 1.0
      %v4719 = vadd.f32 %v4443, 1.0
      %v4720 = vadd.f32 %v4445, 1.0
      %v4721 = vadd.f32 %v4447, 1.0
      %v4722 = vadd.f32 %v4449, 1.0
      %v4723 = vadd.f32 %v4451, 1.0
      %v4724 = vadd.f32 %v4453, 1.0
      %v4725 = vadd.f32 %v4455, 1.0
      %v4726 = vadd.f32 %v4457, 1.0
      %v4727 = vadd.f32 %v4459, 1.0
      %v4728 = vadd.f32 %v4461, 1.0
      %v4729 = vadd.f32 %v4463, 1.0
      %v4730 = vadd.f32 %v4465, 1.0
      %v4731 = vadd.f32 %v4467, 1.0
      %v4732 = vadd.f32 %v4469, 1.0
      %v4733 = vadd.f32 %v4471, 1.0
      %v4734 = vadd.f32 %v4473, 1.0
      %v4735 = vadd.f32 %v4475, 1.0
      %v4736 = vadd.f32 %v4477, 1.0
      %v4737 = vadd.f32 %v4479, 1.0
      %v4738 = vadd.f32 %v4481, 1.0
      %v4739 = vadd.f32 %v4483, 1.0
      %v4740 = vadd.f32 %v4485, 1.0
      %v4741 = vadd.f32 %v4487, 1.0
      %v4742 = vadd.f32 %v4489, 1.0
      %v4743 = vadd.f32 %v4491, 1.0
      %v4744 = vadd.f32 %v4493, 1.0
      %v4745 = vadd.f32 %v4495, 1.0
      %v4746 = vadd.f32 %v4497, 1.0
      %v4747 = vadd.f32 %v4499, 1.0
      %v4748 = vadd.f32 %v4501, 1.0
      %v4749 = vadd.f32 %v4503, 1.0
      %v4750 = vadd.f32 %v4505, 1.0
      %v4751 = vadd.f32 %v4507, 1.0
      %v4752 = vadd.f32 %v4509, 1.0
      %v4753 = vadd.f32 %v4511, 1.0
      %v4754 = vadd.f32 %v4513, 1.0
      %v4755 = vadd.f32 %v4515, 1.0
      %v4756 = vadd.f32 %v4517, 1.0
      %v4757 = vadd.f32 %v4519, 1.0
      %v4758 = vadd.f32 %v4521, 1.0
      %v4759 = vadd.f32 %v4523, 1.0
      %v4760 = vadd.f32 %v4525, 1.0
      %v4761 = vadd.f32 %v4527, 1.0
      %v4762 = vadd.f32 %v4529, 1.0
      %v4763 = vadd.f32 %v4531, 1.0
      %v4764 = vadd.f32 %v4533, 1.0
      %v4765 = vadd.f32 %v4535, 1.0
      %v4766 = vadd.f32 %v4537, 1.0
      %v4767 = vadd.f32 %v4539, 1.0
      %v4768 = vadd.f32 %v4541, 1.0
      %v4769 = vadd.f32 %v4543, 1.0
      %v4770 = vadd.f32 %v4545, 1.0
      %v4771 = vadd.f32 %v4547, 1.0
      %v4772 = vrcp.pop %v4548
      %v4773 = vrcp.pop %v4549
      %v4774 = vrcp.pop %v4550
      %v4775 = vrcp.pop %v4551
      %v4776 = vrcp.pop %v4552
      %v4777 = vrcp.pop %v4553
      %v4778 = vrcp.pop %v4554
      %v4779 = vrcp.pop %v4555
      %v4780 = vrcp.pop %v4556
      %v4781 = vrcp.pop %v4557
      %v4782 = vrcp.pop %v4558
      %v4783 = vrcp.pop %v4559
      %v4784 = vrcp.pop %v4560
      %v4785 = vrcp.pop %v4561
      %v4786 = vrcp.pop %v4562
      %v4787 = vrcp.pop %v4563
      %v4788 = vrcp.pop %v4564
      %v4789 = vrcp.pop %v4565
      %v4790 = vrcp.pop %v4566
      %v4791 = vrcp.pop %v4567
      %v4792 = vrcp.pop %v4568
      %v4793 = vrcp.pop %v4569
      %v4794 = vrcp.pop %v4570
      %v4795 = vrcp.pop %v4571
      %v4796 = vrcp.pop %v4572
      %v4797 = vrcp.pop %v4573
      %v4798 = vrcp.pop %v4574
      %v4799 = vrcp.pop %v4575
      %v4800 = vrcp.pop %v4576
      %v4801 = vrcp.pop %v4577
      %v4802 = vrcp.pop %v4578
      %v4803 = vrcp.pop %v4579
      %v4804 = vrcp.pop %v4580
      %v4805 = vrcp.pop %v4581
      %v4806 = vrcp.pop %v4582
      %v4807 = vrcp.pop %v4583
      %v4808 = vrcp.pop %v4584
      %v4809 = vrcp.pop %v4585
      %v4810 = vrcp.pop %v4586
      %v4811 = vrcp.pop %v4587
      %v4812 = vrcp.pop %v4588
      %v4813 = vrcp.pop %v4589
      %v4814 = vrcp.pop %v4590
      %v4815 = vrcp.pop %v4591
      %v4816 = vrcp.pop %v4592
      %v4817 = vrcp.pop %v4593
      %v4818 = vrcp.pop %v4594
      %v4819 = vrcp.pop %v4595
      %v4820 = vrcp.pop %v4596
      %v4821 = vrcp.pop %v4597
      %v4822 = vrcp.pop %v4598
      %v4823 = vrcp.pop %v4599
      %v4824 = vrcp.pop %v4600
      %v4825 = vrcp.pop %v4601
      %v4826 = vrcp.pop %v4602
      %v4827 = vrcp.pop %v4603
      %v4828 = vrcp.pop %v4604
      %v4829 = vrcp.pop %v4605
      %v4830 = vrcp.pop %v4606
      %v4831 = vrcp.pop %v4607
      %v4832 = vrcp.pop %v4608
      %v4833 = vrcp.pop %v4609
      %v4834 = vrcp.pop %v4610
      %v4835 = vrcp.pop %v4611
      %v4836 = vrcp.pop %v4612
      %v4837 = vrcp.pop %v4613
      %v4838 = vrcp.pop %v4614
      %v4839 = vrcp.pop %v4615
      %v4840 = vrcp.pop %v4616
      %v4841 = vrcp.pop %v4617
      %v4842 = vrcp.pop %v4618
      %v4843 = vrcp.pop %v4619
      %v4844 = vrcp.pop %v4620
      %v4845 = vrcp.pop %v4621
      %v4846 = vrcp.pop %v4622
      %v4847 = vrcp.pop %v4623
      %v4848 = vrcp.pop %v4624
      %v4849 = vrcp.pop %v4625
      %v4850 = vrcp.pop %v4626
      %v4851 = vrcp.pop %v4627
      %v4852 = vrcp.pop %v4628
      %v4853 = vrcp.pop %v4629
      %v4854 = vrcp.pop %v4630
      %v4855 = vrcp.pop %v4631
      %v4856 = vrcp.pop %v4632
      %v4857 = vrcp.pop %v4633
      %v4858 = vrcp.pop %v4634
      %v4859 = vrcp.pop %v4635
      %v4860 = vrcp.pop %v4636
      %v4861 = vrcp.pop %v4637
      %v4862 = vrcp.pop %v4638
      %v4863 = vrcp.pop %v4639
      %v4864 = vrcp.pop %v4640
      %v4865 = vrcp.pop %v4641
      %v4866 = vrcp.pop %v4642
      %v4867 = vrcp.pop %v4643
      %v4868 = vrcp.pop %v4644
      %v4869 = vrcp.pop %v4645
      %v4870 = vrcp.pop %v4646
      %v4871 = vrcp.pop %v4647
      %v4872 = vrcp.pop %v4648
      %v4873 = vrcp.pop %v4649
      %v4874 = vrcp.pop %v4650
      %v4875 = vrcp.pop %v4651
      %v4876 = vrcp.pop %v4652
      %v4877 = vrcp.pop %v4653
      %v4878 = vrcp.pop %v4654
      %v4879 = vrcp.pop %v4655
      %v4880 = vrcp.pop %v4656
      %v4881 = vrcp.pop %v4657
      %v4882 = vrcp.pop %v4658
      %v4883 = vrcp.pop %v4659
      %v4884 = vrcp.pop %v4660
      %v4885 = vrcp.pop %v4661
      %v4886 = vrcp.pop %v4662
      %v4887 = vrcp.pop %v4663
      %v4888 = vrcp.pop %v4664
      %v4889 = vrcp.pop %v4665
      %v4890 = vrcp.pop %v4666
      %v4891 = vrcp.pop %v4667
      %v4892 = vrcp.pop %v4668
      %v4893 = vrcp.pop %v4669
      %v4894 = vrcp.pop %v4670
      %v4895 = vrcp.pop %v4671
      %v4896 = vrcp.pop %v4672
      %v4897 = vrcp.pop %v4673
      %v4898 = vrcp.pop %v4674
      %v4899 = vrcp.pop %v4675
      %v4900 = vrcp.pop %v4676
      %v4901 = vrcp.pop %v4677
      %v4902 = vrcp.pop %v4678
      %v4903 = vrcp.pop %v4679
      %v4904 = vrcp.pop %v4680
      %v4905 = vrcp.pop %v4681
      %v4906 = vrcp.pop %v4682
      %v4907 = vrcp.pop %v4683
      %v4908 = vrcp.pop %v4684
      %v4909 = vrcp.pop %v4685
      %v4910 = vrcp.pop %v4686
      %v4911 = vrcp.pop %v4687
      %v4912 = vrcp.pop %v4688
      %v4913 = vrcp.pop %v4689
      %v4914 = vrcp.pop %v4690
      %v4915 = vrcp.pop %v4691
      %v4916 = vrcp.pop %v4692
      %v4917 = vrcp.pop %v4693
      %v4918 = vrcp.pop %v4694
      %v4919 = vrcp.pop %v4695
      %v4920 = vrcp.pop %v4696
      %v4921 = vrcp.pop %v4697
      %v4922 = vrcp.pop %v4698
      %v4923 = vrcp.pop %v4699
      %v4924 = vrcp.pop %v4700
      %v4925 = vrcp.pop %v4701
      %v4926 = vrcp.pop %v4702
      %v4927 = vrcp.pop %v4703
      %v4928 = vrcp.pop %v4704
      %v4929 = vrcp.pop %v4705
      %v4930 = vrcp.pop %v4706
      %v4931 = vrcp.pop %v4707
      %v4932 = vrcp.pop %v4708
      %v4933 = vrcp.pop %v4709
      %v4934 = vrcp.pop %v4710
      %v4935 = vrcp.pop %v4711
      %v4936 = vrcp.pop %v4712
      %v4937 = vrcp.pop %v4713
      %v4938 = vrcp.pop %v4714
      %v4939 = vrcp.pop %v4715
      %v4940 = vrcp.pop %v4716
      %v4941 = vrcp.pop %v4717
      %v4942 = vrcp.pop %v4718
      %v4943 = vrcp.pop %v4719
      %v4944 = vrcp.pop %v4720
      %v4945 = vrcp.pop %v4721
      %v4946 = vrcp.pop %v4722
      %v4947 = vrcp.pop %v4723
      %v4948 = vrcp.pop %v4724
      %v4949 = vrcp.pop %v4725
      %v4950 = vrcp.pop %v4726
      %v4951 = vrcp.pop %v4727
      %v4952 = vrcp.pop %v4728
      %v4953 = vrcp.pop %v4729
      %v4954 = vrcp.pop %v4730
      %v4955 = vrcp.pop %v4731
      %v4956 = vrcp.pop %v4732
      %v4957 = vrcp.pop %v4733
      %v4958 = vrcp.pop %v4734
      %v4959 = vrcp.pop %v4735
      %v4960 = vrcp.pop %v4736
      %v4961 = vrcp.pop %v4737
      %v4962 = vrcp.pop %v4738
      %v4963 = vrcp.pop %v4739
      %v4964 = vrcp.pop %v4740
      %v4965 = vrcp.pop %v4741
      %v4966 = vrcp.pop %v4742
      %v4967 = vrcp.pop %v4743
      %v4968 = vrcp.pop %v4744
      %v4969 = vrcp.pop %v4745
      %v4970 = vrcp.pop %v4746
      %v4971 = vrcp.pop %v4747
      %v4972 = vrcp.pop %v4748
      %v4973 = vrcp.pop %v4749
      %v4974 = vrcp.pop %v4750
      %v4975 = vrcp.pop %v4751
      %v4976 = vrcp.pop %v4752
      %v4977 = vrcp.pop %v4753
      %v4978 = vrcp.pop %v4754
      %v4979 = vrcp.pop %v4755
      %v4980 = vrcp.pop %v4756
      %v4981 = vrcp.pop %v4757
      %v4982 = vrcp.pop %v4758
      %v4983 = vrcp.pop %v4759
      %v4984 = vrcp.pop %v4760
      %v4985 = vrcp.pop %v4761
      %v4986 = vrcp.pop %v4762
      %v4987 = vrcp.pop %v4763
      %v4988 = vrcp.pop %v4764
      %v4989 = vrcp.pop %v4765
      %v4990 = vrcp.pop %v4766
      %v4991 = vrcp.pop %v4767
      %v4992 = vrcp.pop %v4768
      %v4993 = vrcp.pop %v4769
      %v4994 = vrcp.pop %v4770
      %v4995 = vrcp.pop %v4771
      %4996 = vst [vmem:[%s339] sm:$0xff] %v4772
      %4997 = vst [vmem:[%s339 + $0x8] sm:$0xff] %v4773
      %4998 = vst [vmem:[%s339 + $0x10] sm:$0xff] %v4774
      %4999 = vst [vmem:[%s339 + $0x18] sm:$0xff] %v4775
      %5000 = vst [vmem:[%s339 + $0x20] sm:$0xff] %v4776
      %5001 = vst [vmem:[%s339 + $0x28] sm:$0xff] %v4777
      %5002 = vst [vmem:[%s339 + $0x30] sm:$0xff] %v4778
      %5003 = vst [vmem:[%s339 + $0x38] sm:$0xff] %v4779
      %5004 = vst [vmem:[%s339 + $0x40] sm:$0xff] %v4780
      %5005 = vst [vmem:[%s339 + $0x48] sm:$0xff] %v4781
      %5006 = vst [vmem:[%s339 + $0x50] sm:$0xff] %v4782
      %5007 = vst [vmem:[%s339 + $0x58] sm:$0xff] %v4783
      %5008 = vst [vmem:[%s339 + $0x60] sm:$0xff] %v4784
      %5009 = vst [vmem:[%s339 + $0x68] sm:$0xff] %v4785
      %5010 = vst [vmem:[%s339 + $0x70] sm:$0xff] %v4786
      %5011 = vst [vmem:[%s339 + $0x78] sm:$0xff] %v4787
      %5012 = vst [vmem:[%s339 + $0x80] sm:$0xff] %v4788
      %5013 = vst [vmem:[%s339 + $0x88] sm:$0xff] %v4789
      %5014 = vst [vmem:[%s339 + $0x90] sm:$0xff] %v4790
      %5015 = vst [vmem:[%s339 + $0x98] sm:$0xff] %v4791
      %5016 = vst [vmem:[%s339 + $0xa0] sm:$0xff] %v4792
      %5017 = vst [vmem:[%s339 + $0xa8] sm:$0xff] %v4793
      %5018 = vst [vmem:[%s339 + $0xb0] sm:$0xff] %v4794
      %5019 = vst [vmem:[%s339 + $0xb8] sm:$0xff] %v4795
      %5020 = vst [vmem:[%s339 + $0xc0] sm:$0xff] %v4796
      %5021 = vst [vmem:[%s339 + $0xc8] sm:$0xff] %v4797
      %5022 = vst [vmem:[%s339 + $0xd0] sm:$0xff] %v4798
      %5023 = vst [vmem:[%s339 + $0xd8] sm:$0xff] %v4799
      %5024 = vst [vmem:[%s339 + $0xe0] sm:$0xff] %v4800
      %5025 = vst [vmem:[%s339 + $0xe8] sm:$0xff] %v4801
      %5026 = vst [vmem:[%s339 + $0xf0] sm:$0xff] %v4802
      %5027 = vst [vmem:[%s339 + $0xf8] sm:$0xff] %v4803
      %5028 = vst [vmem:[%s339 + $0x100] sm:$0xff] %v4804
      %5029 = vst [vmem:[%s339 + $0x108] sm:$0xff] %v4805
      %5030 = vst [vmem:[%s339 + $0x110] sm:$0xff] %v4806
      %5031 = vst [vmem:[%s339 + $0x118] sm:$0xff] %v4807
      %5032 = vst [vmem:[%s339 + $0x120] sm:$0xff] %v4808
      %5033 = vst [vmem:[%s339 + $0x128] sm:$0xff] %v4809
      %5034 = vst [vmem:[%s339 + $0x130] sm:$0xff] %v4810
      %5035 = vst [vmem:[%s339 + $0x138] sm:$0xff] %v4811
      %5036 = vst [vmem:[%s339 + $0x140] sm:$0xff] %v4812
      %5037 = vst [vmem:[%s339 + $0x148] sm:$0xff] %v4813
      %5038 = vst [vmem:[%s339 + $0x150] sm:$0xff] %v4814
      %5039 = vst [vmem:[%s339 + $0x158] sm:$0xff] %v4815
      %5040 = vst [vmem:[%s339 + $0x160] sm:$0xff] %v4816
      %5041 = vst [vmem:[%s339 + $0x168] sm:$0xff] %v4817
      %5042 = vst [vmem:[%s339 + $0x170] sm:$0xff] %v4818
      %5043 = vst [vmem:[%s339 + $0x178] sm:$0xff] %v4819
      %5044 = vst [vmem:[%s339 + $0x180] sm:$0xff] %v4820
      %5045 = vst [vmem:[%s339 + $0x188] sm:$0xff] %v4821
      %5046 = vst [vmem:[%s339 + $0x190] sm:$0xff] %v4822
      %5047 = vst [vmem:[%s339 + $0x198] sm:$0xff] %v4823
      %5048 = vst [vmem:[%s339 + $0x1a0] sm:$0xff] %v4824
      %5049 = vst [vmem:[%s339 + $0x1a8] sm:$0xff] %v4825
      %5050 = vst [vmem:[%s339 + $0x1b0] sm:$0xff] %v4826
      %5051 = vst [vmem:[%s339 + $0x1b8] sm:$0xff] %v4827
      %5052 = vst [vmem:[%s339 + $0x1c0] sm:$0xff] %v4828
      %5053 = vst [vmem:[%s339 + $0x1c8] sm:$0xff] %v4829
      %5054 = vst [vmem:[%s339 + $0x1d0] sm:$0xff] %v4830
      %5055 = vst [vmem:[%s339 + $0x1d8] sm:$0xff] %v4831
      %5056 = vst [vmem:[%s339 + $0x1e0] sm:$0xff] %v4832
      %5057 = vst [vmem:[%s339 + $0x1e8] sm:$0xff] %v4833
      %5058 = vst [vmem:[%s339 + $0x1f0] sm:$0xff] %v4834
      %5059 = vst [vmem:[%s339 + $0x1f8] sm:$0xff] %v4835
      %5060 = vst [vmem:[%s339 + $0x200] sm:$0xff] %v4836
      %5061 = vst [vmem:[%s339 + $0x208] sm:$0xff] %v4837
      %5062 = vst [vmem:[%s339 + $0x210] sm:$0xff] %v4838
      %5063 = vst [vmem:[%s339 + $0x218] sm:$0xff] %v4839
      %5064 = vst [vmem:[%s339 + $0x220] sm:$0xff] %v4840
      %5065 = vst [vmem:[%s339 + $0x228] sm:$0xff] %v4841
      %5066 = vst [vmem:[%s339 + $0x230] sm:$0xff] %v4842
      %5067 = vst [vmem:[%s339 + $0x238] sm:$0xff] %v4843
      %5068 = vst [vmem:[%s339 + $0x240] sm:$0xff] %v4844
      %5069 = vst [vmem:[%s339 + $0x248] sm:$0xff] %v4845
      %5070 = vst [vmem:[%s339 + $0x250] sm:$0xff] %v4846
      %5071 = vst [vmem:[%s339 + $0x258] sm:$0xff] %v4847
      %5072 = vst [vmem:[%s339 + $0x260] sm:$0xff] %v4848
      %5073 = vst [vmem:[%s339 + $0x268] sm:$0xff] %v4849
      %5074 = vst [vmem:[%s339 + $0x270] sm:$0xff] %v4850
      %5075 = vst [vmem:[%s339 + $0x278] sm:$0xff] %v4851
      %5076 = vst [vmem:[%s339 + $0x280] sm:$0xff] %v4852
      %5077 = vst [vmem:[%s339 + $0x288] sm:$0xff] %v4853
      %5078 = vst [vmem:[%s339 + $0x290] sm:$0xff] %v4854
      %5079 = vst [vmem:[%s339 + $0x298] sm:$0xff] %v4855
      %5080 = vst [vmem:[%s339 + $0x2a0] sm:$0xff] %v4856
      %5081 = vst [vmem:[%s339 + $0x2a8] sm:$0xff] %v4857
      %5082 = vst [vmem:[%s339 + $0x2b0] sm:$0xff] %v4858
      %5083 = vst [vmem:[%s339 + $0x2b8] sm:$0xff] %v4859
      %5084 = vst [vmem:[%s339 + $0x2c0] sm:$0xff] %v4860
      %5085 = vst [vmem:[%s339 + $0x2c8] sm:$0xff] %v4861
      %5086 = vst [vmem:[%s339 + $0x2d0] sm:$0xff] %v4862
      %5087 = vst [vmem:[%s339 + $0x2d8] sm:$0xff] %v4863
      %5088 = vst [vmem:[%s339 + $0x2e0] sm:$0xff] %v4864
      %5089 = vst [vmem:[%s339 + $0x2e8] sm:$0xff] %v4865
      %5090 = vst [vmem:[%s339 + $0x2f0] sm:$0xff] %v4866
      %5091 = vst [vmem:[%s339 + $0x2f8] sm:$0xff] %v4867
      %5092 = vst [vmem:[%s339 + $0x300] sm:$0xff] %v4868
      %5093 = vst [vmem:[%s339 + $0x308] sm:$0xff] %v4869
      %5094 = vst [vmem:[%s339 + $0x310] sm:$0xff] %v4870
      %5095 = vst [vmem:[%s339 + $0x318] sm:$0xff] %v4871
      %5096 = vst [vmem:[%s339 + $0x320] sm:$0xff] %v4872
      %5097 = vst [vmem:[%s339 + $0x328] sm:$0xff] %v4873
      %5098 = vst [vmem:[%s339 + $0x330] sm:$0xff] %v4874
      %5099 = vst [vmem:[%s339 + $0x338] sm:$0xff] %v4875
      %5100 = vst [vmem:[%s339 + $0x340] sm:$0xff] %v4876
      %5101 = vst [vmem:[%s339 + $0x348] sm:$0xff] %v4877
      %5102 = vst [vmem:[%s339 + $0x350] sm:$0xff] %v4878
      %5103 = vst [vmem:[%s339 + $0x358] sm:$0xff] %v4879
      %5104 = vst [vmem:[%s339 + $0x360] sm:$0xff] %v4880
      %5105 = vst [vmem:[%s339 + $0x368] sm:$0xff] %v4881
      %5106 = vst [vmem:[%s339 + $0x370] sm:$0xff] %v4882
      %5107 = vst [vmem:[%s339 + $0x378] sm:$0xff] %v4883
      %5108 = vst [vmem:[%s339 + $0x380] sm:$0xff] %v4884
      %5109 = vst [vmem:[%s339 + $0x388] sm:$0xff] %v4885
      %5110 = vst [vmem:[%s339 + $0x390] sm:$0xff] %v4886
      %5111 = vst [vmem:[%s339 + $0x398] sm:$0xff] %v4887
      %5112 = vst [vmem:[%s339 + $0x3a0] sm:$0xff] %v4888
      %5113 = vst [vmem:[%s339 + $0x3a8] sm:$0xff] %v4889
      %5114 = vst [vmem:[%s339 + $0x3b0] sm:$0xff] %v4890
      %5115 = vst [vmem:[%s339 + $0x3b8] sm:$0xff] %v4891
      %5116 = vst [vmem:[%s339 + $0x3c0] sm:$0xff] %v4892
      %5117 = vst [vmem:[%s339 + $0x3c8] sm:$0xff] %v4893
      %5118 = vst [vmem:[%s339 + $0x3d0] sm:$0xff] %v4894
      %5119 = vst [vmem:[%s339 + $0x3d8] sm:$0xff] %v4895
      %5120 = vst [vmem:[%s339 + $0x3e0] sm:$0xff] %v4896
      %5121 = vst [vmem:[%s339 + $0x3e8] sm:$0xff] %v4897
      %5122 = vst [vmem:[%s339 + $0x3f0] sm:$0xff] %v4898
      %5123 = vst [vmem:[%s339 + $0x3f8] sm:$0xff] %v4899
      %5124 = vst [vmem:[%s339 + $0x400] sm:$0xff] %v4900
      %5125 = vst [vmem:[%s339 + $0x408] sm:$0xff] %v4901
      %5126 = vst [vmem:[%s339 + $0x410] sm:$0xff] %v4902
      %5127 = vst [vmem:[%s339 + $0x418] sm:$0xff] %v4903
      %5128 = vst [vmem:[%s339 + $0x420] sm:$0xff] %v4904
      %5129 = vst [vmem:[%s339 + $0x428] sm:$0xff] %v4905
      %5130 = vst [vmem:[%s339 + $0x430] sm:$0xff] %v4906
      %5131 = vst [vmem:[%s339 + $0x438] sm:$0xff] %v4907
      %5132 = vst [vmem:[%s339 + $0x440] sm:$0xff] %v4908
      %5133 = vst [vmem:[%s339 + $0x448] sm:$0xff] %v4909
      %5134 = vst [vmem:[%s339 + $0x450] sm:$0xff] %v4910
      %5135 = vst [vmem:[%s339 + $0x458] sm:$0xff] %v4911
      %5136 = vst [vmem:[%s339 + $0x460] sm:$0xff] %v4912
      %5137 = vst [vmem:[%s339 + $0x468] sm:$0xff] %v4913
      %5138 = vst [vmem:[%s339 + $0x470] sm:$0xff] %v4914
      %5139 = vst [vmem:[%s339 + $0x478] sm:$0xff] %v4915
      %5140 = vst [vmem:[%s339 + $0x480] sm:$0xff] %v4916
      %5141 = vst [vmem:[%s339 + $0x488] sm:$0xff] %v4917
      %5142 = vst [vmem:[%s339 + $0x490] sm:$0xff] %v4918
      %5143 = vst [vmem:[%s339 + $0x498] sm:$0xff] %v4919
      %5144 = vst [vmem:[%s339 + $0x4a0] sm:$0xff] %v4920
      %5145 = vst [vmem:[%s339 + $0x4a8] sm:$0xff] %v4921
      %5146 = vst [vmem:[%s339 + $0x4b0] sm:$0xff] %v4922
      %5147 = vst [vmem:[%s339 + $0x4b8] sm:$0xff] %v4923
      %5148 = vst [vmem:[%s339 + $0x4c0] sm:$0xff] %v4924
      %5149 = vst [vmem:[%s339 + $0x4c8] sm:$0xff] %v4925
      %5150 = vst [vmem:[%s339 + $0x4d0] sm:$0xff] %v4926
      %5151 = vst [vmem:[%s339 + $0x4d8] sm:$0xff] %v4927
      %5152 = vst [vmem:[%s339 + $0x4e0] sm:$0xff] %v4928
      %5153 = vst [vmem:[%s339 + $0x4e8] sm:$0xff] %v4929
      %5154 = vst [vmem:[%s339 + $0x4f0] sm:$0xff] %v4930
      %5155 = vst [vmem:[%s339 + $0x4f8] sm:$0xff] %v4931
      %5156 = vst [vmem:[%s339 + $0x500] sm:$0xff] %v4932
      %5157 = vst [vmem:[%s339 + $0x508] sm:$0xff] %v4933
      %5158 = vst [vmem:[%s339 + $0x510] sm:$0xff] %v4934
      %5159 = vst [vmem:[%s339 + $0x518] sm:$0xff] %v4935
      %5160 = vst [vmem:[%s339 + $0x520] sm:$0xff] %v4936
      %5161 = vst [vmem:[%s339 + $0x528] sm:$0xff] %v4937
      %5162 = vst [vmem:[%s339 + $0x530] sm:$0xff] %v4938
      %5163 = vst [vmem:[%s339 + $0x538] sm:$0xff] %v4939
      %5164 = vst [vmem:[%s339 + $0x540] sm:$0xff] %v4940
      %5165 = vst [vmem:[%s339 + $0x548] sm:$0xff] %v4941
      %5166 = vst [vmem:[%s339 + $0x550] sm:$0xff] %v4942
      %5167 = vst [vmem:[%s339 + $0x558] sm:$0xff] %v4943
      %5168 = vst [vmem:[%s339 + $0x560] sm:$0xff] %v4944
      %5169 = vst [vmem:[%s339 + $0x568] sm:$0xff] %v4945
      %5170 = vst [vmem:[%s339 + $0x570] sm:$0xff] %v4946
      %5171 = vst [vmem:[%s339 + $0x578] sm:$0xff] %v4947
      %5172 = vst [vmem:[%s339 + $0x580] sm:$0xff] %v4948
      %5173 = vst [vmem:[%s339 + $0x588] sm:$0xff] %v4949
      %5174 = vst [vmem:[%s339 + $0x590] sm:$0xff] %v4950
      %5175 = vst [vmem:[%s339 + $0x598] sm:$0xff] %v4951
      %5176 = vst [vmem:[%s339 + $0x5a0] sm:$0xff] %v4952
      %5177 = vst [vmem:[%s339 + $0x5a8] sm:$0xff] %v4953
      %5178 = vst [vmem:[%s339 + $0x5b0] sm:$0xff] %v4954
      %5179 = vst [vmem:[%s339 + $0x5b8] sm:$0xff] %v4955
      %5180 = vst [vmem:[%s339 + $0x5c0] sm:$0xff] %v4956
      %5181 = vst [vmem:[%s339 + $0x5c8] sm:$0xff] %v4957
      %5182 = vst [vmem:[%s339 + $0x5d0] sm:$0xff] %v4958
      %5183 = vst [vmem:[%s339 + $0x5d8] sm:$0xff] %v4959
      %5184 = vst [vmem:[%s339 + $0x5e0] sm:$0xff] %v4960
      %5185 = vst [vmem:[%s339 + $0x5e8] sm:$0xff] %v4961
      %5186 = vst [vmem:[%s339 + $0x5f0] sm:$0xff] %v4962
      %5187 = vst [vmem:[%s339 + $0x5f8] sm:$0xff] %v4963
      %5188 = vst [vmem:[%s339 + $0x600] sm:$0xff] %v4964
      %5189 = vst [vmem:[%s339 + $0x608] sm:$0xff] %v4965
      %5190 = vst [vmem:[%s339 + $0x610] sm:$0xff] %v4966
      %5191 = vst [vmem:[%s339 + $0x618] sm:$0xff] %v4967
      %5192 = vst [vmem:[%s339 + $0x620] sm:$0xff] %v4968
      %5193 = vst [vmem:[%s339 + $0x628] sm:$0xff] %v4969
      %5194 = vst [vmem:[%s339 + $0x630] sm:$0xff] %v4970
      %5195 = vst [vmem:[%s339 + $0x638] sm:$0xff] %v4971
      %5196 = vst [vmem:[%s339 + $0x640] sm:$0xff] %v4972
      %5197 = vst [vmem:[%s339 + $0x648] sm:$0xff] %v4973
      %5198 = vst [vmem:[%s339 + $0x650] sm:$0xff] %v4974
      %5199 = vst [vmem:[%s339 + $0x658] sm:$0xff] %v4975
      %5200 = vst [vmem:[%s339 + $0x660] sm:$0xff] %v4976
      %5201 = vst [vmem:[%s339 + $0x668] sm:$0xff] %v4977
      %5202 = vst [vmem:[%s339 + $0x670] sm:$0xff] %v4978
      %5203 = vst [vmem:[%s339 + $0x678] sm:$0xff] %v4979
      %5204 = vst [vmem:[%s339 + $0x680] sm:$0xff] %v4980
      %5205 = vst [vmem:[%s339 + $0x688] sm:$0xff] %v4981
      %5206 = vst [vmem:[%s339 + $0x690] sm:$0xff] %v4982
      %5207 = vst [vmem:[%s339 + $0x698] sm:$0xff] %v4983
      %5208 = vst [vmem:[%s339 + $0x6a0] sm:$0xff] %v4984
      %5209 = vst [vmem:[%s339 + $0x6a8] sm:$0xff] %v4985
      %5210 = vst [vmem:[%s339 + $0x6b0] sm:$0xff] %v4986
      %5211 = vst [vmem:[%s339 + $0x6b8] sm:$0xff] %v4987
      %5212 = vst [vmem:[%s339 + $0x6c0] sm:$0xff] %v4988
      %5213 = vst [vmem:[%s339 + $0x6c8] sm:$0xff] %v4989
      %5214 = vst [vmem:[%s339 + $0x6d0] sm:$0xff] %v4990
      %5215 = vst [vmem:[%s339 + $0x6d8] sm:$0xff] %v4991
      %5216 = vst [vmem:[%s339 + $0x6e0] sm:$0xff] %v4992
      %5217 = vst [vmem:[%s339 + $0x6e8] sm:$0xff] %v4993
      %5218 = vst [vmem:[%s339 + $0x6f0] sm:$0xff] %v4994
      %5219 = vst [vmem:[%s339 + $0x6f8] sm:$0xff] %v4995
      %s5220 = smul.u32 32, %s20
      %p5221 = scmp.lt.s32.totalorder %s5220, 63
      %s5222 = scalar_select %p5221, %s5220, 63
      %s5223 = smul.addr %s5222, 7
      %s5224 = smul.addr %s5223, 8
      %s5225 = scalar_lea.vmem %s9, %s5224
      // Predicated region
      $region57: #{autoencoder_forward.1} parent=55 // pred_check
        %p5226 = pneg %p232
      $region58: #{autoencoder_forward.1} parent=55 // pred_check_branch
        %5228 = sbr.rel (%p5226) target = $region60
      $region59: #{autoencoder_forward.1} parent=55 // pred_region
        %s5229 = smul.u32 32, %s20
      $region60: #{autoencoder_forward.1} parent=55 // pred_fallthru
        _
    $region56: #{autoencoder_forward.1} parent=5 // pred_fallthru
      _
    %p5230 = scmp.le.s32.totalorder 2, %s15
    // Predicated region
    $region61: #{autoencoder_forward.1} parent=5 // pred_check
      %p5231 = pneg %p5230
    $region62: #{autoencoder_forward.1} parent=5 // pred_check_branch
      %5233 = sbr.rel (%p5231) target = $region64
    $region63: #{autoencoder_forward.1} parent=5 // pred_region
      %s5234 = ssub.s32 %s15, 2
      // Predicated region
      $region65: #{autoencoder_forward.1} parent=63 // pred_check
        %p5235 = pneg %p238
      $region66: #{autoencoder_forward.1} parent=63 // pred_check_branch
        %5237 = sbr.rel (%p5235) target = $region68
      $region67: #{autoencoder_forward.1} parent=63 // pred_region
        %s5238 = smul.u32 32, %s21
        %p5239 = scmp.lt.s32.totalorder %s5238, 63
        %s5240 = scalar_select %p5239, %s5238, 63
        %s5241 = smul.addr %s5240, 7
        %s5242 = smul.addr %s5241, 8
        %s5243 = scalar_lea.vmem %s9, %s5242
      $region68: #{autoencoder_forward.1} parent=63 // pred_fallthru
        _
    $region64: #{autoencoder_forward.1} parent=5 // pred_fallthru
      _
  $region6: #{autoencoder_forward.1} parent=0 // loop_footer
    %s19 = sadd.s32 1, %s15
  $region7: #{autoencoder_forward.1} parent=0 // loop_footer_branch
    %14 = sbr.rel target = $region3
  $region8: #{autoencoder_forward.1} parent=0 // loop_exit
    _

</llo_original>
